<compile_context>
chip_gen: v5e
topology: v5e:2x2
jax: 0.10.0
libtpu: 0.0.40
codegen_flags: <defaults>
</compile_context>

<pallas_src>
import jax
import jax.numpy as jnp
from jax.experimental import pallas as pl
from jax.experimental.pallas import tpu as pltpu

IMG_SIZE = 16   # small stand-in for the module's 128 so the demo runs fast
                # (fc1 in_features = 64 * (IMG_SIZE // 4) ** 2, exactly like the module)


# --------------------------------------------------------------------------- #
# Chip-aware VMEM budgeting (v5e/v6e: 128 MiB VMEM, v7x: 64 MiB)               #
# --------------------------------------------------------------------------- #
def _tpu_vmem_capacity_bytes():
    try:
        return int(pltpu.get_tpu_info().vmem_capacity_bytes)
    except Exception:
        return 64 << 20          # be conservative (assume v7x-sized VMEM)


_VMEM_CAP = _tpu_vmem_capacity_bytes()
_BIG_VMEM = _VMEM_CAP >= (96 << 20)                       # v5e / v6e
_CONV_VMEM_LIMIT = (48 << 20) if _BIG_VMEM else (40 << 20)
_CONV_BUDGET = (14 << 20) if _BIG_VMEM else (10 << 20)    # per-step working set
_HEAD_VMEM_LIMIT = (48 << 20) if _BIG_VMEM else (42 << 20)
_HEAD_RESIDENT_CAP = (36 << 20) if _BIG_VMEM else (20 << 20)  # 2x bf16 fc1 weight


def _largest_divisor_leq(n, cap):
    cap = max(1, min(n, cap))
    for d in range(cap, 0, -1):
        if n % d == 0:
            return d
    return 1


def _conv_batch_block(n, per_img_bytes):
    """Batch block from the VMEM budget, keeping >=2 grid steps when n >= 2."""
    blk = max(1, _CONV_BUDGET // max(per_img_bytes, 1))
    if n >= 2:
        blk = min(blk, n // 2)        # keep both TensorCores busy on v7x
    return _largest_divisor_leq(n, max(1, blk))


def _maxpool2x2(y, bb, h, w, cout):
    """2x2/stride-2 max-pool on an f32 (bb, h, w, cout) block via reshape+max.

    TODO(synk): compare against a pltpu.roll(shift=cout)-based lane-merged pool
    that puts the pairwise max on the otherwise-idle XLU slot.
    """
    y = y.reshape(bb, h // 2, 2, w // 2, 2, cout)
    y = jnp.max(y, axis=4)
    return jnp.max(y, axis=2)         # (bb, h//2, w//2, cout)


# --------------------------------------------------------------------------- #
# Kernel 1: conv1 (pre-im2col'd LHS) -> matmul + bias + ReLU + 2x2 max-pool    #
# --------------------------------------------------------------------------- #
def _conv1_matmul_relu_pool_kernel(x_ref, w_ref, b_ref, o_ref):
    """
    x_ref : (Bb, H, W, Kpad)          bf16, wrapper-side im2col (K padded 9->16)
    w_ref : (Kpad, Cout)              bf16, zero rows for the K padding
    b_ref : (1, Cout)                 f32
    o_ref : (Bb, H//2, (W//2)*Cout)   bf16, lane-dense flattened NHWC output
    """
    bb, h, w, kpad = x_ref.shape
    cout = b_ref.shape[1]

    lhs = x_ref[...].reshape(bb * h * w, kpad)           # free merge of leading dims
    acc = jnp.dot(lhs, w_ref[...], preferred_element_type=jnp.float32)
    y = jnp.maximum(acc + b_ref[...], 0.0)               # bias + ReLU in f32
    y = _maxpool2x2(y.reshape(bb, h, w, cout), bb, h, w, cout)
    o_ref[...] = y.reshape(bb, h // 2, (w // 2) * cout).astype(o_ref.dtype)


def conv1_relu_pool(x_nhw, w_k16, b):
    """(N, H, W) single-channel -> (N, H//2, (W//2)*32) bf16.

    The 3x3 "same" conv is expressed as a wrapper-side im2col (9 taps, K padded
    to 16) so the kernel sees a clean matmul LHS instead of a Cin=1 channels-last
    layout that wastes 127/128 lanes and forces relayout chains in-kernel.
    """
    n, h, w = x_nhw.shape
    kpad, cout = w_k16.shape
    assert h % 2 == 0 and w % 2 == 0 and kpad >= 9

    xp = jnp.pad(x_nhw.astype(jnp.bfloat16), ((0, 0), (1, 1), (1, 1)))
    taps = [xp[:, dy:dy + h, dx:dx + w] for dy in range(3) for dx in range(3)]
    patches = jnp.stack(taps, axis=-1)                               # (N, H, W, 9)
    patches = jnp.pad(patches, ((0, 0), (0, 0), (0, 0), (0, kpad - 9)))

    # Per-image VMEM working set (double-buffered in/out blocks + f32 temps).
    per_img = (2 * h * w * kpad * 2 + h * w * cout * 4
               + (h * (w // 2) + (h // 2) * (w // 2)) * cout * 4
               + 2 * (h // 2) * (w // 2) * cout * 2)
    b_blk = _conv_batch_block(n, per_img)

    return pl.pallas_call(
        _conv1_matmul_relu_pool_kernel,
        out_shape=jax.ShapeDtypeStruct((n, h // 2, (w // 2) * cout), jnp.bfloat16),
        grid_spec=pltpu.PrefetchScalarGridSpec(
            num_scalar_prefetch=0,
            grid=(n // b_blk,),
            in_specs=[
                pl.BlockSpec((b_blk, h, w, kpad), lambda i: (i, 0, 0, 0)),
                pl.BlockSpec((kpad, cout), lambda i: (0, 0)),
                pl.BlockSpec((1, cout), lambda i: (0, 0)),
            ],
            out_specs=pl.BlockSpec((b_blk, h // 2, (w // 2) * cout),
                                   lambda i: (i, 0, 0)),
        ),
        compiler_params=pltpu.CompilerParams(
            dimension_semantics=("parallel",),
            vmem_limit_bytes=_CONV_VMEM_LIMIT,
        ),
    )(patches, w_k16, b.reshape(1, cout).astype(jnp.float32))


# --------------------------------------------------------------------------- #
# Kernel 2: conv2 fused in-kernel im2col + matmul + bias + ReLU + 2x2 max-pool #
# --------------------------------------------------------------------------- #
def _conv2_relu_pool_kernel(x_ref, w_ref, b_ref, o_ref):
    """
    x_ref : (Bb, H+2, W+2, Cin)      bf16, zero-padded NHWC input block
    w_ref : (9*Cin, Cout)            bf16, rows ordered (ky, kx, cin)
    b_ref : (1, Cout)                f32
    o_ref : (Bb, H//2, (W//2)*Cout)  bf16, lane-dense flattened NHWC output
    """
    bb, hp, wp, cin = x_ref.shape
    h, w = hp - 2, wp - 2
    cout = b_ref.shape[1]

    xp = x_ref[...]                                     # (Bb, H+2, W+2, Cin) bf16

    # im2col: stack the 9 shifted windows along the contraction (lane) axis so
    # the whole conv is ONE MXU matmul with K = 9*Cin (288 -> lane-dense).
    # TODO(synk): express the shifts with pltpu.roll + edge masks to remove the
    # unaligned W-axis slices and the wrapper-side halo pad entirely.
    taps = [xp[:, dy:dy + h, dx:dx + w, :] for dy in range(3) for dx in range(3)]
    patches = jnp.concatenate(taps, axis=-1)            # (Bb, H, W, 9*Cin)
    patches = patches.reshape(bb * h * w, 9 * cin)

    acc = jnp.dot(patches, w_ref[...], preferred_element_type=jnp.float32)
    y = jnp.maximum(acc + b_ref[...], 0.0)              # bias + ReLU in f32
    y = _maxpool2x2(y.reshape(bb, h, w, cout), bb, h, w, cout)
    o_ref[...] = y.reshape(bb, h // 2, (w // 2) * cout).astype(o_ref.dtype)


def conv2_relu_pool(x_nhwc, w_flat, b):
    """(N, H, W, Cin) -> (N, H//2, (W//2)*Cout) bf16 (conv3x3 pad=1, ReLU, pool)."""
    n, h, w, cin = x_nhwc.shape
    cout = w_flat.shape[1]
    assert h % 2 == 0 and w % 2 == 0 and w_flat.shape[0] == 9 * cin

    # Halo pad in bf16.  TODO(synk): fold this pad into the kernel (edge masks)
    # to drop one HBM round-trip of the inter-layer activation.
    xp = jnp.pad(x_nhwc.astype(jnp.bfloat16), ((0, 0), (1, 1), (1, 1), (0, 0)))

    # Per-image VMEM working set: 2x-buffered in/out blocks, the 9 live taps,
    # the f32 matmul result and the pool intermediates.
    per_img = (2 * (h + 2) * (w + 2) * cin * 2 + h * w * 9 * cin * 2
               + h * w * cout * 4
               + (h * (w // 2) + (h // 2) * (w // 2)) * cout * 4
               + 2 * (h // 2) * (w // 2) * cout * 2)
    b_blk = _conv_batch_block(n, per_img)

    return pl.pallas_call(
        _conv2_relu_pool_kernel,
        out_shape=jax.ShapeDtypeStruct((n, h // 2, (w // 2) * cout), jnp.bfloat16),
        grid_spec=pltpu.PrefetchScalarGridSpec(
            num_scalar_prefetch=0,
            grid=(n // b_blk,),
            in_specs=[
                pl.BlockSpec((b_blk, h + 2, w + 2, cin), lambda i: (i, 0, 0, 0)),
                pl.BlockSpec((9 * cin, cout), lambda i: (0, 0)),
                pl.BlockSpec((1, cout), lambda i: (0, 0)),
            ],
            out_specs=pl.BlockSpec((b_blk, h // 2, (w // 2) * cout),
                                   lambda i: (i, 0, 0)),
        ),
        compiler_params=pltpu.CompilerParams(
            dimension_semantics=("parallel",),
            vmem_limit_bytes=_CONV_VMEM_LIMIT,
        ),
    )(xp, w_flat, b.reshape(1, cout).astype(jnp.float32))


# --------------------------------------------------------------------------- #
# Kernel 3: fc1 (+ ReLU, dropout = identity) + fc2 (VPU) + sigmoid             #
# --------------------------------------------------------------------------- #
def _mlp_head_kernel(x_ref, w1_ref, b1_ref, w2_ref, b2_ref, o_ref, acc_ref):
    """
    grid = (batch blocks [parallel], fc1 K blocks [arbitrary, last])
    x_ref  : (Bb, tk)  bf16        w1_ref : (tk, Hd) bf16
    b1_ref : (1, Hd)   f32         w2_ref : (1, Hd)  f32
    b2_ref : (1,)      f32 (SMEM)  o_ref  : (Bb, 1)  f32
    acc_ref: (Bb, Hd)  f32 VMEM accumulator
    """
    k = pl.program_id(1)

    @pl.when(k == 0)
    def _():
        acc_ref[...] = jnp.zeros_like(acc_ref)

    acc_ref[...] += jnp.dot(x_ref[...], w1_ref[...],
                            preferred_element_type=jnp.float32)

    @pl.when(k == pl.num_programs(1) - 1)
    def _():
        h = jnp.maximum(acc_ref[...] + b1_ref[...], 0.0)        # fc1 + ReLU (f32)
        # TODO(synk): nn.Dropout(0.5) is the identity at inference; train-mode
        # masking (pltpu.prng_*) is intentionally not implemented.
        # fc2 as VPU multiply + lane reduction (avoids a degenerate (Hd,1) matmul).
        logits = jnp.sum(h * w2_ref[...], axis=-1, keepdims=True) + b2_ref[0]
        o_ref[...] = (1.0 / (1.0 + jnp.exp(-logits))).astype(o_ref.dtype)


def mlp_head(x, w1, b1, w2, b2):
    n, f = x.shape
    hd = w1.shape[1]

    # fc1 weight residency: on 128-MiB-VMEM chips keep the whole (double-buffered)
    # bf16 weight resident as one constant-index block -> DMA'd exactly once per
    # forward.  On 64-MiB chips (v7x) stream 8192-wide K tiles (2 MiB DMAs).
    if 2 * f * hd * 2 <= _HEAD_RESIDENT_CAP:
        tk = f
    else:
        tk = _largest_divisor_leq(f, 8192)
    assert f % tk == 0

    # Batch blocking: prefer a single batch block (weight streamed exactly once
    # even on the K-tiled path); only split very large batches, keeping the M
    # block a multiple of 8 sublane rows.
    max_rows = max(1, (4 << 20) // (tk * 2))
    if n <= max_rows:
        bb = n
    elif n % 8 == 0 and max_rows >= 8:
        bb = 8 * _largest_divisor_leq(n // 8, max_rows // 8)
    else:
        bb = _largest_divisor_leq(n, max_rows)

    return pl.pallas_call(
        _mlp_head_kernel,
        out_shape=jax.ShapeDtypeStruct((n, 1), jnp.float32),
        grid_spec=pltpu.PrefetchScalarGridSpec(
            num_scalar_prefetch=0,
            grid=(n // bb, f // tk),
            in_specs=[
                pl.BlockSpec((bb, tk), lambda i, k: (i, k)),
                pl.BlockSpec((tk, hd), lambda i, k: (k, 0)),
                pl.BlockSpec((1, hd), lambda i, k: (0, 0)),
                pl.BlockSpec((1, hd), lambda i, k: (0, 0)),
                pl.BlockSpec(memory_space=pltpu.MemorySpace.SMEM),
            ],
            out_specs=pl.BlockSpec((bb, 1), lambda i, k: (i, 0)),
            scratch_shapes=[pltpu.VMEM((bb, hd), jnp.float32)],
        ),
        compiler_params=pltpu.CompilerParams(
            dimension_semantics=("parallel", "arbitrary"),
            vmem_limit_bytes=_HEAD_VMEM_LIMIT,
        ),
    )(x.astype(jnp.bfloat16), w1.astype(jnp.bfloat16),
      b1.reshape(1, hd).astype(jnp.float32),
      w2.reshape(1, hd).astype(jnp.float32),
      b2.reshape(1).astype(jnp.float32))


# --------------------------------------------------------------------------- #
# Parameter prep (one-time weight layout work, outside the jitted forward)     #
# --------------------------------------------------------------------------- #
def prepare_params(params):
    c = IMG_SIZE // 4
    hd = params["w_fc1"].shape[1]
    # conv weights: HWIO -> (9*Cin, Cout); conv1 K padded 9 -> 16 (zero rows).
    wc1 = jnp.pad(params["w_conv1"].reshape(9, 32), ((0, 7), (0, 0)))
    wc2 = params["w_conv2"].reshape(9 * 32, 64)
    # fc1 rows permuted from torch (C,H,W) flatten order to NHWC (H,W,C) order
    # so the forward needs no activation transpose before flatten.
    w1 = (params["w_fc1"].reshape(64, c, c, hd)
          .transpose(1, 2, 0, 3).reshape(c * c * 64, hd))
    return dict(
        wc1=wc1.astype(jnp.bfloat16), bc1=params["b_conv1"].astype(jnp.float32),
        wc2=wc2.astype(jnp.bfloat16), bc2=params["b_conv2"].astype(jnp.float32),
        w1=w1.astype(jnp.bfloat16), b1=params["b_fc1"].astype(jnp.float32),
        w2=params["w_fc2"].astype(jnp.float32), b2=params["b_fc2"].astype(jnp.float32),
    )


# --------------------------------------------------------------------------- #
# Full CNN forward (matches the PyTorch module's forward, inference)           #
# --------------------------------------------------------------------------- #
def cnn_forward(x_nchw, p):
    n = x_nchw.shape[0]
    x = jnp.squeeze(x_nchw, axis=1)                      # (N, H, W), Cin = 1

    x1 = conv1_relu_pool(x, p["wc1"], p["bc1"])          # (N, H/2, (W/2)*32) bf16
    x1 = x1.reshape(n, IMG_SIZE // 2, IMG_SIZE // 2, 32)  # free minor-dim split
    x2 = conv2_relu_pool(x1, p["wc2"], p["bc2"])         # (N, H/4, (W/4)*64) bf16

    # NHWC flatten order matches the pre-permuted fc1 rows -> no transpose here.
    feats = x2.reshape(n, -1)
    return mlp_head(feats, p["w1"], p["b1"], p["w2"], p["b2"])


def init_params(key):
    ks = jax.random.split(key, 8)
    f = 64 * (IMG_SIZE // 4) * (IMG_SIZE // 4)

    def w(k, shape, fan_in):
        return jax.random.normal(k, shape, jnp.float32) / jnp.sqrt(float(fan_in))

    return dict(
        w_conv1=w(ks[0], (3, 3, 1, 32), 3 * 3 * 1),     # torch (32,1,3,3) -> HWIO
        b_conv1=w(ks[1], (32,), 3 * 3 * 1),
        w_conv2=w(ks[2], (3, 3, 32, 64), 3 * 3 * 32),   # torch (64,32,3,3) -> HWIO
        b_conv2=w(ks[3], (64,), 3 * 3 * 32),
        w_fc1=w(ks[4], (f, 128), f),                    # torch fc1.weight.T (C,H,W rows)
        b_fc1=w(ks[5], (128,), f),
        w_fc2=w(ks[6], (128, 1), 128),                  # torch fc2.weight.T
        b_fc2=w(ks[7], (1,), 128),
    )


if __name__ == "__main__":
    key = jax.random.PRNGKey(0)
    pkey, xkey = jax.random.split(key)
    params = prepare_params(init_params(pkey))
    # NCHW input, single channel, like the torch module expects.
    x = jax.random.normal(xkey, (2, 1, IMG_SIZE, IMG_SIZE), jnp.float32)
    out = jax.jit(cnn_forward)(x, params)
    out = jax.block_until_ready(out)
    assert out.shape == (2, 1) and out.dtype == jnp.float32
    assert bool(jnp.all((out >= 0.0) & (out <= 1.0)))
    print("KERNEL_OK")
</pallas_src>

<mosaic_0001>
module attributes {stable_mosaic.version = 11 : i64} {
  func.func @_conv1_matmul_relu_pool_kernel(%arg0: i32, %arg1: memref<1x16x16x16xbf16, #tpu.memory_space<vmem>>, %arg2: memref<16x32xbf16, #tpu.memory_space<vmem>>, %arg3: memref<1x32xf32, #tpu.memory_space<vmem>>, %arg4: memref<1x8x256xbf16, #tpu.memory_space<vmem>>) attributes {dimension_semantics = [#tpu.dimension_semantics<parallel>], iteration_bounds = array<i64: 2>, scalar_prefetch = 0 : i64, scratch_operands = 0 : i64, tpu.core_type = #tpu.core_type<tc>, window_params = [{transform_indices = @transform_0, window_bounds = array<i64: 1, 16, 16, 16>}, {pipeline_mode = #tpu.pipeline_mode<synchronous>, transform_indices = @transform_1, window_bounds = array<i64: 16, 32>}, {pipeline_mode = #tpu.pipeline_mode<synchronous>, transform_indices = @transform_2, window_bounds = array<i64: 1, 32>}, {transform_indices = @transform_3, window_bounds = array<i64: 1, 8, 256>}]} {
    %c0 = arith.constant 0 : index
    %c0_0 = arith.constant 0 : index
    %c0_1 = arith.constant 0 : index
    %c0_2 = arith.constant 0 : index
    %0 = vector.load %arg1[%c0, %c0_0, %c0_1, %c0_2] : memref<1x16x16x16xbf16, #tpu.memory_space<vmem>>, vector<1x16x16x16xbf16>
    %1 = vector.shape_cast %0 : vector<1x16x16x16xbf16> to vector<256x16xbf16>
    %c0_3 = arith.constant 0 : index
    %c0_4 = arith.constant 0 : index
    %2 = vector.load %arg2[%c0_3, %c0_4] : memref<16x32xbf16, #tpu.memory_space<vmem>>, vector<16x32xbf16>
    %cst = arith.constant dense<0.000000e+00> : vector<256x32xf32>
    %3 = tpu.matmul %1, %2, %cst {dimension_numbers = #tpu.dot_dimension_numbers<[1], [0], [0], [1], [0, 0, 1, 1], [], []>} : vector<256x16xbf16>, vector<16x32xbf16>, vector<256x32xf32> -> vector<256x32xf32>
    %c0_5 = arith.constant 0 : index
    %c0_6 = arith.constant 0 : index
    %4 = vector.load %arg3[%c0_5, %c0_6] : memref<1x32xf32, #tpu.memory_space<vmem>>, vector<1x32xf32>
    %5 = vector.broadcast %4 : vector<1x32xf32> to vector<256x32xf32>
    %6 = arith.addf %3, %5 : vector<256x32xf32>
    %cst_7 = arith.constant 0.000000e+00 : f32
    %7 = vector.broadcast %cst_7 : f32 to vector<256x32xf32>
    %8 = arith.maximumf %6, %7 : vector<256x32xf32>
    %9 = vector.shape_cast %8 : vector<256x32xf32> to vector<1x16x16x32xf32>
    %10 = vector.shape_cast %9 : vector<1x16x16x32xf32> to vector<1x8x2x8x2x32xf32>
    %cst_8 = arith.constant dense<0xFF800000> : vector<1x8x2x8x32xf32>
    %11 = vector.multi_reduction <maximumf>, %10, %cst_8 [4] : vector<1x8x2x8x2x32xf32> to vector<1x8x2x8x32xf32>
    %cst_9 = arith.constant dense<0xFF800000> : vector<1x8x8x32xf32>
    %12 = vector.multi_reduction <maximumf>, %11, %cst_9 [2] : vector<1x8x2x8x32xf32> to vector<1x8x8x32xf32>
    %13 = vector.shape_cast %12 : vector<1x8x8x32xf32> to vector<1x8x256xf32>
    %14 = arith.truncf %13 : vector<1x8x256xf32> to vector<1x8x256xbf16>
    %c0_10 = arith.constant 0 : index
    %c0_11 = arith.constant 0 : index
    %c0_12 = arith.constant 0 : index
    %15 = vector.load %arg4[%c0_10, %c0_11, %c0_12] : memref<1x8x256xbf16, #tpu.memory_space<vmem>>, vector<1x8x256xbf16>
    tpu.vector_store %arg4[%c0_10, %c0_11, %c0_12], %14 {strides = array<i32>} : memref<1x8x256xbf16, #tpu.memory_space<vmem>>, vector<1x8x256xbf16>,
    return
  }
  func.func @transform_0(%arg0: i32) -> (i32, i32, i32, i32) {
    %c0_i32 = arith.constant 0 : i32
    %c0_i32_0 = arith.constant 0 : i32
    %c0_i32_1 = arith.constant 0 : i32
    %c0_i32_2 = arith.constant 0 : i32
    return %arg0, %c0_i32, %c0_i32_0, %c0_i32_1 : i32, i32, i32, i32
  }
  func.func @transform_1(%arg0: i32) -> (i32, i32) {
    %c0_i32 = arith.constant 0 : i32
    %c0_i32_0 = arith.constant 0 : i32
    %c0_i32_1 = arith.constant 0 : i32
    return %c0_i32, %c0_i32_0 : i32, i32
  }
  func.func @transform_2(%arg0: i32) -> (i32, i32) {
    %c0_i32 = arith.constant 0 : i32
    %c0_i32_0 = arith.constant 0 : i32
    %c0_i32_1 = arith.constant 0 : i32
    return %c0_i32, %c0_i32_0 : i32, i32
  }
  func.func @transform_3(%arg0: i32) -> (i32, i32, i32) {
    %c0_i32 = arith.constant 0 : i32
    %c0_i32_0 = arith.constant 0 : i32
    %c0_i32_1 = arith.constant 0 : i32
    return %arg0, %c0_i32, %c0_i32_0 : i32, i32, i32
  }
}

module attributes {stable_mosaic.version = 11 : i64} {
  func.func @_conv2_relu_pool_kernel(%arg0: i32, %arg1: memref<1x10x10x32xbf16, #tpu.memory_space<vmem>>, %arg2: memref<288x64xbf16, #tpu.memory_space<vmem>>, %arg3: memref<1x64xf32, #tpu.memory_space<vmem>>, %arg4: memref<1x4x256xbf16, #tpu.memory_space<vmem>>) attributes {dimension_semantics = [#tpu.dimension_semantics<parallel>], iteration_bounds = array<i64: 2>, scalar_prefetch = 0 : i64, scratch_operands = 0 : i64, tpu.core_type = #tpu.core_type<tc>, window_params = [{transform_indices = @transform_0, window_bounds = array<i64: 1, 10, 10, 32>}, {pipeline_mode = #tpu.pipeline_mode<synchronous>, transform_indices = @transform_1, window_bounds = array<i64: 288, 64>}, {pipeline_mode = #tpu.pipeline_mode<synchronous>, transform_indices = @transform_2, window_bounds = array<i64: 1, 64>}, {transform_indices = @transform_3, window_bounds = array<i64: 1, 4, 256>}]} {
    %c0 = arith.constant 0 : index
    %c0_0 = arith.constant 0 : index
    %c0_1 = arith.constant 0 : index
    %c0_2 = arith.constant 0 : index
    %0 = vector.load %arg1[%c0, %c0_0, %c0_1, %c0_2] : memref<1x10x10x32xbf16, #tpu.memory_space<vmem>>, vector<1x10x10x32xbf16>
    %1 = vector.extract_strided_slice %0 {offsets = [0, 0, 0, 0], sizes = [1, 8, 8, 32], strides = [1, 1, 1, 1]} : vector<1x10x10x32xbf16> to vector<1x8x8x32xbf16>
    %2 = vector.extract_strided_slice %0 {offsets = [0, 0, 1, 0], sizes = [1, 8, 8, 32], strides = [1, 1, 1, 1]} : vector<1x10x10x32xbf16> to vector<1x8x8x32xbf16>
    %3 = vector.extract_strided_slice %0 {offsets = [0, 0, 2, 0], sizes = [1, 8, 8, 32], strides = [1, 1, 1, 1]} : vector<1x10x10x32xbf16> to vector<1x8x8x32xbf16>
    %4 = vector.extract_strided_slice %0 {offsets = [0, 1, 0, 0], sizes = [1, 8, 8, 32], strides = [1, 1, 1, 1]} : vector<1x10x10x32xbf16> to vector<1x8x8x32xbf16>
    %5 = vector.extract_strided_slice %0 {offsets = [0, 1, 1, 0], sizes = [1, 8, 8, 32], strides = [1, 1, 1, 1]} : vector<1x10x10x32xbf16> to vector<1x8x8x32xbf16>
    %6 = vector.extract_strided_slice %0 {offsets = [0, 1, 2, 0], sizes = [1, 8, 8, 32], strides = [1, 1, 1, 1]} : vector<1x10x10x32xbf16> to vector<1x8x8x32xbf16>
    %7 = vector.extract_strided_slice %0 {offsets = [0, 2, 0, 0], sizes = [1, 8, 8, 32], strides = [1, 1, 1, 1]} : vector<1x10x10x32xbf16> to vector<1x8x8x32xbf16>
    %8 = vector.extract_strided_slice %0 {offsets = [0, 2, 1, 0], sizes = [1, 8, 8, 32], strides = [1, 1, 1, 1]} : vector<1x10x10x32xbf16> to vector<1x8x8x32xbf16>
    %9 = vector.extract_strided_slice %0 {offsets = [0, 2, 2, 0], sizes = [1, 8, 8, 32], strides = [1, 1, 1, 1]} : vector<1x10x10x32xbf16> to vector<1x8x8x32xbf16>
    %10 = tpu.concatenate %1, %2, %3, %4, %5, %6, %7, %8, %9 in 3 : vector<1x8x8x32xbf16>, vector<1x8x8x32xbf16>, vector<1x8x8x32xbf16>, vector<1x8x8x32xbf16>, vector<1x8x8x32xbf16>, vector<1x8x8x32xbf16>, vector<1x8x8x32xbf16>, vector<1x8x8x32xbf16>, vector<1x8x8x32xbf16> -> vector<1x8x8x288xbf16>
    %11 = vector.shape_cast %10 : vector<1x8x8x288xbf16> to vector<64x288xbf16>
    %c0_3 = arith.constant 0 : index
    %c0_4 = arith.constant 0 : index
    %12 = vector.load %arg2[%c0_3, %c0_4] : memref<288x64xbf16, #tpu.memory_space<vmem>>, vector<288x64xbf16>
    %cst = arith.constant dense<0.000000e+00> : vector<64x64xf32>
    %13 = tpu.matmul %11, %12, %cst {dimension_numbers = #tpu.dot_dimension_numbers<[1], [0], [0], [1], [0, 0, 1, 1], [], []>} : vector<64x288xbf16>, vector<288x64xbf16>, vector<64x64xf32> -> vector<64x64xf32>
    %c0_5 = arith.constant 0 : index
    %c0_6 = arith.constant 0 : index
    %14 = vector.load %arg3[%c0_5, %c0_6] : memref<1x64xf32, #tpu.memory_space<vmem>>, vector<1x64xf32>
    %15 = vector.broadcast %14 : vector<1x64xf32> to vector<64x64xf32>
    %16 = arith.addf %13, %15 : vector<64x64xf32>
    %cst_7 = arith.constant 0.000000e+00 : f32
    %17 = vector.broadcast %cst_7 : f32 to vector<64x64xf32>
    %18 = arith.maximumf %16, %17 : vector<64x64xf32>
    %19 = vector.shape_cast %18 : vector<64x64xf32> to vector<1x8x8x64xf32>
    %20 = vector.shape_cast %19 : vector<1x8x8x64xf32> to vector<1x4x2x4x2x64xf32>
    %cst_8 = arith.constant dense<0xFF800000> : vector<1x4x2x4x64xf32>
    %21 = vector.multi_reduction <maximumf>, %20, %cst_8 [4] : vector<1x4x2x4x2x64xf32> to vector<1x4x2x4x64xf32>
    %cst_9 = arith.constant dense<0xFF800000> : vector<1x4x4x64xf32>
    %22 = vector.multi_reduction <maximumf>, %21, %cst_9 [2] : vector<1x4x2x4x64xf32> to vector<1x4x4x64xf32>
    %23 = vector.shape_cast %22 : vector<1x4x4x64xf32> to vector<1x4x256xf32>
    %24 = arith.truncf %23 : vector<1x4x256xf32> to vector<1x4x256xbf16>
    %c0_10 = arith.constant 0 : index
    %c0_11 = arith.constant 0 : index
    %c0_12 = arith.constant 0 : index
    %25 = vector.load %arg4[%c0_10, %c0_11, %c0_12] : memref<1x4x256xbf16, #tpu.memory_space<vmem>>, vector<1x4x256xbf16>
    tpu.vector_store %arg4[%c0_10, %c0_11, %c0_12], %24 {strides = array<i32>} : memref<1x4x256xbf16, #tpu.memory_space<vmem>>, vector<1x4x256xbf16>,
    return
  }
  func.func @transform_0(%arg0: i32) -> (i32, i32, i32, i32) {
    %c0_i32 = arith.constant 0 : i32
    %c0_i32_0 = arith.constant 0 : i32
    %c0_i32_1 = arith.constant 0 : i32
    %c0_i32_2 = arith.constant 0 : i32
    return %arg0, %c0_i32, %c0_i32_0, %c0_i32_1 : i32, i32, i32, i32
  }
  func.func @transform_1(%arg0: i32) -> (i32, i32) {
    %c0_i32 = arith.constant 0 : i32
    %c0_i32_0 = arith.constant 0 : i32
    %c0_i32_1 = arith.constant 0 : i32
    return %c0_i32, %c0_i32_0 : i32, i32
  }
  func.func @transform_2(%arg0: i32) -> (i32, i32) {
    %c0_i32 = arith.constant 0 : i32
    %c0_i32_0 = arith.constant 0 : i32
    %c0_i32_1 = arith.constant 0 : i32
    return %c0_i32, %c0_i32_0 : i32, i32
  }
  func.func @transform_3(%arg0: i32) -> (i32, i32, i32) {
    %c0_i32 = arith.constant 0 : i32
    %c0_i32_0 = arith.constant 0 : i32
    %c0_i32_1 = arith.constant 0 : i32
    return %arg0, %c0_i32, %c0_i32_0 : i32, i32, i32
  }
}

module attributes {stable_mosaic.version = 11 : i64} {
  func.func @_mlp_head_kernel(%arg0: i32, %arg1: i32, %arg2: memref<2x1024xbf16, #tpu.memory_space<vmem>>, %arg3: memref<1024x128xbf16, #tpu.memory_space<vmem>>, %arg4: memref<1x128xf32, #tpu.memory_space<vmem>>, %arg5: memref<1x128xf32, #tpu.memory_space<vmem>>, %arg6: memref<1xf32, #tpu.memory_space<smem>>, %arg7: memref<2x1xf32, #tpu.memory_space<vmem>>, %arg8: memref<2x128xf32, #tpu.memory_space<vmem>>) attributes {dimension_semantics = [#tpu.dimension_semantics<parallel>, #tpu.dimension_semantics<arbitrary>], iteration_bounds = array<i64: 1, 1>, scalar_prefetch = 0 : i64, scratch_operands = 1 : i64, tpu.core_type = #tpu.core_type<tc>, window_params = [{transform_indices = @transform_0, window_bounds = array<i64: 2, 1024>}, {transform_indices = @transform_1, window_bounds = array<i64: 1024, 128>}, {pipeline_mode = #tpu.pipeline_mode<synchronous>, transform_indices = @transform_2, window_bounds = array<i64: 1, 128>}, {pipeline_mode = #tpu.pipeline_mode<synchronous>, transform_indices = @transform_3, window_bounds = array<i64: 1, 128>}, {transform_indices = @transform_4, window_bounds = array<i64: 1>}, {transform_indices = @transform_5, window_bounds = array<i64: 2, 1>}]} {
    %c0_i32 = arith.constant 0 : i32
    %0 = arith.cmpi eq, %arg1, %c0_i32 : i32
    %1 = arith.extui %0 : i1 to i32
    %c0_i32_0 = arith.constant 0 : i32
    %2 = arith.cmpi ne, %1, %c0_i32_0 : i32
    scf.if %2 {
      %cst_10 = arith.constant 0.000000e+00 : f32
      %12 = vector.broadcast %cst_10 : f32 to vector<2x128xf32>
      %c0_11 = arith.constant 0 : index
      %c0_12 = arith.constant 0 : index
      %13 = vector.load %arg8[%c0_11, %c0_12] : memref<2x128xf32, #tpu.memory_space<vmem>>, vector<2x128xf32>
      tpu.vector_store %arg8[%c0_11, %c0_12], %12 {strides = array<i32>} : memref<2x128xf32, #tpu.memory_space<vmem>>, vector<2x128xf32>,
    } else {
    }
    %c0 = arith.constant 0 : index
    %c0_1 = arith.constant 0 : index
    %3 = vector.load %arg8[%c0, %c0_1] : memref<2x128xf32, #tpu.memory_space<vmem>>, vector<2x128xf32>
    %c0_2 = arith.constant 0 : index
    %c0_3 = arith.constant 0 : index
    %4 = vector.load %arg2[%c0_2, %c0_3] : memref<2x1024xbf16, #tpu.memory_space<vmem>>, vector<2x1024xbf16>
    %c0_4 = arith.constant 0 : index
    %c0_5 = arith.constant 0 : index
    %5 = vector.load %arg3[%c0_4, %c0_5] : memref<1024x128xbf16, #tpu.memory_space<vmem>>, vector<1024x128xbf16>
    %cst = arith.constant dense<0.000000e+00> : vector<2x128xf32>
    %6 = tpu.matmul %4, %5, %cst {dimension_numbers = #tpu.dot_dimension_numbers<[1], [0], [0], [1], [0, 0, 1, 1], [], []>} : vector<2x1024xbf16>, vector<1024x128xbf16>, vector<2x128xf32> -> vector<2x128xf32>
    %7 = arith.addf %3, %6 : vector<2x128xf32>
    %c0_6 = arith.constant 0 : index
    %c0_7 = arith.constant 0 : index
    %8 = vector.load %arg8[%c0_6, %c0_7] : memref<2x128xf32, #tpu.memory_space<vmem>>, vector<2x128xf32>
    tpu.vector_store %arg8[%c0_6, %c0_7], %7 {strides = array<i32>} : memref<2x128xf32, #tpu.memory_space<vmem>>, vector<2x128xf32>,
    %c0_i32_8 = arith.constant 0 : i32
    %9 = arith.cmpi eq, %arg1, %c0_i32_8 : i32
    %10 = arith.extui %9 : i1 to i32
    %c0_i32_9 = arith.constant 0 : i32
    %11 = arith.cmpi ne, %10, %c0_i32_9 : i32
    scf.if %11 {
      %c0_10 = arith.constant 0 : index
      %c0_11 = arith.constant 0 : index
      %12 = vector.load %arg8[%c0_10, %c0_11] : memref<2x128xf32, #tpu.memory_space<vmem>>, vector<2x128xf32>
      %c0_12 = arith.constant 0 : index
      %c0_13 = arith.constant 0 : index
      %13 = vector.load %arg4[%c0_12, %c0_13] : memref<1x128xf32, #tpu.memory_space<vmem>>, vector<1x128xf32>
      %14 = vector.broadcast %13 : vector<1x128xf32> to vector<2x128xf32>
      %15 = arith.addf %12, %14 : vector<2x128xf32>
      %cst_14 = arith.constant 0.000000e+00 : f32
      %16 = vector.broadcast %cst_14 : f32 to vector<2x128xf32>
      %17 = arith.maximumf %15, %16 : vector<2x128xf32>
      %c0_15 = arith.constant 0 : index
      %c0_16 = arith.constant 0 : index
      %18 = vector.load %arg5[%c0_15, %c0_16] : memref<1x128xf32, #tpu.memory_space<vmem>>, vector<1x128xf32>
      %19 = vector.broadcast %18 : vector<1x128xf32> to vector<2x128xf32>
      %20 = arith.mulf %17, %19 : vector<2x128xf32>
      %cst_17 = arith.constant dense<0.000000e+00> : vector<2xf32>
      %21 = vector.multi_reduction <add>, %20, %cst_17 [1] : vector<2x128xf32> to vector<2xf32>
      %22 = vector.shape_cast %21 : vector<2xf32> to vector<2x1xf32>
      %c0_18 = arith.constant 0 : index
      %23 = memref.load %arg6[%c0_18] : memref<1xf32, #tpu.memory_space<smem>>
      %24 = vector.broadcast %23 : f32 to vector<2x1xf32>
      %25 = arith.addf %22, %24 : vector<2x1xf32>
      %cst_19 = arith.constant 0.000000e+00 : f32
      %26 = vector.broadcast %cst_19 : f32 to vector<2x1xf32>
      %27 = arith.subf %26, %25 : vector<2x1xf32>
      %28 = math.exp %27 : vector<2x1xf32>
      %cst_20 = arith.constant 1.000000e+00 : f32
      %29 = vector.broadcast %cst_20 : f32 to vector<2x1xf32>
      %30 = arith.addf %29, %28 : vector<2x1xf32>
      %cst_21 = arith.constant 1.000000e+00 : f32
      %31 = vector.broadcast %cst_21 : f32 to vector<2x1xf32>
      %32 = arith.divf %31, %30 : vector<2x1xf32>
      %c0_22 = arith.constant 0 : index
      %c0_23 = arith.constant 0 : index
      %33 = vector.load %arg7[%c0_22, %c0_23] : memref<2x1xf32, #tpu.memory_space<vmem>>, vector<2x1xf32>
      tpu.vector_store %arg7[%c0_22, %c0_23], %32 {strides = array<i32>} : memref<2x1xf32, #tpu.memory_space<vmem>>, vector<2x1xf32>,
    } else {
    }
    return
  }
  func.func @transform_0(%arg0: i32, %arg1: i32) -> (i32, i32) {
    %c0_i32 = arith.constant 0 : i32
    return %arg0, %arg1 : i32, i32
  }
  func.func @transform_1(%arg0: i32, %arg1: i32) -> (i32, i32) {
    %c0_i32 = arith.constant 0 : i32
    %c0_i32_0 = arith.constant 0 : i32
    return %arg1, %c0_i32 : i32, i32
  }
  func.func @transform_2(%arg0: i32, %arg1: i32) -> (i32, i32) {
    %c0_i32 = arith.constant 0 : i32
    %c0_i32_0 = arith.constant 0 : i32
    %c0_i32_1 = arith.constant 0 : i32
    return %c0_i32, %c0_i32_0 : i32, i32
  }
  func.func @transform_3(%arg0: i32, %arg1: i32) -> (i32, i32) {
    %c0_i32 = arith.constant 0 : i32
    %c0_i32_0 = arith.constant 0 : i32
    %c0_i32_1 = arith.constant 0 : i32
    return %c0_i32, %c0_i32_0 : i32, i32
  }
  func.func @transform_4(%arg0: i32, %arg1: i32) -> i32 {
    %c0_i32 = arith.constant 0 : i32
    %c0_i32_0 = arith.constant 0 : i32
    return %c0_i32 : i32
  }
  func.func @transform_5(%arg0: i32, %arg1: i32) -> (i32, i32) {
    %c0_i32 = arith.constant 0 : i32
    %c0_i32_0 = arith.constant 0 : i32
    return %arg0, %c0_i32 : i32, i32
  }
}

</mosaic_0001>

<llo_original>
// kernel: cnn_forward.3
$region0: #{cnn_forward.3}
  #allocation0 [shape = 'u32[]', space=smem, size = 0x4, offset = 0x4, fixed_abs, tag = 'smem constant byte address 0x4 - core index']
  #allocation1 [shape = 'u32[72,128]{1,0:T(1,128)}', space=vmem, size = 0x9000, scoped, tag = 'internal scratch']
  %s0 = inlined_call_operand.vmem [shape: bf16[2,16,16,16], index: 0, kind: input, shape index: {}]
  %s1 = inlined_call_operand.vmem [shape: bf16[16,32], index: 1, kind: input, shape index: {}]
  %s2 = inlined_call_operand.vmem [shape: f32[1,32], index: 2, kind: input, shape index: {}]
  %s3 = inlined_call_operand.vmem [shape: bf16[2,8,256], index: 3, kind: output, shape index: {}]
  %s4 = sld [smem:[#allocation0]]
  $region45: #{cnn_forward.3} parent=0
    _
  %s6 = ssub.s32 1, %s4
  %s7 = scalar_select 0, %s6, %s4
  loop: start=0, step=1, limit=4
  $region2: #{cnn_forward.3} parent=0 // loop_pre_header
    _
  $region3: #{cnn_forward.3} parent=0 // loop_header
    %s9 = sphi 0, %s13
    %p10 = scmp.ge.s32.totalorder %s9, 4
    %s19 = sphi 0, %s21
    %s22 = sphi 0, %s19
    %s23 = sphi 0, %s22
    %s39 = sphi 0, %s23
    %s43 = sphi 0, %s43
    %s45 = sphi 0, %s43
    %s46 = sphi 0, %s45
    %s60 = sphi 0, %s46
    %s64 = sphi 0, %s64
    %s66 = sphi 0, %s64
    %s67 = sphi 0, %s66
    %s81 = sphi 0, %s67
    %s87 = sphi 0, %s89
    %s90 = sphi 0, %s87
    %s91 = sphi 0, %s90
    %s107 = sphi 0, %s91
  $region4: #{cnn_forward.3} parent=0 // loop_header_branch
    %12 = sbr.rel (%p10) target = $region8
  $region5: #{cnn_forward.3} parent=0 // loop_body
    %s14 = ssub.s32 %s9, 1
    %s15 = ssub.s32 %s9, 2
    %s16 = sadd.s32 %s9, 1
    %s17 = ssub.s32 %s9, %s16
    %p18 = scmp.eq.s32.totalorder %s17, 0
    %s20 = sadd.s32 %s19, 1
    %s21 = scalar_select %p18, %s19, %s20
    %p24 = pneg %p18
    %p25 = scmp.eq.s32.totalorder %s9, 1
    %p26 = por %p24, %p25
    %p27 = scmp.ne.s32.totalorder %s19, %s22
    %p28 = scmp.eq.s32.totalorder %s9, 0
    %p29 = por %p27, %p28
    %p30 = scmp.ne.s32.totalorder %s19, %s22
    %p31 = scmp.eq.s32.totalorder %s14, 1
    %p32 = por %p30, %p31
    %p33 = scmp.ne.s32.totalorder %s22, %s23
    %p34 = scmp.eq.s32.totalorder %s14, 0
    %p35 = por %p33, %p34
    %p36 = scmp.ne.s32.totalorder %s22, %s23
    %p37 = scmp.eq.s32.totalorder %s15, 1
    %p38 = por %p36, %p37
    %p40 = scmp.ne.s32.totalorder %s23, %s39
    %p41 = scmp.eq.s32.totalorder %s15, 0
    %p42 = por %p40, %p41
    %s44 = sadd.s32 %s43, 1
    %p47 = scmp.eq.s32.totalorder %s9, 1
    %p48 = scmp.ne.s32.totalorder %s43, %s45
    %p49 = scmp.eq.s32.totalorder %s9, 0
    %p50 = por %p48, %p49
    %p51 = scmp.ne.s32.totalorder %s43, %s45
    %p52 = scmp.eq.s32.totalorder %s14, 1
    %p53 = por %p51, %p52
    %p54 = scmp.ne.s32.totalorder %s45, %s46
    %p55 = scmp.eq.s32.totalorder %s14, 0
    %p56 = por %p54, %p55
    %p57 = scmp.ne.s32.totalorder %s45, %s46
    %p58 = scmp.eq.s32.totalorder %s15, 1
    %p59 = por %p57, %p58
    %p61 = scmp.ne.s32.totalorder %s46, %s60
    %p62 = scmp.eq.s32.totalorder %s15, 0
    %p63 = por %p61, %p62
    %s65 = sadd.s32 %s64, 1
    %p68 = scmp.eq.s32.totalorder %s9, 1
    %p69 = scmp.ne.s32.totalorder %s64, %s66
    %p70 = scmp.eq.s32.totalorder %s9, 0
    %p71 = por %p69, %p70
    %p72 = scmp.ne.s32.totalorder %s64, %s66
    %p73 = scmp.eq.s32.totalorder %s14, 1
    %p74 = por %p72, %p73
    %p75 = scmp.ne.s32.totalorder %s66, %s67
    %p76 = scmp.eq.s32.totalorder %s14, 0
    %p77 = por %p75, %p76
    %p78 = scmp.ne.s32.totalorder %s66, %s67
    %p79 = scmp.eq.s32.totalorder %s15, 1
    %p80 = por %p78, %p79
    %p82 = scmp.ne.s32.totalorder %s67, %s81
    %p83 = scmp.eq.s32.totalorder %s15, 0
    %p84 = por %p82, %p83
    %s85 = ssub.s32 %s9, %s16
    %p86 = scmp.eq.s32.totalorder %s85, 0
    %s88 = sadd.s32 %s87, 1
    %s89 = scalar_select %p86, %s87, %s88
    %p92 = pneg %p86
    %p93 = scmp.eq.s32.totalorder %s9, 1
    %p94 = por %p92, %p93
    %p95 = scmp.ne.s32.totalorder %s87, %s90
    %p96 = scmp.eq.s32.totalorder %s9, 0
    %p97 = por %p95, %p96
    %p98 = scmp.ne.s32.totalorder %s87, %s90
    %p99 = scmp.eq.s32.totalorder %s14, 1
    %p100 = por %p98, %p99
    %p101 = scmp.ne.s32.totalorder %s90, %s91
    %p102 = scmp.eq.s32.totalorder %s14, 0
    %p103 = por %p101, %p102
    %p104 = scmp.ne.s32.totalorder %s90, %s91
    %p105 = scmp.eq.s32.totalorder %s15, 1
    %p106 = por %p104, %p105
    %p108 = scmp.ne.s32.totalorder %s91, %s107
    %p109 = scmp.eq.s32.totalorder %s15, 0
    %p110 = por %p108, %p109
    %p111 = scmp.le.s32.totalorder 1, %s9
    %p112 = scmp.lt.s32.totalorder %s9, 3
    %p113 = pnand %p111, %p112
    %p114 = pneg %p113
    // Predicated region
    $region9: #{cnn_forward.3} parent=5 // pred_check
      _
    $region10: #{cnn_forward.3} parent=5 // pred_check_branch
      %116 = sbr.rel (%p113) target = $region12
    $region11: #{cnn_forward.3} parent=5 // pred_region
      %s117 = ssub.s32 %s9, 1
      // Predicated region
      $region13: #{cnn_forward.3} parent=11 // pred_check
        %p118 = pneg %p56
      $region14: #{cnn_forward.3} parent=11 // pred_check_branch
        %120 = sbr.rel (%p118) target = $region16
      $region15: #{cnn_forward.3} parent=11 // pred_region
        _
      $region16: #{cnn_forward.3} parent=11 // pred_fallthru
        _
      // Predicated region
      $region17: #{cnn_forward.3} parent=11 // pred_check
        %p121 = pneg %p77
      $region18: #{cnn_forward.3} parent=11 // pred_check_branch
        %123 = sbr.rel (%p121) target = $region20
      $region19: #{cnn_forward.3} parent=11 // pred_region
        _
      $region20: #{cnn_forward.3} parent=11 // pred_fallthru
        _
    $region12: #{cnn_forward.3} parent=5 // pred_fallthru
      _
    %p124 = scmp.lt.s32.totalorder %s9, 2
    // Predicated region
    $region21: #{cnn_forward.3} parent=5 // pred_check
      %p125 = pneg %p124
    $region22: #{cnn_forward.3} parent=5 // pred_check_branch
      %127 = sbr.rel (%p125) target = $region24
    $region23: #{cnn_forward.3} parent=5 // pred_region
      // Predicated region
      $region25: #{cnn_forward.3} parent=23 // pred_check
        %p128 = pneg %p29
      $region26: #{cnn_forward.3} parent=23 // pred_check_branch
        %130 = sbr.rel (%p128) target = $region28
      $region27: #{cnn_forward.3} parent=23 // pred_region
        %p131 = scmp.lt.s32.totalorder %s9, 1
        %s132 = scalar_select %p131, %s9, 1
        %s133 = smul.addr %s132, 32
        %s134 = smul.addr %s133, 4
        %s135 = scalar_lea.vmem %s0, %s134
      $region28: #{cnn_forward.3} parent=23 // pred_fallthru
        _
    $region24: #{cnn_forward.3} parent=5 // pred_fallthru
      _
    %p136 = scmp.le.s32.totalorder 1, %s9
    %p137 = scmp.lt.s32.totalorder %s9, 3
    %p138 = pnand %p136, %p137
    %p139 = pneg %p138
    // Predicated region
    $region29: #{cnn_forward.3} parent=5 // pred_check
      _
    $region30: #{cnn_forward.3} parent=5 // pred_check_branch
      %141 = sbr.rel (%p138) target = $region32
    $region31: #{cnn_forward.3} parent=5 // pred_region
      %s142 = ssub.s32 %s9, 1
      %p143 = scmp.lt.s32.totalorder %s14, 1
      %s144 = scalar_select %p143, %s14, 1
      %s145 = smul.addr %s144, 32
      %s146 = smul.addr %s145, 4
      %s147 = scalar_lea.vmem %s0, %s146
      %p148 = pneg %p35
      %p149 = pneg %p32
      %p150 = pneg %p56
      %p151 = pneg %p53
      %p152 = pneg %p77
      %p153 = pneg %p74
      %p154 = pneg %p103
      %p155 = pneg %p100
      %p156 = scmp.lt.s32.totalorder %s14, 1
      %s157 = scalar_select %p156, %s14, 1
      %s158 = smul.addr %s157, 2
      %s159 = smul.addr %s158, 4
      %s160 = scalar_lea.vmem %s3, %s159
      %p161 = scmp.lt.s32.totalorder %s14, 1
      %s162 = scalar_select %p161, %s14, 1
      %s163 = smul.addr %s162, 32
      %s164 = smul.addr %s163, 4
      %s165 = scalar_lea.vmem %s0, %s164
      %p166 = scmp.lt.s32.totalorder %s14, 1
      %s167 = scalar_select %p166, %s14, 1
      %s168 = smul.addr %s167, 2
      %s169 = smul.addr %s168, 4
      %s170 = scalar_lea.vmem %s3, %s169
      %v172 = vld [vmem:[%s165] sm:$0xf]
      %v173 = vld [vmem:[%s165 + $0x4] sm:$0xf]
      %v174 = vld [vmem:[%s165 + $0x8] sm:$0xf]
      %v175 = vld [vmem:[%s165 + $0xc] sm:$0xf]
      %v176 = vld [vmem:[%s165 + $0x10] sm:$0xf]
      %v177 = vld [vmem:[%s165 + $0x14] sm:$0xf]
      %v178 = vld [vmem:[%s165 + $0x18] sm:$0xf]
      %v179 = vld [vmem:[%s165 + $0x1c] sm:$0xf]
      %v180 = vld [vmem:[%s165 + $0x20] sm:$0xf]
      %v181 = vld [vmem:[%s165 + $0x24] sm:$0xf]
      %v182 = vld [vmem:[%s165 + $0x28] sm:$0xf]
      %v183 = vld [vmem:[%s165 + $0x2c] sm:$0xf]
      %v184 = vld [vmem:[%s165 + $0x30] sm:$0xf]
      %v185 = vld [vmem:[%s165 + $0x34] sm:$0xf]
      %v186 = vld [vmem:[%s165 + $0x38] sm:$0xf]
      %v187 = vld [vmem:[%s165 + $0x3c] sm:$0xf]
      %v188 = vld [vmem:[%s165 + $0x40] sm:$0xf]
      %v189 = vld [vmem:[%s165 + $0x44] sm:$0xf]
      %v190 = vld [vmem:[%s165 + $0x48] sm:$0xf]
      %v191 = vld [vmem:[%s165 + $0x4c] sm:$0xf]
      %v192 = vld [vmem:[%s165 + $0x50] sm:$0xf]
      %v193 = vld [vmem:[%s165 + $0x54] sm:$0xf]
      %v194 = vld [vmem:[%s165 + $0x58] sm:$0xf]
      %v195 = vld [vmem:[%s165 + $0x5c] sm:$0xf]
      %v196 = vld [vmem:[%s165 + $0x60] sm:$0xf]
      %v197 = vld [vmem:[%s165 + $0x64] sm:$0xf]
      %v198 = vld [vmem:[%s165 + $0x68] sm:$0xf]
      %v199 = vld [vmem:[%s165 + $0x6c] sm:$0xf]
      %v200 = vld [vmem:[%s165 + $0x70] sm:$0xf]
      %v201 = vld [vmem:[%s165 + $0x74] sm:$0xf]
      %v202 = vld [vmem:[%s165 + $0x78] sm:$0xf]
      %v203 = vld [vmem:[%s165 + $0x7c] sm:$0xf]
      %v204 = vld [vmem:[%s1] sm:$0xf]
      %v205 = vld [vmem:[%s1 + $0x4] sm:$0xf]
      %v206 = vld [vmem:[%s2] sm:$0x1]
      %v208 = vperm.slane %v206, 0
      %v242 = vunpack.c.l.b16 %v172
      %v243 = vunpack.c.l.b16 %v173
      %v244 = vunpack.c.l.b16 %v174
      %v245 = vunpack.c.l.b16 %v175
      %v246 = vunpack.c.l.b16 %v176
      %v247 = vunpack.c.l.b16 %v177
      %v248 = vunpack.c.l.b16 %v178
      %v249 = vunpack.c.l.b16 %v179
      %v250 = vunpack.c.l.b16 %v180
      %v251 = vunpack.c.l.b16 %v181
      %v252 = vunpack.c.l.b16 %v182
      %v253 = vunpack.c.l.b16 %v183
      %v254 = vunpack.c.l.b16 %v184
      %v255 = vunpack.c.l.b16 %v185
      %v256 = vunpack.c.l.b16 %v186
      %v257 = vunpack.c.l.b16 %v187
      %v258 = vunpack.c.l.b16 %v188
      %v259 = vunpack.c.l.b16 %v189
      %v260 = vunpack.c.l.b16 %v190
      %v261 = vunpack.c.l.b16 %v191
      %v262 = vunpack.c.l.b16 %v192
      %v263 = vunpack.c.l.b16 %v193
      %v264 = vunpack.c.l.b16 %v194
      %v265 = vunpack.c.l.b16 %v195
      %v266 = vunpack.c.l.b16 %v196
      %v267 = vunpack.c.l.b16 %v197
      %v268 = vunpack.c.l.b16 %v198
      %v269 = vunpack.c.l.b16 %v199
      %v270 = vunpack.c.l.b16 %v200
      %v271 = vunpack.c.l.b16 %v201
      %v272 = vunpack.c.l.b16 %v202
      %v273 = vunpack.c.l.b16 %v203
      %v274 = vpack.c.b16 %v243, %v242
      %v275 = vpack.c.b16 %v245, %v244
      %v276 = vpack.c.b16 %v247, %v246
      %v277 = vpack.c.b16 %v249, %v248
      %v278 = vpack.c.b16 %v251, %v250
      %v279 = vpack.c.b16 %v253, %v252
      %v280 = vpack.c.b16 %v255, %v254
      %v281 = vpack.c.b16 %v257, %v256
      %v282 = vpack.c.b16 %v259, %v258
      %v283 = vpack.c.b16 %v261, %v260
      %v284 = vpack.c.b16 %v263, %v262
      %v285 = vpack.c.b16 %v265, %v264
      %v286 = vpack.c.b16 %v267, %v266
      %v287 = vpack.c.b16 %v269, %v268
      %v288 = vpack.c.b16 %v271, %v270
      %v289 = vpack.c.b16 %v273, %v272
      %v292 = vunpack.c.l.b16 %v204
      %v293 = vunpack.c.l.b16 %v205
      %v294 = vpack.c.b16 %v293, %v292
      %vm296 = vcmask 130048
      %v298 = vsel %vm296, %v274, 0
      %v301 = vsel %vm296, %v275, 0
      %v304 = vsel %vm296, %v276, 0
      %v307 = vsel %vm296, %v277, 0
      %v310 = vsel %vm296, %v278, 0
      %v313 = vsel %vm296, %v279, 0
      %v316 = vsel %vm296, %v280, 0
      %v319 = vsel %vm296, %v281, 0
      %v322 = vsel %vm296, %v282, 0
      %v325 = vsel %vm296, %v283, 0
      %v328 = vsel %vm296, %v284, 0
      %v331 = vsel %vm296, %v285, 0
      %v334 = vsel %vm296, %v286, 0
      %v337 = vsel %vm296, %v287, 0
      %v340 = vsel %vm296, %v288, 0
      %v343 = vsel %vm296, %v289, 0
      %345 = vmatpush.bf16.msra.mxu0 0
      %346 = vmatpush.bf16.msra.mxu0 0
      %347 = vmatpush.bf16.msra.mxu0 0
      %348 = vmatpush.bf16.msra.mxu0 0
      %349 = vmatpush.bf16.msra.mxu0 0
      %350 = vmatpush.bf16.msra.mxu0 0
      %351 = vmatpush.bf16.msra.mxu0 0
      %352 = vmatpush.bf16.msra.mxu0 %v294
      %353 = vmatmul.bf16.gmra.mxu0 %v298
      %v354 = vpop.f32.mrf.mxu0
      %v355 = vadd.f32 %v208, %v354
      %v356 = vpop.f32.mrf.mxu0
      %v357 = vadd.f32 %v208, %v356
      %358 = vmatmul.bf16.gmra.mxu0 %v301
      %v359 = vpop.f32.mrf.mxu0
      %v360 = vadd.f32 %v208, %v359
      %v361 = vpop.f32.mrf.mxu0
      %v362 = vadd.f32 %v208, %v361
      %363 = vmatmul.bf16.gmra.mxu0 %v304
      %v364 = vpop.f32.mrf.mxu0
      %v365 = vadd.f32 %v208, %v364
      %v366 = vpop.f32.mrf.mxu0
      %v367 = vadd.f32 %v208, %v366
      %368 = vmatmul.bf16.gmra.mxu0 %v307
      %v369 = vpop.f32.mrf.mxu0
      %v370 = vadd.f32 %v208, %v369
      %v371 = vpop.f32.mrf.mxu0
      %v372 = vadd.f32 %v208, %v371
      %373 = vmatmul.bf16.gmra.mxu0 %v310
      %v374 = vpop.f32.mrf.mxu0
      %v375 = vadd.f32 %v208, %v374
      %v376 = vpop.f32.mrf.mxu0
      %v377 = vadd.f32 %v208, %v376
      %378 = vmatmul.bf16.gmra.mxu0 %v313
      %v379 = vpop.f32.mrf.mxu0
      %v380 = vadd.f32 %v208, %v379
      %v381 = vpop.f32.mrf.mxu0
      %v382 = vadd.f32 %v208, %v381
      %383 = vmatmul.bf16.gmra.mxu0 %v316
      %v384 = vpop.f32.mrf.mxu0
      %v385 = vadd.f32 %v208, %v384
      %v386 = vpop.f32.mrf.mxu0
      %v387 = vadd.f32 %v208, %v386
      %388 = vmatmul.bf16.gmra.mxu0 %v319
      %v389 = vpop.f32.mrf.mxu0
      %v390 = vadd.f32 %v208, %v389
      %v391 = vpop.f32.mrf.mxu0
      %v392 = vadd.f32 %v208, %v391
      %393 = vmatmul.bf16.gmra.mxu0 %v322
      %v394 = vpop.f32.mrf.mxu0
      %v395 = vadd.f32 %v208, %v394
      %v396 = vpop.f32.mrf.mxu0
      %v397 = vadd.f32 %v208, %v396
      %398 = vmatmul.bf16.gmra.mxu0 %v325
      %v399 = vpop.f32.mrf.mxu0
      %v400 = vadd.f32 %v208, %v399
      %v401 = vpop.f32.mrf.mxu0
      %v402 = vadd.f32 %v208, %v401
      %403 = vmatmul.bf16.gmra.mxu0 %v328
      %v404 = vpop.f32.mrf.mxu0
      %v405 = vadd.f32 %v208, %v404
      %v406 = vpop.f32.mrf.mxu0
      %v407 = vadd.f32 %v208, %v406
      %408 = vmatmul.bf16.gmra.mxu0 %v331
      %v409 = vpop.f32.mrf.mxu0
      %v410 = vadd.f32 %v208, %v409
      %v411 = vpop.f32.mrf.mxu0
      %v412 = vadd.f32 %v208, %v411
      %413 = vmatmul.bf16.gmra.mxu0 %v334
      %v414 = vpop.f32.mrf.mxu0
      %v415 = vadd.f32 %v208, %v414
      %v416 = vpop.f32.mrf.mxu0
      %v417 = vadd.f32 %v208, %v416
      %418 = vmatmul.bf16.gmra.mxu0 %v337
      %v419 = vpop.f32.mrf.mxu0
      %v420 = vadd.f32 %v208, %v419
      %v421 = vpop.f32.mrf.mxu0
      %v422 = vadd.f32 %v208, %v421
      %423 = vmatmul.bf16.gmra.mxu0 %v340
      %v424 = vpop.f32.mrf.mxu0
      %v425 = vadd.f32 %v208, %v424
      %v426 = vpop.f32.mrf.mxu0
      %v427 = vadd.f32 %v208, %v426
      %428 = vmatmul.bf16.gmra.mxu0 %v343
      %v429 = vpop.f32.mrf.mxu0
      %v430 = vadd.f32 %v208, %v429
      %v431 = vpop.f32.mrf.mxu0
      %v432 = vadd.f32 %v208, %v431
      %433 = vdwg.mxu0
      %v434 = vmax.f32 %v355, 0.0
      %v435 = vmax.f32 %v357, 0.0
      %v436 = vmax.f32 %v360, 0.0
      %v437 = vmax.f32 %v362, 0.0
      %v438 = vmax.f32 %v365, 0.0
      %v439 = vmax.f32 %v367, 0.0
      %v440 = vmax.f32 %v370, 0.0
      %v441 = vmax.f32 %v372, 0.0
      %v442 = vmax.f32 %v375, 0.0
      %v443 = vmax.f32 %v377, 0.0
      %v444 = vmax.f32 %v380, 0.0
      %v445 = vmax.f32 %v382, 0.0
      %v446 = vmax.f32 %v385, 0.0
      %v447 = vmax.f32 %v387, 0.0
      %v448 = vmax.f32 %v390, 0.0
      %v449 = vmax.f32 %v392, 0.0
      %v450 = vmax.f32 %v395, 0.0
      %v451 = vmax.f32 %v397, 0.0
      %v452 = vmax.f32 %v400, 0.0
      %v453 = vmax.f32 %v402, 0.0
      %v454 = vmax.f32 %v405, 0.0
      %v455 = vmax.f32 %v407, 0.0
      %v456 = vmax.f32 %v410, 0.0
      %v457 = vmax.f32 %v412, 0.0
      %v458 = vmax.f32 %v415, 0.0
      %v459 = vmax.f32 %v417, 0.0
      %v460 = vmax.f32 %v420, 0.0
      %v461 = vmax.f32 %v422, 0.0
      %v462 = vmax.f32 %v425, 0.0
      %v463 = vmax.f32 %v427, 0.0
      %v464 = vmax.f32 %v430, 0.0
      %v465 = vmax.f32 %v432, 0.0
      %v498 = vrot.slane %v434, 2
      %v499 = vrot.slane %v434, 4
      %v500 = vrot.slane %v434, 6
      %v501 = vrot.slane %v435, 2
      %v502 = vrot.slane %v435, 4
      %v503 = vrot.slane %v435, 6
      %v504 = vrot.slane %v436, 2
      %v505 = vrot.slane %v436, 4
      %v506 = vrot.slane %v436, 6
      %v507 = vrot.slane %v437, 2
      %v508 = vrot.slane %v437, 4
      %v509 = vrot.slane %v437, 6
      %v510 = vrot.slane %v438, 2
      %v511 = vrot.slane %v438, 4
      %v512 = vrot.slane %v438, 6
      %v513 = vrot.slane %v439, 2
      %v514 = vrot.slane %v439, 4
      %v515 = vrot.slane %v439, 6
      %v516 = vrot.slane %v440, 2
      %v517 = vrot.slane %v440, 4
      %v518 = vrot.slane %v440, 6
      %v519 = vrot.slane %v441, 2
      %v520 = vrot.slane %v441, 4
      %v521 = vrot.slane %v441, 6
      %v522 = vrot.slane %v442, 2
      %v523 = vrot.slane %v442, 4
      %v524 = vrot.slane %v442, 6
      %v525 = vrot.slane %v443, 2
      %v526 = vrot.slane %v443, 4
      %v527 = vrot.slane %v443, 6
      %v528 = vrot.slane %v444, 2
      %v529 = vrot.slane %v444, 4
      %v530 = vrot.slane %v444, 6
      %v531 = vrot.slane %v445, 2
      %v532 = vrot.slane %v445, 4
      %v533 = vrot.slane %v445, 6
      %v534 = vrot.slane %v446, 2
      %v535 = vrot.slane %v446, 4
      %v536 = vrot.slane %v446, 6
      %v537 = vrot.slane %v447, 2
      %v538 = vrot.slane %v447, 4
      %v539 = vrot.slane %v447, 6
      %v540 = vrot.slane %v448, 2
      %v541 = vrot.slane %v448, 4
      %v542 = vrot.slane %v448, 6
      %v543 = vrot.slane %v449, 2
      %v544 = vrot.slane %v449, 4
      %v545 = vrot.slane %v449, 6
      %v546 = vrot.slane %v450, 2
      %v547 = vrot.slane %v450, 4
      %v548 = vrot.slane %v450, 6
      %v549 = vrot.slane %v451, 2
      %v550 = vrot.slane %v451, 4
      %v551 = vrot.slane %v451, 6
      %v552 = vrot.slane %v452, 2
      %v553 = vrot.slane %v452, 4
      %v554 = vrot.slane %v452, 6
      %v555 = vrot.slane %v453, 2
      %v556 = vrot.slane %v453, 4
      %v557 = vrot.slane %v453, 6
      %v558 = vrot.slane %v454, 2
      %v559 = vrot.slane %v454, 4
      %v560 = vrot.slane %v454, 6
      %v561 = vrot.slane %v455, 2
      %v562 = vrot.slane %v455, 4
      %v563 = vrot.slane %v455, 6
      %v564 = vrot.slane %v456, 2
      %v565 = vrot.slane %v456, 4
      %v566 = vrot.slane %v456, 6
      %v567 = vrot.slane %v457, 2
      %v568 = vrot.slane %v457, 4
      %v569 = vrot.slane %v457, 6
      %v570 = vrot.slane %v458, 2
      %v571 = vrot.slane %v458, 4
      %v572 = vrot.slane %v458, 6
      %v573 = vrot.slane %v459, 2
      %v574 = vrot.slane %v459, 4
      %v575 = vrot.slane %v459, 6
      %v576 = vrot.slane %v460, 2
      %v577 = vrot.slane %v460, 4
      %v578 = vrot.slane %v460, 6
      %v579 = vrot.slane %v461, 2
      %v580 = vrot.slane %v461, 4
      %v581 = vrot.slane %v461, 6
      %v582 = vrot.slane %v462, 2
      %v583 = vrot.slane %v462, 4
      %v584 = vrot.slane %v462, 6
      %v585 = vrot.slane %v463, 2
      %v586 = vrot.slane %v463, 4
      %v587 = vrot.slane %v463, 6
      %v588 = vrot.slane %v464, 2
      %v589 = vrot.slane %v464, 4
      %v590 = vrot.slane %v464, 6
      %v591 = vrot.slane %v465, 2
      %v592 = vrot.slane %v465, 4
      %v593 = vrot.slane %v465, 6
      %vm690 = vcmask 254976
      %v691 = vsel %vm690, %v434, -inf
      %v692 = vrot.slane %v691, 4
      %v693 = vmax.f32 %v691, %v692
      %v694 = vrot.slane %v693, 2
      %v695 = vmax.f32 %v693, %v694
      %v696 = vrot.slane %v695, 1
      %v697 = vmax.f32 %v695, %v696
      %v698 = vsel %vm690, %v498, -inf
      %v699 = vrot.slane %v698, 4
      %v700 = vmax.f32 %v698, %v699
      %v701 = vrot.slane %v700, 2
      %v702 = vmax.f32 %v700, %v701
      %v703 = vrot.slane %v702, 1
      %v704 = vmax.f32 %v702, %v703
      %v705 = vsel %vm690, %v499, -inf
      %v706 = vrot.slane %v705, 4
      %v707 = vmax.f32 %v705, %v706
      %v708 = vrot.slane %v707, 2
      %v709 = vmax.f32 %v707, %v708
      %v710 = vrot.slane %v709, 1
      %v711 = vmax.f32 %v709, %v710
      %v712 = vsel %vm690, %v500, -inf
      %v713 = vrot.slane %v712, 4
      %v714 = vmax.f32 %v712, %v713
      %v715 = vrot.slane %v714, 2
      %v716 = vmax.f32 %v714, %v715
      %v717 = vrot.slane %v716, 1
      %v718 = vmax.f32 %v716, %v717
      %v719 = vsel %vm690, %v435, -inf
      %v720 = vrot.slane %v719, 4
      %v721 = vmax.f32 %v719, %v720
      %v722 = vrot.slane %v721, 2
      %v723 = vmax.f32 %v721, %v722
      %v724 = vrot.slane %v723, 1
      %v725 = vmax.f32 %v723, %v724
      %v726 = vsel %vm690, %v501, -inf
      %v727 = vrot.slane %v726, 4
      %v728 = vmax.f32 %v726, %v727
      %v729 = vrot.slane %v728, 2
      %v730 = vmax.f32 %v728, %v729
      %v731 = vrot.slane %v730, 1
      %v732 = vmax.f32 %v730, %v731
      %v733 = vsel %vm690, %v502, -inf
      %v734 = vrot.slane %v733, 4
      %v735 = vmax.f32 %v733, %v734
      %v736 = vrot.slane %v735, 2
      %v737 = vmax.f32 %v735, %v736
      %v738 = vrot.slane %v737, 1
      %v739 = vmax.f32 %v737, %v738
      %v740 = vsel %vm690, %v503, -inf
      %v741 = vrot.slane %v740, 4
      %v742 = vmax.f32 %v740, %v741
      %v743 = vrot.slane %v742, 2
      %v744 = vmax.f32 %v742, %v743
      %v745 = vrot.slane %v744, 1
      %v746 = vmax.f32 %v744, %v745
      %v747 = vsel %vm690, %v436, -inf
      %v748 = vrot.slane %v747, 4
      %v749 = vmax.f32 %v747, %v748
      %v750 = vrot.slane %v749, 2
      %v751 = vmax.f32 %v749, %v750
      %v752 = vrot.slane %v751, 1
      %v753 = vmax.f32 %v751, %v752
      %v754 = vsel %vm690, %v504, -inf
      %v755 = vrot.slane %v754, 4
      %v756 = vmax.f32 %v754, %v755
      %v757 = vrot.slane %v756, 2
      %v758 = vmax.f32 %v756, %v757
      %v759 = vrot.slane %v758, 1
      %v760 = vmax.f32 %v758, %v759
      %v761 = vsel %vm690, %v505, -inf
      %v762 = vrot.slane %v761, 4
      %v763 = vmax.f32 %v761, %v762
      %v764 = vrot.slane %v763, 2
      %v765 = vmax.f32 %v763, %v764
      %v766 = vrot.slane %v765, 1
      %v767 = vmax.f32 %v765, %v766
      %v768 = vsel %vm690, %v506, -inf
      %v769 = vrot.slane %v768, 4
      %v770 = vmax.f32 %v768, %v769
      %v771 = vrot.slane %v770, 2
      %v772 = vmax.f32 %v770, %v771
      %v773 = vrot.slane %v772, 1
      %v774 = vmax.f32 %v772, %v773
      %v775 = vsel %vm690, %v437, -inf
      %v776 = vrot.slane %v775, 4
      %v777 = vmax.f32 %v775, %v776
      %v778 = vrot.slane %v777, 2
      %v779 = vmax.f32 %v777, %v778
      %v780 = vrot.slane %v779, 1
      %v781 = vmax.f32 %v779, %v780
      %v782 = vsel %vm690, %v507, -inf
      %v783 = vrot.slane %v782, 4
      %v784 = vmax.f32 %v782, %v783
      %v785 = vrot.slane %v784, 2
      %v786 = vmax.f32 %v784, %v785
      %v787 = vrot.slane %v786, 1
      %v788 = vmax.f32 %v786, %v787
      %v789 = vsel %vm690, %v508, -inf
      %v790 = vrot.slane %v789, 4
      %v791 = vmax.f32 %v789, %v790
      %v792 = vrot.slane %v791, 2
      %v793 = vmax.f32 %v791, %v792
      %v794 = vrot.slane %v793, 1
      %v795 = vmax.f32 %v793, %v794
      %v796 = vsel %vm690, %v509, -inf
      %v797 = vrot.slane %v796, 4
      %v798 = vmax.f32 %v796, %v797
      %v799 = vrot.slane %v798, 2
      %v800 = vmax.f32 %v798, %v799
      %v801 = vrot.slane %v800, 1
      %v802 = vmax.f32 %v800, %v801
      %v803 = vsel %vm690, %v438, -inf
      %v804 = vrot.slane %v803, 4
      %v805 = vmax.f32 %v803, %v804
      %v806 = vrot.slane %v805, 2
      %v807 = vmax.f32 %v805, %v806
      %v808 = vrot.slane %v807, 1
      %v809 = vmax.f32 %v807, %v808
      %v810 = vsel %vm690, %v510, -inf
      %v811 = vrot.slane %v810, 4
      %v812 = vmax.f32 %v810, %v811
      %v813 = vrot.slane %v812, 2
      %v814 = vmax.f32 %v812, %v813
      %v815 = vrot.slane %v814, 1
      %v816 = vmax.f32 %v814, %v815
      %v817 = vsel %vm690, %v511, -inf
      %v818 = vrot.slane %v817, 4
      %v819 = vmax.f32 %v817, %v818
      %v820 = vrot.slane %v819, 2
      %v821 = vmax.f32 %v819, %v820
      %v822 = vrot.slane %v821, 1
      %v823 = vmax.f32 %v821, %v822
      %v824 = vsel %vm690, %v512, -inf
      %v825 = vrot.slane %v824, 4
      %v826 = vmax.f32 %v824, %v825
      %v827 = vrot.slane %v826, 2
      %v828 = vmax.f32 %v826, %v827
      %v829 = vrot.slane %v828, 1
      %v830 = vmax.f32 %v828, %v829
      %v831 = vsel %vm690, %v439, -inf
      %v832 = vrot.slane %v831, 4
      %v833 = vmax.f32 %v831, %v832
      %v834 = vrot.slane %v833, 2
      %v835 = vmax.f32 %v833, %v834
      %v836 = vrot.slane %v835, 1
      %v837 = vmax.f32 %v835, %v836
      %v838 = vsel %vm690, %v513, -inf
      %v839 = vrot.slane %v838, 4
      %v840 = vmax.f32 %v838, %v839
      %v841 = vrot.slane %v840, 2
      %v842 = vmax.f32 %v840, %v841
      %v843 = vrot.slane %v842, 1
      %v844 = vmax.f32 %v842, %v843
      %v845 = vsel %vm690, %v514, -inf
      %v846 = vrot.slane %v845, 4
      %v847 = vmax.f32 %v845, %v846
      %v848 = vrot.slane %v847, 2
      %v849 = vmax.f32 %v847, %v848
      %v850 = vrot.slane %v849, 1
      %v851 = vmax.f32 %v849, %v850
      %v852 = vsel %vm690, %v515, -inf
      %v853 = vrot.slane %v852, 4
      %v854 = vmax.f32 %v852, %v853
      %v855 = vrot.slane %v854, 2
      %v856 = vmax.f32 %v854, %v855
      %v857 = vrot.slane %v856, 1
      %v858 = vmax.f32 %v856, %v857
      %v859 = vsel %vm690, %v440, -inf
      %v860 = vrot.slane %v859, 4
      %v861 = vmax.f32 %v859, %v860
      %v862 = vrot.slane %v861, 2
      %v863 = vmax.f32 %v861, %v862
      %v864 = vrot.slane %v863, 1
      %v865 = vmax.f32 %v863, %v864
      %v866 = vsel %vm690, %v516, -inf
      %v867 = vrot.slane %v866, 4
      %v868 = vmax.f32 %v866, %v867
      %v869 = vrot.slane %v868, 2
      %v870 = vmax.f32 %v868, %v869
      %v871 = vrot.slane %v870, 1
      %v872 = vmax.f32 %v870, %v871
      %v873 = vsel %vm690, %v517, -inf
      %v874 = vrot.slane %v873, 4
      %v875 = vmax.f32 %v873, %v874
      %v876 = vrot.slane %v875, 2
      %v877 = vmax.f32 %v875, %v876
      %v878 = vrot.slane %v877, 1
      %v879 = vmax.f32 %v877, %v878
      %v880 = vsel %vm690, %v518, -inf
      %v881 = vrot.slane %v880, 4
      %v882 = vmax.f32 %v880, %v881
      %v883 = vrot.slane %v882, 2
      %v884 = vmax.f32 %v882, %v883
      %v885 = vrot.slane %v884, 1
      %v886 = vmax.f32 %v884, %v885
      %v887 = vsel %vm690, %v441, -inf
      %v888 = vrot.slane %v887, 4
      %v889 = vmax.f32 %v887, %v888
      %v890 = vrot.slane %v889, 2
      %v891 = vmax.f32 %v889, %v890
      %v892 = vrot.slane %v891, 1
      %v893 = vmax.f32 %v891, %v892
      %v894 = vsel %vm690, %v519, -inf
      %v895 = vrot.slane %v894, 4
      %v896 = vmax.f32 %v894, %v895
      %v897 = vrot.slane %v896, 2
      %v898 = vmax.f32 %v896, %v897
      %v899 = vrot.slane %v898, 1
      %v900 = vmax.f32 %v898, %v899
      %v901 = vsel %vm690, %v520, -inf
      %v902 = vrot.slane %v901, 4
      %v903 = vmax.f32 %v901, %v902
      %v904 = vrot.slane %v903, 2
      %v905 = vmax.f32 %v903, %v904
      %v906 = vrot.slane %v905, 1
      %v907 = vmax.f32 %v905, %v906
      %v908 = vsel %vm690, %v521, -inf
      %v909 = vrot.slane %v908, 4
      %v910 = vmax.f32 %v908, %v909
      %v911 = vrot.slane %v910, 2
      %v912 = vmax.f32 %v910, %v911
      %v913 = vrot.slane %v912, 1
      %v914 = vmax.f32 %v912, %v913
      %v915 = vsel %vm690, %v442, -inf
      %v916 = vrot.slane %v915, 4
      %v917 = vmax.f32 %v915, %v916
      %v918 = vrot.slane %v917, 2
      %v919 = vmax.f32 %v917, %v918
      %v920 = vrot.slane %v919, 1
      %v921 = vmax.f32 %v919, %v920
      %v922 = vsel %vm690, %v522, -inf
      %v923 = vrot.slane %v922, 4
      %v924 = vmax.f32 %v922, %v923
      %v925 = vrot.slane %v924, 2
      %v926 = vmax.f32 %v924, %v925
      %v927 = vrot.slane %v926, 1
      %v928 = vmax.f32 %v926, %v927
      %v929 = vsel %vm690, %v523, -inf
      %v930 = vrot.slane %v929, 4
      %v931 = vmax.f32 %v929, %v930
      %v932 = vrot.slane %v931, 2
      %v933 = vmax.f32 %v931, %v932
      %v934 = vrot.slane %v933, 1
      %v935 = vmax.f32 %v933, %v934
      %v936 = vsel %vm690, %v524, -inf
      %v937 = vrot.slane %v936, 4
      %v938 = vmax.f32 %v936, %v937
      %v939 = vrot.slane %v938, 2
      %v940 = vmax.f32 %v938, %v939
      %v941 = vrot.slane %v940, 1
      %v942 = vmax.f32 %v940, %v941
      %v943 = vsel %vm690, %v443, -inf
      %v944 = vrot.slane %v943, 4
      %v945 = vmax.f32 %v943, %v944
      %v946 = vrot.slane %v945, 2
      %v947 = vmax.f32 %v945, %v946
      %v948 = vrot.slane %v947, 1
      %v949 = vmax.f32 %v947, %v948
      %v950 = vsel %vm690, %v525, -inf
      %v951 = vrot.slane %v950, 4
      %v952 = vmax.f32 %v950, %v951
      %v953 = vrot.slane %v952, 2
      %v954 = vmax.f32 %v952, %v953
      %v955 = vrot.slane %v954, 1
      %v956 = vmax.f32 %v954, %v955
      %v957 = vsel %vm690, %v526, -inf
      %v958 = vrot.slane %v957, 4
      %v959 = vmax.f32 %v957, %v958
      %v960 = vrot.slane %v959, 2
      %v961 = vmax.f32 %v959, %v960
      %v962 = vrot.slane %v961, 1
      %v963 = vmax.f32 %v961, %v962
      %v964 = vsel %vm690, %v527, -inf
      %v965 = vrot.slane %v964, 4
      %v966 = vmax.f32 %v964, %v965
      %v967 = vrot.slane %v966, 2
      %v968 = vmax.f32 %v966, %v967
      %v969 = vrot.slane %v968, 1
      %v970 = vmax.f32 %v968, %v969
      %v971 = vsel %vm690, %v444, -inf
      %v972 = vrot.slane %v971, 4
      %v973 = vmax.f32 %v971, %v972
      %v974 = vrot.slane %v973, 2
      %v975 = vmax.f32 %v973, %v974
      %v976 = vrot.slane %v975, 1
      %v977 = vmax.f32 %v975, %v976
      %v978 = vsel %vm690, %v528, -inf
      %v979 = vrot.slane %v978, 4
      %v980 = vmax.f32 %v978, %v979
      %v981 = vrot.slane %v980, 2
      %v982 = vmax.f32 %v980, %v981
      %v983 = vrot.slane %v982, 1
      %v984 = vmax.f32 %v982, %v983
      %v985 = vsel %vm690, %v529, -inf
      %v986 = vrot.slane %v985, 4
      %v987 = vmax.f32 %v985, %v986
      %v988 = vrot.slane %v987, 2
      %v989 = vmax.f32 %v987, %v988
      %v990 = vrot.slane %v989, 1
      %v991 = vmax.f32 %v989, %v990
      %v992 = vsel %vm690, %v530, -inf
      %v993 = vrot.slane %v992, 4
      %v994 = vmax.f32 %v992, %v993
      %v995 = vrot.slane %v994, 2
      %v996 = vmax.f32 %v994, %v995
      %v997 = vrot.slane %v996, 1
      %v998 = vmax.f32 %v996, %v997
      %v999 = vsel %vm690, %v445, -inf
      %v1000 = vrot.slane %v999, 4
      %v1001 = vmax.f32 %v999, %v1000
      %v1002 = vrot.slane %v1001, 2
      %v1003 = vmax.f32 %v1001, %v1002
      %v1004 = vrot.slane %v1003, 1
      %v1005 = vmax.f32 %v1003, %v1004
      %v1006 = vsel %vm690, %v531, -inf
      %v1007 = vrot.slane %v1006, 4
      %v1008 = vmax.f32 %v1006, %v1007
      %v1009 = vrot.slane %v1008, 2
      %v1010 = vmax.f32 %v1008, %v1009
      %v1011 = vrot.slane %v1010, 1
      %v1012 = vmax.f32 %v1010, %v1011
      %v1013 = vsel %vm690, %v532, -inf
      %v1014 = vrot.slane %v1013, 4
      %v1015 = vmax.f32 %v1013, %v1014
      %v1016 = vrot.slane %v1015, 2
      %v1017 = vmax.f32 %v1015, %v1016
      %v1018 = vrot.slane %v1017, 1
      %v1019 = vmax.f32 %v1017, %v1018
      %v1020 = vsel %vm690, %v533, -inf
      %v1021 = vrot.slane %v1020, 4
      %v1022 = vmax.f32 %v1020, %v1021
      %v1023 = vrot.slane %v1022, 2
      %v1024 = vmax.f32 %v1022, %v1023
      %v1025 = vrot.slane %v1024, 1
      %v1026 = vmax.f32 %v1024, %v1025
      %v1027 = vsel %vm690, %v446, -inf
      %v1028 = vrot.slane %v1027, 4
      %v1029 = vmax.f32 %v1027, %v1028
      %v1030 = vrot.slane %v1029, 2
      %v1031 = vmax.f32 %v1029, %v1030
      %v1032 = vrot.slane %v1031, 1
      %v1033 = vmax.f32 %v1031, %v1032
      %v1034 = vsel %vm690, %v534, -inf
      %v1035 = vrot.slane %v1034, 4
      %v1036 = vmax.f32 %v1034, %v1035
      %v1037 = vrot.slane %v1036, 2
      %v1038 = vmax.f32 %v1036, %v1037
      %v1039 = vrot.slane %v1038, 1
      %v1040 = vmax.f32 %v1038, %v1039
      %v1041 = vsel %vm690, %v535, -inf
      %v1042 = vrot.slane %v1041, 4
      %v1043 = vmax.f32 %v1041, %v1042
      %v1044 = vrot.slane %v1043, 2
      %v1045 = vmax.f32 %v1043, %v1044
      %v1046 = vrot.slane %v1045, 1
      %v1047 = vmax.f32 %v1045, %v1046
      %v1048 = vsel %vm690, %v536, -inf
      %v1049 = vrot.slane %v1048, 4
      %v1050 = vmax.f32 %v1048, %v1049
      %v1051 = vrot.slane %v1050, 2
      %v1052 = vmax.f32 %v1050, %v1051
      %v1053 = vrot.slane %v1052, 1
      %v1054 = vmax.f32 %v1052, %v1053
      %v1055 = vsel %vm690, %v447, -inf
      %v1056 = vrot.slane %v1055, 4
      %v1057 = vmax.f32 %v1055, %v1056
      %v1058 = vrot.slane %v1057, 2
      %v1059 = vmax.f32 %v1057, %v1058
      %v1060 = vrot.slane %v1059, 1
      %v1061 = vmax.f32 %v1059, %v1060
      %v1062 = vsel %vm690, %v537, -inf
      %v1063 = vrot.slane %v1062, 4
      %v1064 = vmax.f32 %v1062, %v1063
      %v1065 = vrot.slane %v1064, 2
      %v1066 = vmax.f32 %v1064, %v1065
      %v1067 = vrot.slane %v1066, 1
      %v1068 = vmax.f32 %v1066, %v1067
      %v1069 = vsel %vm690, %v538, -inf
      %v1070 = vrot.slane %v1069, 4
      %v1071 = vmax.f32 %v1069, %v1070
      %v1072 = vrot.slane %v1071, 2
      %v1073 = vmax.f32 %v1071, %v1072
      %v1074 = vrot.slane %v1073, 1
      %v1075 = vmax.f32 %v1073, %v1074
      %v1076 = vsel %vm690, %v539, -inf
      %v1077 = vrot.slane %v1076, 4
      %v1078 = vmax.f32 %v1076, %v1077
      %v1079 = vrot.slane %v1078, 2
      %v1080 = vmax.f32 %v1078, %v1079
      %v1081 = vrot.slane %v1080, 1
      %v1082 = vmax.f32 %v1080, %v1081
      %v1083 = vsel %vm690, %v448, -inf
      %v1084 = vrot.slane %v1083, 4
      %v1085 = vmax.f32 %v1083, %v1084
      %v1086 = vrot.slane %v1085, 2
      %v1087 = vmax.f32 %v1085, %v1086
      %v1088 = vrot.slane %v1087, 1
      %v1089 = vmax.f32 %v1087, %v1088
      %v1090 = vsel %vm690, %v540, -inf
      %v1091 = vrot.slane %v1090, 4
      %v1092 = vmax.f32 %v1090, %v1091
      %v1093 = vrot.slane %v1092, 2
      %v1094 = vmax.f32 %v1092, %v1093
      %v1095 = vrot.slane %v1094, 1
      %v1096 = vmax.f32 %v1094, %v1095
      %v1097 = vsel %vm690, %v541, -inf
      %v1098 = vrot.slane %v1097, 4
      %v1099 = vmax.f32 %v1097, %v1098
      %v1100 = vrot.slane %v1099, 2
      %v1101 = vmax.f32 %v1099, %v1100
      %v1102 = vrot.slane %v1101, 1
      %v1103 = vmax.f32 %v1101, %v1102
      %v1104 = vsel %vm690, %v542, -inf
      %v1105 = vrot.slane %v1104, 4
      %v1106 = vmax.f32 %v1104, %v1105
      %v1107 = vrot.slane %v1106, 2
      %v1108 = vmax.f32 %v1106, %v1107
      %v1109 = vrot.slane %v1108, 1
      %v1110 = vmax.f32 %v1108, %v1109
      %v1111 = vsel %vm690, %v449, -inf
      %v1112 = vrot.slane %v1111, 4
      %v1113 = vmax.f32 %v1111, %v1112
      %v1114 = vrot.slane %v1113, 2
      %v1115 = vmax.f32 %v1113, %v1114
      %v1116 = vrot.slane %v1115, 1
      %v1117 = vmax.f32 %v1115, %v1116
      %v1118 = vsel %vm690, %v543, -inf
      %v1119 = vrot.slane %v1118, 4
      %v1120 = vmax.f32 %v1118, %v1119
      %v1121 = vrot.slane %v1120, 2
      %v1122 = vmax.f32 %v1120, %v1121
      %v1123 = vrot.slane %v1122, 1
      %v1124 = vmax.f32 %v1122, %v1123
      %v1125 = vsel %vm690, %v544, -inf
      %v1126 = vrot.slane %v1125, 4
      %v1127 = vmax.f32 %v1125, %v1126
      %v1128 = vrot.slane %v1127, 2
      %v1129 = vmax.f32 %v1127, %v1128
      %v1130 = vrot.slane %v1129, 1
      %v1131 = vmax.f32 %v1129, %v1130
      %v1132 = vsel %vm690, %v545, -inf
      %v1133 = vrot.slane %v1132, 4
      %v1134 = vmax.f32 %v1132, %v1133
      %v1135 = vrot.slane %v1134, 2
      %v1136 = vmax.f32 %v1134, %v1135
      %v1137 = vrot.slane %v1136, 1
      %v1138 = vmax.f32 %v1136, %v1137
      %v1139 = vsel %vm690, %v450, -inf
      %v1140 = vrot.slane %v1139, 4
      %v1141 = vmax.f32 %v1139, %v1140
      %v1142 = vrot.slane %v1141, 2
      %v1143 = vmax.f32 %v1141, %v1142
      %v1144 = vrot.slane %v1143, 1
      %v1145 = vmax.f32 %v1143, %v1144
      %v1146 = vsel %vm690, %v546, -inf
      %v1147 = vrot.slane %v1146, 4
      %v1148 = vmax.f32 %v1146, %v1147
      %v1149 = vrot.slane %v1148, 2
      %v1150 = vmax.f32 %v1148, %v1149
      %v1151 = vrot.slane %v1150, 1
      %v1152 = vmax.f32 %v1150, %v1151
      %v1153 = vsel %vm690, %v547, -inf
      %v1154 = vrot.slane %v1153, 4
      %v1155 = vmax.f32 %v1153, %v1154
      %v1156 = vrot.slane %v1155, 2
      %v1157 = vmax.f32 %v1155, %v1156
      %v1158 = vrot.slane %v1157, 1
      %v1159 = vmax.f32 %v1157, %v1158
      %v1160 = vsel %vm690, %v548, -inf
      %v1161 = vrot.slane %v1160, 4
      %v1162 = vmax.f32 %v1160, %v1161
      %v1163 = vrot.slane %v1162, 2
      %v1164 = vmax.f32 %v1162, %v1163
      %v1165 = vrot.slane %v1164, 1
      %v1166 = vmax.f32 %v1164, %v1165
      %v1167 = vsel %vm690, %v451, -inf
      %v1168 = vrot.slane %v1167, 4
      %v1169 = vmax.f32 %v1167, %v1168
      %v1170 = vrot.slane %v1169, 2
      %v1171 = vmax.f32 %v1169, %v1170
      %v1172 = vrot.slane %v1171, 1
      %v1173 = vmax.f32 %v1171, %v1172
      %v1174 = vsel %vm690, %v549, -inf
      %v1175 = vrot.slane %v1174, 4
      %v1176 = vmax.f32 %v1174, %v1175
      %v1177 = vrot.slane %v1176, 2
      %v1178 = vmax.f32 %v1176, %v1177
      %v1179 = vrot.slane %v1178, 1
      %v1180 = vmax.f32 %v1178, %v1179
      %v1181 = vsel %vm690, %v550, -inf
      %v1182 = vrot.slane %v1181, 4
      %v1183 = vmax.f32 %v1181, %v1182
      %v1184 = vrot.slane %v1183, 2
      %v1185 = vmax.f32 %v1183, %v1184
      %v1186 = vrot.slane %v1185, 1
      %v1187 = vmax.f32 %v1185, %v1186
      %v1188 = vsel %vm690, %v551, -inf
      %v1189 = vrot.slane %v1188, 4
      %v1190 = vmax.f32 %v1188, %v1189
      %v1191 = vrot.slane %v1190, 2
      %v1192 = vmax.f32 %v1190, %v1191
      %v1193 = vrot.slane %v1192, 1
      %v1194 = vmax.f32 %v1192, %v1193
      %v1195 = vsel %vm690, %v452, -inf
      %v1196 = vrot.slane %v1195, 4
      %v1197 = vmax.f32 %v1195, %v1196
      %v1198 = vrot.slane %v1197, 2
      %v1199 = vmax.f32 %v1197, %v1198
      %v1200 = vrot.slane %v1199, 1
      %v1201 = vmax.f32 %v1199, %v1200
      %v1202 = vsel %vm690, %v552, -inf
      %v1203 = vrot.slane %v1202, 4
      %v1204 = vmax.f32 %v1202, %v1203
      %v1205 = vrot.slane %v1204, 2
      %v1206 = vmax.f32 %v1204, %v1205
      %v1207 = vrot.slane %v1206, 1
      %v1208 = vmax.f32 %v1206, %v1207
      %v1209 = vsel %vm690, %v553, -inf
      %v1210 = vrot.slane %v1209, 4
      %v1211 = vmax.f32 %v1209, %v1210
      %v1212 = vrot.slane %v1211, 2
      %v1213 = vmax.f32 %v1211, %v1212
      %v1214 = vrot.slane %v1213, 1
      %v1215 = vmax.f32 %v1213, %v1214
      %v1216 = vsel %vm690, %v554, -inf
      %v1217 = vrot.slane %v1216, 4
      %v1218 = vmax.f32 %v1216, %v1217
      %v1219 = vrot.slane %v1218, 2
      %v1220 = vmax.f32 %v1218, %v1219
      %v1221 = vrot.slane %v1220, 1
      %v1222 = vmax.f32 %v1220, %v1221
      %v1223 = vsel %vm690, %v453, -inf
      %v1224 = vrot.slane %v1223, 4
      %v1225 = vmax.f32 %v1223, %v1224
      %v1226 = vrot.slane %v1225, 2
      %v1227 = vmax.f32 %v1225, %v1226
      %v1228 = vrot.slane %v1227, 1
      %v1229 = vmax.f32 %v1227, %v1228
      %v1230 = vsel %vm690, %v555, -inf
      %v1231 = vrot.slane %v1230, 4
      %v1232 = vmax.f32 %v1230, %v1231
      %v1233 = vrot.slane %v1232, 2
      %v1234 = vmax.f32 %v1232, %v1233
      %v1235 = vrot.slane %v1234, 1
      %v1236 = vmax.f32 %v1234, %v1235
      %v1237 = vsel %vm690, %v556, -inf
      %v1238 = vrot.slane %v1237, 4
      %v1239 = vmax.f32 %v1237, %v1238
      %v1240 = vrot.slane %v1239, 2
      %v1241 = vmax.f32 %v1239, %v1240
      %v1242 = vrot.slane %v1241, 1
      %v1243 = vmax.f32 %v1241, %v1242
      %v1244 = vsel %vm690, %v557, -inf
      %v1245 = vrot.slane %v1244, 4
      %v1246 = vmax.f32 %v1244, %v1245
      %v1247 = vrot.slane %v1246, 2
      %v1248 = vmax.f32 %v1246, %v1247
      %v1249 = vrot.slane %v1248, 1
      %v1250 = vmax.f32 %v1248, %v1249
      %v1251 = vsel %vm690, %v454, -inf
      %v1252 = vrot.slane %v1251, 4
      %v1253 = vmax.f32 %v1251, %v1252
      %v1254 = vrot.slane %v1253, 2
      %v1255 = vmax.f32 %v1253, %v1254
      %v1256 = vrot.slane %v1255, 1
      %v1257 = vmax.f32 %v1255, %v1256
      %v1258 = vsel %vm690, %v558, -inf
      %v1259 = vrot.slane %v1258, 4
      %v1260 = vmax.f32 %v1258, %v1259
      %v1261 = vrot.slane %v1260, 2
      %v1262 = vmax.f32 %v1260, %v1261
      %v1263 = vrot.slane %v1262, 1
      %v1264 = vmax.f32 %v1262, %v1263
      %v1265 = vsel %vm690, %v559, -inf
      %v1266 = vrot.slane %v1265, 4
      %v1267 = vmax.f32 %v1265, %v1266
      %v1268 = vrot.slane %v1267, 2
      %v1269 = vmax.f32 %v1267, %v1268
      %v1270 = vrot.slane %v1269, 1
      %v1271 = vmax.f32 %v1269, %v1270
      %v1272 = vsel %vm690, %v560, -inf
      %v1273 = vrot.slane %v1272, 4
      %v1274 = vmax.f32 %v1272, %v1273
      %v1275 = vrot.slane %v1274, 2
      %v1276 = vmax.f32 %v1274, %v1275
      %v1277 = vrot.slane %v1276, 1
      %v1278 = vmax.f32 %v1276, %v1277
      %v1279 = vsel %vm690, %v455, -inf
      %v1280 = vrot.slane %v1279, 4
      %v1281 = vmax.f32 %v1279, %v1280
      %v1282 = vrot.slane %v1281, 2
      %v1283 = vmax.f32 %v1281, %v1282
      %v1284 = vrot.slane %v1283, 1
      %v1285 = vmax.f32 %v1283, %v1284
      %v1286 = vsel %vm690, %v561, -inf
      %v1287 = vrot.slane %v1286, 4
      %v1288 = vmax.f32 %v1286, %v1287
      %v1289 = vrot.slane %v1288, 2
      %v1290 = vmax.f32 %v1288, %v1289
      %v1291 = vrot.slane %v1290, 1
      %v1292 = vmax.f32 %v1290, %v1291
      %v1293 = vsel %vm690, %v562, -inf
      %v1294 = vrot.slane %v1293, 4
      %v1295 = vmax.f32 %v1293, %v1294
      %v1296 = vrot.slane %v1295, 2
      %v1297 = vmax.f32 %v1295, %v1296
      %v1298 = vrot.slane %v1297, 1
      %v1299 = vmax.f32 %v1297, %v1298
      %v1300 = vsel %vm690, %v563, -inf
      %v1301 = vrot.slane %v1300, 4
      %v1302 = vmax.f32 %v1300, %v1301
      %v1303 = vrot.slane %v1302, 2
      %v1304 = vmax.f32 %v1302, %v1303
      %v1305 = vrot.slane %v1304, 1
      %v1306 = vmax.f32 %v1304, %v1305
      %v1307 = vsel %vm690, %v456, -inf
      %v1308 = vrot.slane %v1307, 4
      %v1309 = vmax.f32 %v1307, %v1308
      %v1310 = vrot.slane %v1309, 2
      %v1311 = vmax.f32 %v1309, %v1310
      %v1312 = vrot.slane %v1311, 1
      %v1313 = vmax.f32 %v1311, %v1312
      %v1314 = vsel %vm690, %v564, -inf
      %v1315 = vrot.slane %v1314, 4
      %v1316 = vmax.f32 %v1314, %v1315
      %v1317 = vrot.slane %v1316, 2
      %v1318 = vmax.f32 %v1316, %v1317
      %v1319 = vrot.slane %v1318, 1
      %v1320 = vmax.f32 %v1318, %v1319
      %v1321 = vsel %vm690, %v565, -inf
      %v1322 = vrot.slane %v1321, 4
      %v1323 = vmax.f32 %v1321, %v1322
      %v1324 = vrot.slane %v1323, 2
      %v1325 = vmax.f32 %v1323, %v1324
      %v1326 = vrot.slane %v1325, 1
      %v1327 = vmax.f32 %v1325, %v1326
      %v1328 = vsel %vm690, %v566, -inf
      %v1329 = vrot.slane %v1328, 4
      %v1330 = vmax.f32 %v1328, %v1329
      %v1331 = vrot.slane %v1330, 2
      %v1332 = vmax.f32 %v1330, %v1331
      %v1333 = vrot.slane %v1332, 1
      %v1334 = vmax.f32 %v1332, %v1333
      %v1335 = vsel %vm690, %v457, -inf
      %v1336 = vrot.slane %v1335, 4
      %v1337 = vmax.f32 %v1335, %v1336
      %v1338 = vrot.slane %v1337, 2
      %v1339 = vmax.f32 %v1337, %v1338
      %v1340 = vrot.slane %v1339, 1
      %v1341 = vmax.f32 %v1339, %v1340
      %v1342 = vsel %vm690, %v567, -inf
      %v1343 = vrot.slane %v1342, 4
      %v1344 = vmax.f32 %v1342, %v1343
      %v1345 = vrot.slane %v1344, 2
      %v1346 = vmax.f32 %v1344, %v1345
      %v1347 = vrot.slane %v1346, 1
      %v1348 = vmax.f32 %v1346, %v1347
      %v1349 = vsel %vm690, %v568, -inf
      %v1350 = vrot.slane %v1349, 4
      %v1351 = vmax.f32 %v1349, %v1350
      %v1352 = vrot.slane %v1351, 2
      %v1353 = vmax.f32 %v1351, %v1352
      %v1354 = vrot.slane %v1353, 1
      %v1355 = vmax.f32 %v1353, %v1354
      %v1356 = vsel %vm690, %v569, -inf
      %v1357 = vrot.slane %v1356, 4
      %v1358 = vmax.f32 %v1356, %v1357
      %v1359 = vrot.slane %v1358, 2
      %v1360 = vmax.f32 %v1358, %v1359
      %v1361 = vrot.slane %v1360, 1
      %v1362 = vmax.f32 %v1360, %v1361
      %v1363 = vsel %vm690, %v458, -inf
      %v1364 = vrot.slane %v1363, 4
      %v1365 = vmax.f32 %v1363, %v1364
      %v1366 = vrot.slane %v1365, 2
      %v1367 = vmax.f32 %v1365, %v1366
      %v1368 = vrot.slane %v1367, 1
      %v1369 = vmax.f32 %v1367, %v1368
      %v1370 = vsel %vm690, %v570, -inf
      %v1371 = vrot.slane %v1370, 4
      %v1372 = vmax.f32 %v1370, %v1371
      %v1373 = vrot.slane %v1372, 2
      %v1374 = vmax.f32 %v1372, %v1373
      %v1375 = vrot.slane %v1374, 1
      %v1376 = vmax.f32 %v1374, %v1375
      %v1377 = vsel %vm690, %v571, -inf
      %v1378 = vrot.slane %v1377, 4
      %v1379 = vmax.f32 %v1377, %v1378
      %v1380 = vrot.slane %v1379, 2
      %v1381 = vmax.f32 %v1379, %v1380
      %v1382 = vrot.slane %v1381, 1
      %v1383 = vmax.f32 %v1381, %v1382
      %v1384 = vsel %vm690, %v572, -inf
      %v1385 = vrot.slane %v1384, 4
      %v1386 = vmax.f32 %v1384, %v1385
      %v1387 = vrot.slane %v1386, 2
      %v1388 = vmax.f32 %v1386, %v1387
      %v1389 = vrot.slane %v1388, 1
      %v1390 = vmax.f32 %v1388, %v1389
      %v1391 = vsel %vm690, %v459, -inf
      %v1392 = vrot.slane %v1391, 4
      %v1393 = vmax.f32 %v1391, %v1392
      %v1394 = vrot.slane %v1393, 2
      %v1395 = vmax.f32 %v1393, %v1394
      %v1396 = vrot.slane %v1395, 1
      %v1397 = vmax.f32 %v1395, %v1396
      %v1398 = vsel %vm690, %v573, -inf
      %v1399 = vrot.slane %v1398, 4
      %v1400 = vmax.f32 %v1398, %v1399
      %v1401 = vrot.slane %v1400, 2
      %v1402 = vmax.f32 %v1400, %v1401
      %v1403 = vrot.slane %v1402, 1
      %v1404 = vmax.f32 %v1402, %v1403
      %v1405 = vsel %vm690, %v574, -inf
      %v1406 = vrot.slane %v1405, 4
      %v1407 = vmax.f32 %v1405, %v1406
      %v1408 = vrot.slane %v1407, 2
      %v1409 = vmax.f32 %v1407, %v1408
      %v1410 = vrot.slane %v1409, 1
      %v1411 = vmax.f32 %v1409, %v1410
      %v1412 = vsel %vm690, %v575, -inf
      %v1413 = vrot.slane %v1412, 4
      %v1414 = vmax.f32 %v1412, %v1413
      %v1415 = vrot.slane %v1414, 2
      %v1416 = vmax.f32 %v1414, %v1415
      %v1417 = vrot.slane %v1416, 1
      %v1418 = vmax.f32 %v1416, %v1417
      %v1419 = vsel %vm690, %v460, -inf
      %v1420 = vrot.slane %v1419, 4
      %v1421 = vmax.f32 %v1419, %v1420
      %v1422 = vrot.slane %v1421, 2
      %v1423 = vmax.f32 %v1421, %v1422
      %v1424 = vrot.slane %v1423, 1
      %v1425 = vmax.f32 %v1423, %v1424
      %v1426 = vsel %vm690, %v576, -inf
      %v1427 = vrot.slane %v1426, 4
      %v1428 = vmax.f32 %v1426, %v1427
      %v1429 = vrot.slane %v1428, 2
      %v1430 = vmax.f32 %v1428, %v1429
      %v1431 = vrot.slane %v1430, 1
      %v1432 = vmax.f32 %v1430, %v1431
      %v1433 = vsel %vm690, %v577, -inf
      %v1434 = vrot.slane %v1433, 4
      %v1435 = vmax.f32 %v1433, %v1434
      %v1436 = vrot.slane %v1435, 2
      %v1437 = vmax.f32 %v1435, %v1436
      %v1438 = vrot.slane %v1437, 1
      %v1439 = vmax.f32 %v1437, %v1438
      %v1440 = vsel %vm690, %v578, -inf
      %v1441 = vrot.slane %v1440, 4
      %v1442 = vmax.f32 %v1440, %v1441
      %v1443 = vrot.slane %v1442, 2
      %v1444 = vmax.f32 %v1442, %v1443
      %v1445 = vrot.slane %v1444, 1
      %v1446 = vmax.f32 %v1444, %v1445
      %v1447 = vsel %vm690, %v461, -inf
      %v1448 = vrot.slane %v1447, 4
      %v1449 = vmax.f32 %v1447, %v1448
      %v1450 = vrot.slane %v1449, 2
      %v1451 = vmax.f32 %v1449, %v1450
      %v1452 = vrot.slane %v1451, 1
      %v1453 = vmax.f32 %v1451, %v1452
      %v1454 = vsel %vm690, %v579, -inf
      %v1455 = vrot.slane %v1454, 4
      %v1456 = vmax.f32 %v1454, %v1455
      %v1457 = vrot.slane %v1456, 2
      %v1458 = vmax.f32 %v1456, %v1457
      %v1459 = vrot.slane %v1458, 1
      %v1460 = vmax.f32 %v1458, %v1459
      %v1461 = vsel %vm690, %v580, -inf
      %v1462 = vrot.slane %v1461, 4
      %v1463 = vmax.f32 %v1461, %v1462
      %v1464 = vrot.slane %v1463, 2
      %v1465 = vmax.f32 %v1463, %v1464
      %v1466 = vrot.slane %v1465, 1
      %v1467 = vmax.f32 %v1465, %v1466
      %v1468 = vsel %vm690, %v581, -inf
      %v1469 = vrot.slane %v1468, 4
      %v1470 = vmax.f32 %v1468, %v1469
      %v1471 = vrot.slane %v1470, 2
      %v1472 = vmax.f32 %v1470, %v1471
      %v1473 = vrot.slane %v1472, 1
      %v1474 = vmax.f32 %v1472, %v1473
      %v1475 = vsel %vm690, %v462, -inf
      %v1476 = vrot.slane %v1475, 4
      %v1477 = vmax.f32 %v1475, %v1476
      %v1478 = vrot.slane %v1477, 2
      %v1479 = vmax.f32 %v1477, %v1478
      %v1480 = vrot.slane %v1479, 1
      %v1481 = vmax.f32 %v1479, %v1480
      %v1482 = vsel %vm690, %v582, -inf
      %v1483 = vrot.slane %v1482, 4
      %v1484 = vmax.f32 %v1482, %v1483
      %v1485 = vrot.slane %v1484, 2
      %v1486 = vmax.f32 %v1484, %v1485
      %v1487 = vrot.slane %v1486, 1
      %v1488 = vmax.f32 %v1486, %v1487
      %v1489 = vsel %vm690, %v583, -inf
      %v1490 = vrot.slane %v1489, 4
      %v1491 = vmax.f32 %v1489, %v1490
      %v1492 = vrot.slane %v1491, 2
      %v1493 = vmax.f32 %v1491, %v1492
      %v1494 = vrot.slane %v1493, 1
      %v1495 = vmax.f32 %v1493, %v1494
      %v1496 = vsel %vm690, %v584, -inf
      %v1497 = vrot.slane %v1496, 4
      %v1498 = vmax.f32 %v1496, %v1497
      %v1499 = vrot.slane %v1498, 2
      %v1500 = vmax.f32 %v1498, %v1499
      %v1501 = vrot.slane %v1500, 1
      %v1502 = vmax.f32 %v1500, %v1501
      %v1503 = vsel %vm690, %v463, -inf
      %v1504 = vrot.slane %v1503, 4
      %v1505 = vmax.f32 %v1503, %v1504
      %v1506 = vrot.slane %v1505, 2
      %v1507 = vmax.f32 %v1505, %v1506
      %v1508 = vrot.slane %v1507, 1
      %v1509 = vmax.f32 %v1507, %v1508
      %v1510 = vsel %vm690, %v585, -inf
      %v1511 = vrot.slane %v1510, 4
      %v1512 = vmax.f32 %v1510, %v1511
      %v1513 = vrot.slane %v1512, 2
      %v1514 = vmax.f32 %v1512, %v1513
      %v1515 = vrot.slane %v1514, 1
      %v1516 = vmax.f32 %v1514, %v1515
      %v1517 = vsel %vm690, %v586, -inf
      %v1518 = vrot.slane %v1517, 4
      %v1519 = vmax.f32 %v1517, %v1518
      %v1520 = vrot.slane %v1519, 2
      %v1521 = vmax.f32 %v1519, %v1520
      %v1522 = vrot.slane %v1521, 1
      %v1523 = vmax.f32 %v1521, %v1522
      %v1524 = vsel %vm690, %v587, -inf
      %v1525 = vrot.slane %v1524, 4
      %v1526 = vmax.f32 %v1524, %v1525
      %v1527 = vrot.slane %v1526, 2
      %v1528 = vmax.f32 %v1526, %v1527
      %v1529 = vrot.slane %v1528, 1
      %v1530 = vmax.f32 %v1528, %v1529
      %v1531 = vsel %vm690, %v464, -inf
      %v1532 = vrot.slane %v1531, 4
      %v1533 = vmax.f32 %v1531, %v1532
      %v1534 = vrot.slane %v1533, 2
      %v1535 = vmax.f32 %v1533, %v1534
      %v1536 = vrot.slane %v1535, 1
      %v1537 = vmax.f32 %v1535, %v1536
      %v1538 = vsel %vm690, %v588, -inf
      %v1539 = vrot.slane %v1538, 4
      %v1540 = vmax.f32 %v1538, %v1539
      %v1541 = vrot.slane %v1540, 2
      %v1542 = vmax.f32 %v1540, %v1541
      %v1543 = vrot.slane %v1542, 1
      %v1544 = vmax.f32 %v1542, %v1543
      %v1545 = vsel %vm690, %v589, -inf
      %v1546 = vrot.slane %v1545, 4
      %v1547 = vmax.f32 %v1545, %v1546
      %v1548 = vrot.slane %v1547, 2
      %v1549 = vmax.f32 %v1547, %v1548
      %v1550 = vrot.slane %v1549, 1
      %v1551 = vmax.f32 %v1549, %v1550
      %v1552 = vsel %vm690, %v590, -inf
      %v1553 = vrot.slane %v1552, 4
      %v1554 = vmax.f32 %v1552, %v1553
      %v1555 = vrot.slane %v1554, 2
      %v1556 = vmax.f32 %v1554, %v1555
      %v1557 = vrot.slane %v1556, 1
      %v1558 = vmax.f32 %v1556, %v1557
      %v1559 = vsel %vm690, %v465, -inf
      %v1560 = vrot.slane %v1559, 4
      %v1561 = vmax.f32 %v1559, %v1560
      %v1562 = vrot.slane %v1561, 2
      %v1563 = vmax.f32 %v1561, %v1562
      %v1564 = vrot.slane %v1563, 1
      %v1565 = vmax.f32 %v1563, %v1564
      %v1566 = vsel %vm690, %v591, -inf
      %v1567 = vrot.slane %v1566, 4
      %v1568 = vmax.f32 %v1566, %v1567
      %v1569 = vrot.slane %v1568, 2
      %v1570 = vmax.f32 %v1568, %v1569
      %v1571 = vrot.slane %v1570, 1
      %v1572 = vmax.f32 %v1570, %v1571
      %v1573 = vsel %vm690, %v592, -inf
      %v1574 = vrot.slane %v1573, 4
      %v1575 = vmax.f32 %v1573, %v1574
      %v1576 = vrot.slane %v1575, 2
      %v1577 = vmax.f32 %v1575, %v1576
      %v1578 = vrot.slane %v1577, 1
      %v1579 = vmax.f32 %v1577, %v1578
      %v1580 = vsel %vm690, %v593, -inf
      %v1581 = vrot.slane %v1580, 4
      %v1582 = vmax.f32 %v1580, %v1581
      %v1583 = vrot.slane %v1582, 2
      %v1584 = vmax.f32 %v1582, %v1583
      %v1585 = vrot.slane %v1584, 1
      %v1586 = vmax.f32 %v1584, %v1585
      %vm1587 = vcmask 261120
      %v1588 = vsel %vm1587, %v697, -inf
      %v1589 = vsel %vm1587, %v753, -inf
      %v1590 = vmax.f32 %v1588, %v1589
      %v1591 = vsel %vm1587, %v704, -inf
      %v1592 = vsel %vm1587, %v760, -inf
      %v1593 = vmax.f32 %v1591, %v1592
      %v1594 = vsel %vm1587, %v711, -inf
      %v1595 = vsel %vm1587, %v767, -inf
      %v1596 = vmax.f32 %v1594, %v1595
      %v1597 = vsel %vm1587, %v718, -inf
      %v1598 = vsel %vm1587, %v774, -inf
      %v1599 = vmax.f32 %v1597, %v1598
      %v1600 = vsel %vm1587, %v725, -inf
      %v1601 = vsel %vm1587, %v781, -inf
      %v1602 = vmax.f32 %v1600, %v1601
      %v1603 = vsel %vm1587, %v732, -inf
      %v1604 = vsel %vm1587, %v788, -inf
      %v1605 = vmax.f32 %v1603, %v1604
      %v1606 = vsel %vm1587, %v739, -inf
      %v1607 = vsel %vm1587, %v795, -inf
      %v1608 = vmax.f32 %v1606, %v1607
      %v1609 = vsel %vm1587, %v746, -inf
      %v1610 = vsel %vm1587, %v802, -inf
      %v1611 = vmax.f32 %v1609, %v1610
      %v1612 = vsel %vm1587, %v809, -inf
      %v1613 = vsel %vm1587, %v865, -inf
      %v1614 = vmax.f32 %v1612, %v1613
      %v1615 = vsel %vm1587, %v816, -inf
      %v1616 = vsel %vm1587, %v872, -inf
      %v1617 = vmax.f32 %v1615, %v1616
      %v1618 = vsel %vm1587, %v823, -inf
      %v1619 = vsel %vm1587, %v879, -inf
      %v1620 = vmax.f32 %v1618, %v1619
      %v1621 = vsel %vm1587, %v830, -inf
      %v1622 = vsel %vm1587, %v886, -inf
      %v1623 = vmax.f32 %v1621, %v1622
      %v1624 = vsel %vm1587, %v837, -inf
      %v1625 = vsel %vm1587, %v893, -inf
      %v1626 = vmax.f32 %v1624, %v1625
      %v1627 = vsel %vm1587, %v844, -inf
      %v1628 = vsel %vm1587, %v900, -inf
      %v1629 = vmax.f32 %v1627, %v1628
      %v1630 = vsel %vm1587, %v851, -inf
      %v1631 = vsel %vm1587, %v907, -inf
      %v1632 = vmax.f32 %v1630, %v1631
      %v1633 = vsel %vm1587, %v858, -inf
      %v1634 = vsel %vm1587, %v914, -inf
      %v1635 = vmax.f32 %v1633, %v1634
      %v1636 = vsel %vm1587, %v921, -inf
      %v1637 = vsel %vm1587, %v977, -inf
      %v1638 = vmax.f32 %v1636, %v1637
      %v1639 = vsel %vm1587, %v928, -inf
      %v1640 = vsel %vm1587, %v984, -inf
      %v1641 = vmax.f32 %v1639, %v1640
      %v1642 = vsel %vm1587, %v935, -inf
      %v1643 = vsel %vm1587, %v991, -inf
      %v1644 = vmax.f32 %v1642, %v1643
      %v1645 = vsel %vm1587, %v942, -inf
      %v1646 = vsel %vm1587, %v998, -inf
      %v1647 = vmax.f32 %v1645, %v1646
      %v1648 = vsel %vm1587, %v949, -inf
      %v1649 = vsel %vm1587, %v1005, -inf
      %v1650 = vmax.f32 %v1648, %v1649
      %v1651 = vsel %vm1587, %v956, -inf
      %v1652 = vsel %vm1587, %v1012, -inf
      %v1653 = vmax.f32 %v1651, %v1652
      %v1654 = vsel %vm1587, %v963, -inf
      %v1655 = vsel %vm1587, %v1019, -inf
      %v1656 = vmax.f32 %v1654, %v1655
      %v1657 = vsel %vm1587, %v970, -inf
      %v1658 = vsel %vm1587, %v1026, -inf
      %v1659 = vmax.f32 %v1657, %v1658
      %v1660 = vsel %vm1587, %v1033, -inf
      %v1661 = vsel %vm1587, %v1089, -inf
      %v1662 = vmax.f32 %v1660, %v1661
      %v1663 = vsel %vm1587, %v1040, -inf
      %v1664 = vsel %vm1587, %v1096, -inf
      %v1665 = vmax.f32 %v1663, %v1664
      %v1666 = vsel %vm1587, %v1047, -inf
      %v1667 = vsel %vm1587, %v1103, -inf
      %v1668 = vmax.f32 %v1666, %v1667
      %v1669 = vsel %vm1587, %v1054, -inf
      %v1670 = vsel %vm1587, %v1110, -inf
      %v1671 = vmax.f32 %v1669, %v1670
      %v1672 = vsel %vm1587, %v1061, -inf
      %v1673 = vsel %vm1587, %v1117, -inf
      %v1674 = vmax.f32 %v1672, %v1673
      %v1675 = vsel %vm1587, %v1068, -inf
      %v1676 = vsel %vm1587, %v1124, -inf
      %v1677 = vmax.f32 %v1675, %v1676
      %v1678 = vsel %vm1587, %v1075, -inf
      %v1679 = vsel %vm1587, %v1131, -inf
      %v1680 = vmax.f32 %v1678, %v1679
      %v1681 = vsel %vm1587, %v1082, -inf
      %v1682 = vsel %vm1587, %v1138, -inf
      %v1683 = vmax.f32 %v1681, %v1682
      %v1684 = vsel %vm1587, %v1145, -inf
      %v1685 = vsel %vm1587, %v1201, -inf
      %v1686 = vmax.f32 %v1684, %v1685
      %v1687 = vsel %vm1587, %v1152, -inf
      %v1688 = vsel %vm1587, %v1208, -inf
      %v1689 = vmax.f32 %v1687, %v1688
      %v1690 = vsel %vm1587, %v1159, -inf
      %v1691 = vsel %vm1587, %v1215, -inf
      %v1692 = vmax.f32 %v1690, %v1691
      %v1693 = vsel %vm1587, %v1166, -inf
      %v1694 = vsel %vm1587, %v1222, -inf
      %v1695 = vmax.f32 %v1693, %v1694
      %v1696 = vsel %vm1587, %v1173, -inf
      %v1697 = vsel %vm1587, %v1229, -inf
      %v1698 = vmax.f32 %v1696, %v1697
      %v1699 = vsel %vm1587, %v1180, -inf
      %v1700 = vsel %vm1587, %v1236, -inf
      %v1701 = vmax.f32 %v1699, %v1700
      %v1702 = vsel %vm1587, %v1187, -inf
      %v1703 = vsel %vm1587, %v1243, -inf
      %v1704 = vmax.f32 %v1702, %v1703
      %v1705 = vsel %vm1587, %v1194, -inf
      %v1706 = vsel %vm1587, %v1250, -inf
      %v1707 = vmax.f32 %v1705, %v1706
      %v1708 = vsel %vm1587, %v1257, -inf
      %v1709 = vsel %vm1587, %v1313, -inf
      %v1710 = vmax.f32 %v1708, %v1709
      %v1711 = vsel %vm1587, %v1264, -inf
      %v1712 = vsel %vm1587, %v1320, -inf
      %v1713 = vmax.f32 %v1711, %v1712
      %v1714 = vsel %vm1587, %v1271, -inf
      %v1715 = vsel %vm1587, %v1327, -inf
      %v1716 = vmax.f32 %v1714, %v1715
      %v1717 = vsel %vm1587, %v1278, -inf
      %v1718 = vsel %vm1587, %v1334, -inf
      %v1719 = vmax.f32 %v1717, %v1718
      %v1720 = vsel %vm1587, %v1285, -inf
      %v1721 = vsel %vm1587, %v1341, -inf
      %v1722 = vmax.f32 %v1720, %v1721
      %v1723 = vsel %vm1587, %v1292, -inf
      %v1724 = vsel %vm1587, %v1348, -inf
      %v1725 = vmax.f32 %v1723, %v1724
      %v1726 = vsel %vm1587, %v1299, -inf
      %v1727 = vsel %vm1587, %v1355, -inf
      %v1728 = vmax.f32 %v1726, %v1727
      %v1729 = vsel %vm1587, %v1306, -inf
      %v1730 = vsel %vm1587, %v1362, -inf
      %v1731 = vmax.f32 %v1729, %v1730
      %v1732 = vsel %vm1587, %v1369, -inf
      %v1733 = vsel %vm1587, %v1425, -inf
      %v1734 = vmax.f32 %v1732, %v1733
      %v1735 = vsel %vm1587, %v1376, -inf
      %v1736 = vsel %vm1587, %v1432, -inf
      %v1737 = vmax.f32 %v1735, %v1736
      %v1738 = vsel %vm1587, %v1383, -inf
      %v1739 = vsel %vm1587, %v1439, -inf
      %v1740 = vmax.f32 %v1738, %v1739
      %v1741 = vsel %vm1587, %v1390, -inf
      %v1742 = vsel %vm1587, %v1446, -inf
      %v1743 = vmax.f32 %v1741, %v1742
      %v1744 = vsel %vm1587, %v1397, -inf
      %v1745 = vsel %vm1587, %v1453, -inf
      %v1746 = vmax.f32 %v1744, %v1745
      %v1747 = vsel %vm1587, %v1404, -inf
      %v1748 = vsel %vm1587, %v1460, -inf
      %v1749 = vmax.f32 %v1747, %v1748
      %v1750 = vsel %vm1587, %v1411, -inf
      %v1751 = vsel %vm1587, %v1467, -inf
      %v1752 = vmax.f32 %v1750, %v1751
      %v1753 = vsel %vm1587, %v1418, -inf
      %v1754 = vsel %vm1587, %v1474, -inf
      %v1755 = vmax.f32 %v1753, %v1754
      %v1756 = vsel %vm1587, %v1481, -inf
      %v1757 = vsel %vm1587, %v1537, -inf
      %v1758 = vmax.f32 %v1756, %v1757
      %v1759 = vsel %vm1587, %v1488, -inf
      %v1760 = vsel %vm1587, %v1544, -inf
      %v1761 = vmax.f32 %v1759, %v1760
      %v1762 = vsel %vm1587, %v1495, -inf
      %v1763 = vsel %vm1587, %v1551, -inf
      %v1764 = vmax.f32 %v1762, %v1763
      %v1765 = vsel %vm1587, %v1502, -inf
      %v1766 = vsel %vm1587, %v1558, -inf
      %v1767 = vmax.f32 %v1765, %v1766
      %v1768 = vsel %vm1587, %v1509, -inf
      %v1769 = vsel %vm1587, %v1565, -inf
      %v1770 = vmax.f32 %v1768, %v1769
      %v1771 = vsel %vm1587, %v1516, -inf
      %v1772 = vsel %vm1587, %v1572, -inf
      %v1773 = vmax.f32 %v1771, %v1772
      %v1774 = vsel %vm1587, %v1523, -inf
      %v1775 = vsel %vm1587, %v1579, -inf
      %v1776 = vmax.f32 %v1774, %v1775
      %v1777 = vsel %vm1587, %v1530, -inf
      %v1778 = vsel %vm1587, %v1586, -inf
      %v1779 = vmax.f32 %v1777, %v1778
      %vm1844 = vcmask 1041409
      %v1845 = vsel %vm1844, %v1593, %v1590
      %vm1846 = vcmask 1042434
      %v1847 = vsel %vm1846, %v1596, %v1845
      %vm1848 = vcmask 1043459
      %v1849 = vsel %vm1848, %v1599, %v1847
      %vm1850 = vcmask 1044484
      %v1851 = vsel %vm1850, %v1602, %v1849
      %vm1852 = vcmask 1045509
      %v1853 = vsel %vm1852, %v1605, %v1851
      %vm1854 = vcmask 1046534
      %v1855 = vsel %vm1854, %v1608, %v1853
      %vm1856 = vcmask 1047559
      %v1857 = vsel %vm1856, %v1611, %v1855
      %v1858 = vsel %vm1844, %v1617, %v1614
      %v1859 = vsel %vm1846, %v1620, %v1858
      %v1860 = vsel %vm1848, %v1623, %v1859
      %v1861 = vsel %vm1850, %v1626, %v1860
      %v1862 = vsel %vm1852, %v1629, %v1861
      %v1863 = vsel %vm1854, %v1632, %v1862
      %v1864 = vsel %vm1856, %v1635, %v1863
      %v1865 = vsel %vm1844, %v1641, %v1638
      %v1866 = vsel %vm1846, %v1644, %v1865
      %v1867 = vsel %vm1848, %v1647, %v1866
      %v1868 = vsel %vm1850, %v1650, %v1867
      %v1869 = vsel %vm1852, %v1653, %v1868
      %v1870 = vsel %vm1854, %v1656, %v1869
      %v1871 = vsel %vm1856, %v1659, %v1870
      %v1872 = vsel %vm1844, %v1665, %v1662
      %v1873 = vsel %vm1846, %v1668, %v1872
      %v1874 = vsel %vm1848, %v1671, %v1873
      %v1875 = vsel %vm1850, %v1674, %v1874
      %v1876 = vsel %vm1852, %v1677, %v1875
      %v1877 = vsel %vm1854, %v1680, %v1876
      %v1878 = vsel %vm1856, %v1683, %v1877
      %v1879 = vsel %vm1844, %v1689, %v1686
      %v1880 = vsel %vm1846, %v1692, %v1879
      %v1881 = vsel %vm1848, %v1695, %v1880
      %v1882 = vsel %vm1850, %v1698, %v1881
      %v1883 = vsel %vm1852, %v1701, %v1882
      %v1884 = vsel %vm1854, %v1704, %v1883
      %v1885 = vsel %vm1856, %v1707, %v1884
      %v1886 = vsel %vm1844, %v1713, %v1710
      %v1887 = vsel %vm1846, %v1716, %v1886
      %v1888 = vsel %vm1848, %v1719, %v1887
      %v1889 = vsel %vm1850, %v1722, %v1888
      %v1890 = vsel %vm1852, %v1725, %v1889
      %v1891 = vsel %vm1854, %v1728, %v1890
      %v1892 = vsel %vm1856, %v1731, %v1891
      %v1893 = vsel %vm1844, %v1737, %v1734
      %v1894 = vsel %vm1846, %v1740, %v1893
      %v1895 = vsel %vm1848, %v1743, %v1894
      %v1896 = vsel %vm1850, %v1746, %v1895
      %v1897 = vsel %vm1852, %v1749, %v1896
      %v1898 = vsel %vm1854, %v1752, %v1897
      %v1899 = vsel %vm1856, %v1755, %v1898
      %v1900 = vsel %vm1844, %v1761, %v1758
      %v1901 = vsel %vm1846, %v1764, %v1900
      %v1902 = vsel %vm1848, %v1767, %v1901
      %v1903 = vsel %vm1850, %v1770, %v1902
      %v1904 = vsel %vm1852, %v1773, %v1903
      %v1905 = vsel %vm1854, %v1776, %v1904
      %v1906 = vsel %vm1856, %v1779, %v1905
      %v1915 = vrot.slane %v1871, 4
      %vm1916 = vcmask 1047556
      %v1917 = vsel %vm1916, %v1915, %v1857
      %v1918 = vrot.slane %v1857, 4
      %v1919 = vsel %vm1916, %v1871, %v1918
      %v1921 = vunpack.c.l.s4 1983009808
      %v1922 = vunpack.c.0.s8 %v1921
      %v1923 = vperm.slane %v1917, %v1922
      %v1925 = vunpack.c.l.s4 1983009808
      %v1926 = vunpack.c.0.s8 %v1925
      %v1927 = vperm.slane %v1919, %v1926
      %v1928 = vrot.slane %v1878, 4
      %v1929 = vsel %vm1916, %v1928, %v1864
      %v1930 = vrot.slane %v1864, 4
      %v1931 = vsel %vm1916, %v1878, %v1930
      %v1933 = vunpack.c.l.s4 1983009808
      %v1934 = vunpack.c.0.s8 %v1933
      %v1935 = vperm.slane %v1929, %v1934
      %v1937 = vunpack.c.l.s4 1983009808
      %v1938 = vunpack.c.0.s8 %v1937
      %v1939 = vperm.slane %v1931, %v1938
      %v1940 = vrot.slane %v1899, 4
      %v1941 = vsel %vm1916, %v1940, %v1885
      %v1942 = vrot.slane %v1885, 4
      %v1943 = vsel %vm1916, %v1899, %v1942
      %v1945 = vunpack.c.l.s4 1983009808
      %v1946 = vunpack.c.0.s8 %v1945
      %v1947 = vperm.slane %v1941, %v1946
      %v1949 = vunpack.c.l.s4 1983009808
      %v1950 = vunpack.c.0.s8 %v1949
      %v1951 = vperm.slane %v1943, %v1950
      %v1952 = vrot.slane %v1906, 4
      %v1953 = vsel %vm1916, %v1952, %v1892
      %v1954 = vrot.slane %v1892, 4
      %v1955 = vsel %vm1916, %v1906, %v1954
      %v1957 = vunpack.c.l.s4 1983009808
      %v1958 = vunpack.c.0.s8 %v1957
      %v1959 = vperm.slane %v1953, %v1958
      %v1961 = vunpack.c.l.s4 1983009808
      %v1962 = vunpack.c.0.s8 %v1961
      %v1963 = vperm.slane %v1955, %v1962
      %v1964 = vrot.slane %v1935, 4
      %v1965 = vsel %vm1916, %v1964, %v1923
      %v1966 = vrot.slane %v1923, 4
      %v1967 = vsel %vm1916, %v1935, %v1966
      %v1969 = vunpack.c.l.s4 1934713408
      %v1970 = vunpack.c.0.s8 %v1969
      %v1971 = vperm.slane %v1965, %v1970
      %v1973 = vunpack.c.l.s4 1934713408
      %v1974 = vunpack.c.0.s8 %v1973
      %v1975 = vperm.slane %v1967, %v1974
      %v1976 = vrot.slane %v1939, 4
      %v1977 = vsel %vm1916, %v1976, %v1927
      %v1978 = vrot.slane %v1927, 4
      %v1979 = vsel %vm1916, %v1939, %v1978
      %v1981 = vunpack.c.l.s4 1934713408
      %v1982 = vunpack.c.0.s8 %v1981
      %v1983 = vperm.slane %v1977, %v1982
      %v1985 = vunpack.c.l.s4 1934713408
      %v1986 = vunpack.c.0.s8 %v1985
      %v1987 = vperm.slane %v1979, %v1986
      %v1988 = vrot.slane %v1959, 4
      %v1989 = vsel %vm1916, %v1988, %v1947
      %v1990 = vrot.slane %v1947, 4
      %v1991 = vsel %vm1916, %v1959, %v1990
      %v1993 = vunpack.c.l.s4 1934713408
      %v1994 = vunpack.c.0.s8 %v1993
      %v1995 = vperm.slane %v1989, %v1994
      %v1997 = vunpack.c.l.s4 1934713408
      %v1998 = vunpack.c.0.s8 %v1997
      %v1999 = vperm.slane %v1991, %v1998
      %v2000 = vrot.slane %v1963, 4
      %v2001 = vsel %vm1916, %v2000, %v1951
      %v2002 = vrot.slane %v1951, 4
      %v2003 = vsel %vm1916, %v1963, %v2002
      %v2005 = vunpack.c.l.s4 1934713408
      %v2006 = vunpack.c.0.s8 %v2005
      %v2007 = vperm.slane %v2001, %v2006
      %v2009 = vunpack.c.l.s4 1934713408
      %v2010 = vunpack.c.0.s8 %v2009
      %v2011 = vperm.slane %v2003, %v2010
      %v2012 = vrot.slane %v1995, 4
      %v2013 = vsel %vm1916, %v2012, %v1971
      %v2014 = vrot.slane %v1971, 4
      %v2015 = vsel %vm1916, %v1995, %v2014
      %v2016 = vrot.slane %v1999, 4
      %v2017 = vsel %vm1916, %v2016, %v1975
      %v2018 = vrot.slane %v1975, 4
      %v2019 = vsel %vm1916, %v1999, %v2018
      %v2020 = vrot.slane %v2007, 4
      %v2021 = vsel %vm1916, %v2020, %v1983
      %v2022 = vrot.slane %v1983, 4
      %v2023 = vsel %vm1916, %v2007, %v2022
      %v2024 = vrot.slane %v2011, 4
      %v2025 = vsel %vm1916, %v2024, %v1987
      %v2026 = vrot.slane %v1987, 4
      %v2027 = vsel %vm1916, %v2011, %v2026
      %2029 = vrot.lane.b32.xlu0 %v2015, 32
      %v2030 = vpop.permute.xlu0 %2029
      %2033 = vrot.lane.b32.xlu0 %v2017, 64
      %v2034 = vpop.permute.xlu0 %2033
      %2037 = vrot.lane.b32.xlu0 %v2019, 96
      %v2038 = vpop.permute.xlu0 %2037
      %2041 = vrot.lane.b32.xlu0 %v2023, 32
      %v2042 = vpop.permute.xlu0 %2041
      %2045 = vrot.lane.b32.xlu0 %v2025, 64
      %v2046 = vpop.permute.xlu0 %2045
      %2049 = vrot.lane.b32.xlu0 %v2027, 96
      %v2050 = vpop.permute.xlu0 %2049
      %v2052 = vsel %vm1587, %v2013, %v2030
      %vm2053 = vcmask 523264
      %v2054 = vsel %vm2053, %v2052, %v2034
      %vm2055 = vcmask 785408
      %v2056 = vsel %vm2055, %v2054, %v2038
      %v2057 = vsel %vm1587, %v2021, %v2042
      %v2058 = vsel %vm2053, %v2057, %v2046
      %v2059 = vsel %vm2055, %v2058, %v2050
      %v2060 = vpack.c.bf16 %v2059, %v2056
      %2061 = vst [vmem:[%s170] sm:$0xff] %v2060
      %p2062 = scmp.lt.s32.totalorder %s14, 1
      %s2063 = scalar_select %p2062, %s14, 1
      %s2064 = smul.addr %s2063, 2
      %s2065 = smul.addr %s2064, 4
      %s2066 = scalar_lea.vmem %s3, %s2065
      // Predicated region
      $region33: #{cnn_forward.3} parent=31 // pred_check
        %p2067 = pneg %p100
      $region34: #{cnn_forward.3} parent=31 // pred_check_branch
        %2069 = sbr.rel (%p2067) target = $region36
      $region35: #{cnn_forward.3} parent=31 // pred_region
        _
      $region36: #{cnn_forward.3} parent=31 // pred_fallthru
        _
    $region32: #{cnn_forward.3} parent=5 // pred_fallthru
      _
    %p2070 = scmp.le.s32.totalorder 2, %s9
    // Predicated region
    $region37: #{cnn_forward.3} parent=5 // pred_check
      %p2071 = pneg %p2070
    $region38: #{cnn_forward.3} parent=5 // pred_check_branch
      %2073 = sbr.rel (%p2071) target = $region40
    $region39: #{cnn_forward.3} parent=5 // pred_region
      %s2074 = ssub.s32 %s9, 2
      // Predicated region
      $region41: #{cnn_forward.3} parent=39 // pred_check
        %p2075 = pneg %p106
      $region42: #{cnn_forward.3} parent=39 // pred_check_branch
        %2077 = sbr.rel (%p2075) target = $region44
      $region43: #{cnn_forward.3} parent=39 // pred_region
        %p2078 = scmp.lt.s32.totalorder %s15, 1
        %s2079 = scalar_select %p2078, %s15, 1
        %s2080 = smul.addr %s2079, 2
        %s2081 = smul.addr %s2080, 4
        %s2082 = scalar_lea.vmem %s3, %s2081
      $region44: #{cnn_forward.3} parent=39 // pred_fallthru
        _
    $region40: #{cnn_forward.3} parent=5 // pred_fallthru
      _
  $region6: #{cnn_forward.3} parent=0 // loop_footer
    %s13 = sadd.s32 1, %s9
  $region7: #{cnn_forward.3} parent=0 // loop_footer_branch
    %8 = sbr.rel target = $region3
  $region8: #{cnn_forward.3} parent=0 // loop_exit
    _

// kernel: cnn_forward.4
$region0: #{cnn_forward.4}
  #allocation0 [shape = 'u32[]', space=smem, size = 0x4, offset = 0x4, fixed_abs, tag = 'smem constant byte address 0x4 - core index']
  #allocation1 [shape = 'u32[72,128]{1,0:T(1,128)}', space=vmem, size = 0x9000, scoped, tag = 'internal scratch']
  %s0 = inlined_call_operand.vmem [shape: bf16[2,10,10,32], index: 0, kind: input, shape index: {}]
  %s1 = inlined_call_operand.vmem [shape: bf16[288,64], index: 1, kind: input, shape index: {}]
  %s2 = inlined_call_operand.vmem [shape: f32[1,64], index: 2, kind: input, shape index: {}]
  %s3 = inlined_call_operand.vmem [shape: bf16[2,4,256], index: 3, kind: output, shape index: {}]
  %s4 = sld [smem:[#allocation0]]
  $region45: #{cnn_forward.4} parent=0
    _
  %s6 = ssub.s32 1, %s4
  %s7 = scalar_select 0, %s6, %s4
  loop: start=0, step=1, limit=4
  $region2: #{cnn_forward.4} parent=0 // loop_pre_header
    _
  $region3: #{cnn_forward.4} parent=0 // loop_header
    %s9 = sphi 0, %s13
    %p10 = scmp.ge.s32.totalorder %s9, 4
    %s19 = sphi 0, %s21
    %s22 = sphi 0, %s19
    %s23 = sphi 0, %s22
    %s39 = sphi 0, %s23
    %s43 = sphi 0, %s43
    %s45 = sphi 0, %s43
    %s46 = sphi 0, %s45
    %s60 = sphi 0, %s46
    %s64 = sphi 0, %s64
    %s66 = sphi 0, %s64
    %s67 = sphi 0, %s66
    %s81 = sphi 0, %s67
    %s87 = sphi 0, %s89
    %s90 = sphi 0, %s87
    %s91 = sphi 0, %s90
    %s107 = sphi 0, %s91
  $region4: #{cnn_forward.4} parent=0 // loop_header_branch
    %12 = sbr.rel (%p10) target = $region8
  $region5: #{cnn_forward.4} parent=0 // loop_body
    %s14 = ssub.s32 %s9, 1
    %s15 = ssub.s32 %s9, 2
    %s16 = sadd.s32 %s9, 1
    %s17 = ssub.s32 %s9, %s16
    %p18 = scmp.eq.s32.totalorder %s17, 0
    %s20 = sadd.s32 %s19, 1
    %s21 = scalar_select %p18, %s19, %s20
    %p24 = pneg %p18
    %p25 = scmp.eq.s32.totalorder %s9, 1
    %p26 = por %p24, %p25
    %p27 = scmp.ne.s32.totalorder %s19, %s22
    %p28 = scmp.eq.s32.totalorder %s9, 0
    %p29 = por %p27, %p28
    %p30 = scmp.ne.s32.totalorder %s19, %s22
    %p31 = scmp.eq.s32.totalorder %s14, 1
    %p32 = por %p30, %p31
    %p33 = scmp.ne.s32.totalorder %s22, %s23
    %p34 = scmp.eq.s32.totalorder %s14, 0
    %p35 = por %p33, %p34
    %p36 = scmp.ne.s32.totalorder %s22, %s23
    %p37 = scmp.eq.s32.totalorder %s15, 1
    %p38 = por %p36, %p37
    %p40 = scmp.ne.s32.totalorder %s23, %s39
    %p41 = scmp.eq.s32.totalorder %s15, 0
    %p42 = por %p40, %p41
    %s44 = sadd.s32 %s43, 1
    %p47 = scmp.eq.s32.totalorder %s9, 1
    %p48 = scmp.ne.s32.totalorder %s43, %s45
    %p49 = scmp.eq.s32.totalorder %s9, 0
    %p50 = por %p48, %p49
    %p51 = scmp.ne.s32.totalorder %s43, %s45
    %p52 = scmp.eq.s32.totalorder %s14, 1
    %p53 = por %p51, %p52
    %p54 = scmp.ne.s32.totalorder %s45, %s46
    %p55 = scmp.eq.s32.totalorder %s14, 0
    %p56 = por %p54, %p55
    %p57 = scmp.ne.s32.totalorder %s45, %s46
    %p58 = scmp.eq.s32.totalorder %s15, 1
    %p59 = por %p57, %p58
    %p61 = scmp.ne.s32.totalorder %s46, %s60
    %p62 = scmp.eq.s32.totalorder %s15, 0
    %p63 = por %p61, %p62
    %s65 = sadd.s32 %s64, 1
    %p68 = scmp.eq.s32.totalorder %s9, 1
    %p69 = scmp.ne.s32.totalorder %s64, %s66
    %p70 = scmp.eq.s32.totalorder %s9, 0
    %p71 = por %p69, %p70
    %p72 = scmp.ne.s32.totalorder %s64, %s66
    %p73 = scmp.eq.s32.totalorder %s14, 1
    %p74 = por %p72, %p73
    %p75 = scmp.ne.s32.totalorder %s66, %s67
    %p76 = scmp.eq.s32.totalorder %s14, 0
    %p77 = por %p75, %p76
    %p78 = scmp.ne.s32.totalorder %s66, %s67
    %p79 = scmp.eq.s32.totalorder %s15, 1
    %p80 = por %p78, %p79
    %p82 = scmp.ne.s32.totalorder %s67, %s81
    %p83 = scmp.eq.s32.totalorder %s15, 0
    %p84 = por %p82, %p83
    %s85 = ssub.s32 %s9, %s16
    %p86 = scmp.eq.s32.totalorder %s85, 0
    %s88 = sadd.s32 %s87, 1
    %s89 = scalar_select %p86, %s87, %s88
    %p92 = pneg %p86
    %p93 = scmp.eq.s32.totalorder %s9, 1
    %p94 = por %p92, %p93
    %p95 = scmp.ne.s32.totalorder %s87, %s90
    %p96 = scmp.eq.s32.totalorder %s9, 0
    %p97 = por %p95, %p96
    %p98 = scmp.ne.s32.totalorder %s87, %s90
    %p99 = scmp.eq.s32.totalorder %s14, 1
    %p100 = por %p98, %p99
    %p101 = scmp.ne.s32.totalorder %s90, %s91
    %p102 = scmp.eq.s32.totalorder %s14, 0
    %p103 = por %p101, %p102
    %p104 = scmp.ne.s32.totalorder %s90, %s91
    %p105 = scmp.eq.s32.totalorder %s15, 1
    %p106 = por %p104, %p105
    %p108 = scmp.ne.s32.totalorder %s91, %s107
    %p109 = scmp.eq.s32.totalorder %s15, 0
    %p110 = por %p108, %p109
    %p111 = scmp.le.s32.totalorder 1, %s9
    %p112 = scmp.lt.s32.totalorder %s9, 3
    %p113 = pnand %p111, %p112
    %p114 = pneg %p113
    // Predicated region
    $region9: #{cnn_forward.4} parent=5 // pred_check
      _
    $region10: #{cnn_forward.4} parent=5 // pred_check_branch
      %116 = sbr.rel (%p113) target = $region12
    $region11: #{cnn_forward.4} parent=5 // pred_region
      %s117 = ssub.s32 %s9, 1
      // Predicated region
      $region13: #{cnn_forward.4} parent=11 // pred_check
        %p118 = pneg %p56
      $region14: #{cnn_forward.4} parent=11 // pred_check_branch
        %120 = sbr.rel (%p118) target = $region16
      $region15: #{cnn_forward.4} parent=11 // pred_region
        _
      $region16: #{cnn_forward.4} parent=11 // pred_fallthru
        _
      // Predicated region
      $region17: #{cnn_forward.4} parent=11 // pred_check
        %p121 = pneg %p77
      $region18: #{cnn_forward.4} parent=11 // pred_check_branch
        %123 = sbr.rel (%p121) target = $region20
      $region19: #{cnn_forward.4} parent=11 // pred_region
        _
      $region20: #{cnn_forward.4} parent=11 // pred_fallthru
        _
    $region12: #{cnn_forward.4} parent=5 // pred_fallthru
      _
    %p124 = scmp.lt.s32.totalorder %s9, 2
    // Predicated region
    $region21: #{cnn_forward.4} parent=5 // pred_check
      %p125 = pneg %p124
    $region22: #{cnn_forward.4} parent=5 // pred_check_branch
      %127 = sbr.rel (%p125) target = $region24
    $region23: #{cnn_forward.4} parent=5 // pred_region
      // Predicated region
      $region25: #{cnn_forward.4} parent=23 // pred_check
        %p128 = pneg %p29
      $region26: #{cnn_forward.4} parent=23 // pred_check_branch
        %130 = sbr.rel (%p128) target = $region28
      $region27: #{cnn_forward.4} parent=23 // pred_region
        %p131 = scmp.lt.s32.totalorder %s9, 1
        %s132 = scalar_select %p131, %s9, 1
        %s133 = smul.addr %s132, 20
        %s134 = smul.addr %s133, 4
        %s135 = scalar_lea.vmem %s0, %s134
      $region28: #{cnn_forward.4} parent=23 // pred_fallthru
        _
    $region24: #{cnn_forward.4} parent=5 // pred_fallthru
      _
    %p136 = scmp.le.s32.totalorder 1, %s9
    %p137 = scmp.lt.s32.totalorder %s9, 3
    %p138 = pnand %p136, %p137
    %p139 = pneg %p138
    // Predicated region
    $region29: #{cnn_forward.4} parent=5 // pred_check
      _
    $region30: #{cnn_forward.4} parent=5 // pred_check_branch
      %141 = sbr.rel (%p138) target = $region32
    $region31: #{cnn_forward.4} parent=5 // pred_region
      %s142 = ssub.s32 %s9, 1
      %p143 = scmp.lt.s32.totalorder %s14, 1
      %s144 = scalar_select %p143, %s14, 1
      %s145 = smul.addr %s144, 20
      %s146 = smul.addr %s145, 4
      %s147 = scalar_lea.vmem %s0, %s146
      %p148 = pneg %p35
      %p149 = pneg %p32
      %p150 = pneg %p56
      %p151 = pneg %p53
      %p152 = pneg %p77
      %p153 = pneg %p74
      %p154 = pneg %p103
      %p155 = pneg %p100
      %p156 = scmp.lt.s32.totalorder %s14, 1
      %s157 = scalar_select %p156, %s14, 1
      %s158 = smul.addr %s157, 2
      %s159 = smul.addr %s158, 2
      %s160 = scalar_lea.vmem %s3, %s159
      %p161 = scmp.lt.s32.totalorder %s14, 1
      %s162 = scalar_select %p161, %s14, 1
      %s163 = smul.addr %s162, 20
      %s164 = smul.addr %s163, 4
      %s165 = scalar_lea.vmem %s0, %s164
      %p166 = scmp.lt.s32.totalorder %s14, 1
      %s167 = scalar_select %p166, %s14, 1
      %s168 = smul.addr %s167, 2
      %s169 = smul.addr %s168, 2
      %s170 = scalar_lea.vmem %s3, %s169
      %v172 = vld [vmem:[%s165] sm:$0xf]
      %v173 = vld [vmem:[%s165 + $0x4] sm:$0x1]
      %v174 = vld [vmem:[%s165 + $0x8] sm:$0xf]
      %v175 = vld [vmem:[%s165 + $0xc] sm:$0x1]
      %v176 = vld [vmem:[%s165 + $0x10] sm:$0xf]
      %v177 = vld [vmem:[%s165 + $0x14] sm:$0x1]
      %v178 = vld [vmem:[%s165 + $0x18] sm:$0xf]
      %v179 = vld [vmem:[%s165 + $0x1c] sm:$0x1]
      %v180 = vld [vmem:[%s165 + $0x20] sm:$0xf]
      %v181 = vld [vmem:[%s165 + $0x24] sm:$0x1]
      %v182 = vld [vmem:[%s165 + $0x28] sm:$0xf]
      %v183 = vld [vmem:[%s165 + $0x2c] sm:$0x1]
      %v184 = vld [vmem:[%s165 + $0x30] sm:$0xf]
      %v185 = vld [vmem:[%s165 + $0x34] sm:$0x1]
      %v186 = vld [vmem:[%s165 + $0x38] sm:$0xf]
      %v187 = vld [vmem:[%s165 + $0x3c] sm:$0x1]
      %v188 = vld [vmem:[%s165 + $0x40] sm:$0xf]
      %v189 = vld [vmem:[%s165 + $0x44] sm:$0x1]
      %v190 = vld [vmem:[%s165 + $0x48] sm:$0xf]
      %v191 = vld [vmem:[%s165 + $0x4c] sm:$0x1]
      %v208 = vunpack.c.l.b16 %v172
      %v209 = vunpack.c.l.b16 %v173
      %v210 = vunpack.c.l.b16 %v174
      %v211 = vunpack.c.l.b16 %v175
      %v212 = vunpack.c.l.b16 %v176
      %v213 = vunpack.c.l.b16 %v177
      %v214 = vunpack.c.l.b16 %v178
      %v215 = vunpack.c.l.b16 %v179
      %v216 = vunpack.c.l.b16 %v180
      %v217 = vunpack.c.l.b16 %v181
      %v218 = vunpack.c.l.b16 %v182
      %v219 = vunpack.c.l.b16 %v183
      %v220 = vunpack.c.l.b16 %v184
      %v221 = vunpack.c.l.b16 %v185
      %v222 = vunpack.c.l.b16 %v186
      %v223 = vunpack.c.l.b16 %v187
      %v224 = vpack.c.b16 %v209, %v208
      %v225 = vpack.c.b16 %v211, %v210
      %v226 = vpack.c.b16 %v213, %v212
      %v227 = vpack.c.b16 %v215, %v214
      %v228 = vpack.c.b16 %v217, %v216
      %v229 = vpack.c.b16 %v219, %v218
      %v230 = vpack.c.b16 %v221, %v220
      %v231 = vpack.c.b16 %v223, %v222
      %v233 = vshrl.u32 %v224, 16
      %v235 = vshll.u32 %v224, 16
      %v237 = vrot.slane %v235, 1
      %v238 = vor.u32 %v233, %v237
      %v240 = vshrl.u32 %v225, 16
      %v242 = vshll.u32 %v225, 16
      %v244 = vrot.slane %v242, 1
      %v245 = vor.u32 %v240, %v244
      %v247 = vshrl.u32 %v226, 16
      %v249 = vshll.u32 %v226, 16
      %v251 = vrot.slane %v249, 1
      %v252 = vor.u32 %v247, %v251
      %v254 = vshrl.u32 %v227, 16
      %v256 = vshll.u32 %v227, 16
      %v258 = vrot.slane %v256, 1
      %v259 = vor.u32 %v254, %v258
      %v261 = vshrl.u32 %v228, 16
      %v263 = vshll.u32 %v228, 16
      %v265 = vrot.slane %v263, 1
      %v266 = vor.u32 %v261, %v265
      %v268 = vshrl.u32 %v229, 16
      %v270 = vshll.u32 %v229, 16
      %v272 = vrot.slane %v270, 1
      %v273 = vor.u32 %v268, %v272
      %v275 = vshrl.u32 %v230, 16
      %v277 = vshll.u32 %v230, 16
      %v279 = vrot.slane %v277, 1
      %v280 = vor.u32 %v275, %v279
      %v282 = vshrl.u32 %v231, 16
      %v284 = vshll.u32 %v231, 16
      %v286 = vrot.slane %v284, 1
      %v287 = vor.u32 %v282, %v286
      %288 = vrot.lane.b32.xlu0 %v238, 32
      %v289 = vpop.permute.xlu0 %288
      %290 = vrot.lane.b32.xlu0 %v245, 32
      %v291 = vpop.permute.xlu0 %290
      %292 = vrot.lane.b32.xlu0 %v252, 32
      %v293 = vpop.permute.xlu0 %292
      %294 = vrot.lane.b32.xlu0 %v259, 32
      %v295 = vpop.permute.xlu0 %294
      %296 = vrot.lane.b32.xlu0 %v266, 32
      %v297 = vpop.permute.xlu0 %296
      %298 = vrot.lane.b32.xlu0 %v273, 32
      %v299 = vpop.permute.xlu0 %298
      %300 = vrot.lane.b32.xlu0 %v280, 32
      %v301 = vpop.permute.xlu0 %300
      %302 = vrot.lane.b32.xlu0 %v287, 32
      %v303 = vpop.permute.xlu0 %302
      %v304 = vrot.slane %v224, 1
      %v305 = vrot.slane %v225, 1
      %v306 = vrot.slane %v226, 1
      %v307 = vrot.slane %v227, 1
      %v308 = vrot.slane %v228, 1
      %v309 = vrot.slane %v229, 1
      %v310 = vrot.slane %v230, 1
      %v311 = vrot.slane %v231, 1
      %312 = vrot.lane.b32.xlu0 %v304, 64
      %v313 = vpop.permute.xlu0 %312
      %314 = vrot.lane.b32.xlu0 %v305, 64
      %v315 = vpop.permute.xlu0 %314
      %316 = vrot.lane.b32.xlu0 %v306, 64
      %v317 = vpop.permute.xlu0 %316
      %318 = vrot.lane.b32.xlu0 %v307, 64
      %v319 = vpop.permute.xlu0 %318
      %320 = vrot.lane.b32.xlu0 %v308, 64
      %v321 = vpop.permute.xlu0 %320
      %322 = vrot.lane.b32.xlu0 %v309, 64
      %v323 = vpop.permute.xlu0 %322
      %324 = vrot.lane.b32.xlu0 %v310, 64
      %v325 = vpop.permute.xlu0 %324
      %326 = vrot.lane.b32.xlu0 %v311, 64
      %v327 = vpop.permute.xlu0 %326
      %v329 = vunpack.c.l.b16 %v188
      %v330 = vpack.c.b16 %v210, %v210
      %v331 = vpack.c.b16 %v212, %v212
      %v332 = vpack.c.b16 %v214, %v214
      %v333 = vpack.c.b16 %v216, %v216
      %v334 = vpack.c.b16 %v218, %v218
      %v335 = vpack.c.b16 %v220, %v220
      %v336 = vpack.c.b16 %v222, %v222
      %v337 = vpack.c.b16 %v329, %v329
      %338 = vrot.lane.b32.xlu0 %v330, 96
      %v339 = vpop.permute.xlu0 %338
      %340 = vrot.lane.b32.xlu0 %v331, 96
      %v341 = vpop.permute.xlu0 %340
      %342 = vrot.lane.b32.xlu0 %v332, 96
      %v343 = vpop.permute.xlu0 %342
      %344 = vrot.lane.b32.xlu0 %v333, 96
      %v345 = vpop.permute.xlu0 %344
      %346 = vrot.lane.b32.xlu0 %v334, 96
      %v347 = vpop.permute.xlu0 %346
      %348 = vrot.lane.b32.xlu0 %v335, 96
      %v349 = vpop.permute.xlu0 %348
      %350 = vrot.lane.b32.xlu0 %v336, 96
      %v351 = vpop.permute.xlu0 %350
      %352 = vrot.lane.b32.xlu0 %v337, 96
      %v353 = vpop.permute.xlu0 %352
      %v355 = vunpack.c.l.b16 %v189
      %v356 = vpack.c.b16 %v355, %v329
      %v358 = vshrl.u32 %v356, 16
      %v360 = vshll.u32 %v356, 16
      %v362 = vrot.slane %v360, 1
      %v363 = vor.u32 %v358, %v362
      %v364 = vrot.slane %v356, 1
      %365 = vrot.lane.b32.xlu0 %v305, 32
      %v366 = vpop.permute.xlu0 %365
      %367 = vrot.lane.b32.xlu0 %v306, 32
      %v368 = vpop.permute.xlu0 %367
      %369 = vrot.lane.b32.xlu0 %v307, 32
      %v370 = vpop.permute.xlu0 %369
      %371 = vrot.lane.b32.xlu0 %v308, 32
      %v372 = vpop.permute.xlu0 %371
      %373 = vrot.lane.b32.xlu0 %v309, 32
      %v374 = vpop.permute.xlu0 %373
      %375 = vrot.lane.b32.xlu0 %v310, 32
      %v376 = vpop.permute.xlu0 %375
      %377 = vrot.lane.b32.xlu0 %v311, 32
      %v378 = vpop.permute.xlu0 %377
      %379 = vrot.lane.b32.xlu0 %v364, 32
      %v380 = vpop.permute.xlu0 %379
      %v382 = vunpack.c.l.b16 %v190
      %v383 = vpack.c.b16 %v382, %v382
      %384 = vrot.lane.b32.xlu0 %v331, 64
      %v385 = vpop.permute.xlu0 %384
      %386 = vrot.lane.b32.xlu0 %v332, 64
      %v387 = vpop.permute.xlu0 %386
      %388 = vrot.lane.b32.xlu0 %v333, 64
      %v389 = vpop.permute.xlu0 %388
      %390 = vrot.lane.b32.xlu0 %v334, 64
      %v391 = vpop.permute.xlu0 %390
      %392 = vrot.lane.b32.xlu0 %v335, 64
      %v393 = vpop.permute.xlu0 %392
      %394 = vrot.lane.b32.xlu0 %v336, 64
      %v395 = vpop.permute.xlu0 %394
      %396 = vrot.lane.b32.xlu0 %v337, 64
      %v397 = vpop.permute.xlu0 %396
      %398 = vrot.lane.b32.xlu0 %v383, 64
      %v399 = vpop.permute.xlu0 %398
      %v401 = vunpack.c.l.b16 %v191
      %v402 = vpack.c.b16 %v401, %v382
      %v404 = vshrl.u32 %v402, 16
      %v406 = vshll.u32 %v402, 16
      %v408 = vrot.slane %v406, 1
      %v409 = vor.u32 %v404, %v408
      %410 = vrot.lane.b32.xlu0 %v252, 96
      %v411 = vpop.permute.xlu0 %410
      %412 = vrot.lane.b32.xlu0 %v259, 96
      %v413 = vpop.permute.xlu0 %412
      %414 = vrot.lane.b32.xlu0 %v266, 96
      %v415 = vpop.permute.xlu0 %414
      %416 = vrot.lane.b32.xlu0 %v273, 96
      %v417 = vpop.permute.xlu0 %416
      %418 = vrot.lane.b32.xlu0 %v280, 96
      %v419 = vpop.permute.xlu0 %418
      %420 = vrot.lane.b32.xlu0 %v287, 96
      %v421 = vpop.permute.xlu0 %420
      %422 = vrot.lane.b32.xlu0 %v363, 96
      %v423 = vpop.permute.xlu0 %422
      %424 = vrot.lane.b32.xlu0 %v409, 96
      %v425 = vpop.permute.xlu0 %424
      %v426 = vrot.slane %v402, 1
      %vm427 = vcmask 261120
      %v430 = vsel %vm427, %v172, %v289
      %v433 = vsel %vm427, %v174, %v291
      %v436 = vsel %vm427, %v176, %v293
      %v439 = vsel %vm427, %v178, %v295
      %v442 = vsel %vm427, %v180, %v297
      %v445 = vsel %vm427, %v182, %v299
      %v448 = vsel %vm427, %v184, %v301
      %v451 = vsel %vm427, %v186, %v303
      %vm452 = vcmask 523264
      %v454 = vsel %vm452, %v430, %v313
      %v456 = vsel %vm452, %v433, %v315
      %v458 = vsel %vm452, %v436, %v317
      %v460 = vsel %vm452, %v439, %v319
      %v462 = vsel %vm452, %v442, %v321
      %v464 = vsel %vm452, %v445, %v323
      %v466 = vsel %vm452, %v448, %v325
      %v468 = vsel %vm452, %v451, %v327
      %vm469 = vcmask 785408
      %v471 = vsel %vm469, %v454, %v339
      %v473 = vsel %vm469, %v456, %v341
      %v475 = vsel %vm469, %v458, %v343
      %v477 = vsel %vm469, %v460, %v345
      %v479 = vsel %vm469, %v462, %v347
      %v481 = vsel %vm469, %v464, %v349
      %v483 = vsel %vm469, %v466, %v351
      %v485 = vsel %vm469, %v468, %v353
      %v488 = vsel %vm427, %v245, %v366
      %v491 = vsel %vm427, %v252, %v368
      %v494 = vsel %vm427, %v259, %v370
      %v497 = vsel %vm427, %v266, %v372
      %v500 = vsel %vm427, %v273, %v374
      %v503 = vsel %vm427, %v280, %v376
      %v506 = vsel %vm427, %v287, %v378
      %v509 = vsel %vm427, %v363, %v380
      %v511 = vsel %vm452, %v488, %v385
      %v513 = vsel %vm452, %v491, %v387
      %v515 = vsel %vm452, %v494, %v389
      %v517 = vsel %vm452, %v497, %v391
      %v519 = vsel %vm452, %v500, %v393
      %v521 = vsel %vm452, %v503, %v395
      %v523 = vsel %vm452, %v506, %v397
      %v525 = vsel %vm452, %v509, %v399
      %v527 = vsel %vm469, %v511, %v411
      %v529 = vsel %vm469, %v513, %v413
      %v531 = vsel %vm469, %v515, %v415
      %v533 = vsel %vm469, %v517, %v417
      %v535 = vsel %vm469, %v519, %v419
      %v537 = vsel %vm469, %v521, %v421
      %v539 = vsel %vm469, %v523, %v423
      %v541 = vsel %vm469, %v525, %v425
      %v558 = vunpack.c.l.b16 %v471
      %v559 = vunpack.c.l.b16 %v527
      %v560 = vunpack.c.l.b16 %v306
      %v561 = vunpack.c.l.b16 %v473
      %v562 = vunpack.c.l.b16 %v529
      %v563 = vunpack.c.l.b16 %v307
      %v564 = vunpack.c.l.b16 %v475
      %v565 = vunpack.c.l.b16 %v531
      %v566 = vunpack.c.l.b16 %v308
      %v567 = vunpack.c.l.b16 %v477
      %v568 = vunpack.c.l.b16 %v533
      %v569 = vunpack.c.l.b16 %v309
      %v570 = vunpack.c.l.b16 %v479
      %v571 = vunpack.c.l.b16 %v535
      %v572 = vunpack.c.l.b16 %v310
      %v573 = vunpack.c.l.b16 %v481
      %v574 = vunpack.c.l.b16 %v537
      %v575 = vunpack.c.l.b16 %v311
      %v576 = vunpack.c.l.b16 %v483
      %v577 = vunpack.c.l.b16 %v539
      %v578 = vunpack.c.l.b16 %v364
      %v579 = vunpack.c.l.b16 %v485
      %v580 = vunpack.c.l.b16 %v541
      %v581 = vunpack.c.l.b16 %v426
      %v582 = vld [vmem:[%s1] sm:$0xf]
      %v583 = vld [vmem:[%s1 + $0x4] sm:$0xf]
      %v584 = vld [vmem:[%s1 + $0x8] sm:$0xf]
      %v585 = vld [vmem:[%s1 + $0xc] sm:$0xf]
      %v586 = vld [vmem:[%s1 + $0x10] sm:$0xf]
      %v587 = vld [vmem:[%s1 + $0x14] sm:$0xf]
      %v588 = vld [vmem:[%s1 + $0x18] sm:$0xf]
      %v589 = vld [vmem:[%s1 + $0x1c] sm:$0xf]
      %v590 = vld [vmem:[%s1 + $0x20] sm:$0xf]
      %v591 = vld [vmem:[%s1 + $0x24] sm:$0xf]
      %v592 = vld [vmem:[%s1 + $0x28] sm:$0xf]
      %v593 = vld [vmem:[%s1 + $0x2c] sm:$0xf]
      %v594 = vld [vmem:[%s1 + $0x30] sm:$0xf]
      %v595 = vld [vmem:[%s1 + $0x34] sm:$0xf]
      %v596 = vld [vmem:[%s1 + $0x38] sm:$0xf]
      %v597 = vld [vmem:[%s1 + $0x3c] sm:$0xf]
      %v598 = vld [vmem:[%s1 + $0x40] sm:$0xf]
      %v599 = vld [vmem:[%s1 + $0x44] sm:$0xf]
      %v600 = vld [vmem:[%s1 + $0x48] sm:$0xf]
      %v601 = vld [vmem:[%s1 + $0x4c] sm:$0xf]
      %v602 = vld [vmem:[%s1 + $0x50] sm:$0xf]
      %v603 = vld [vmem:[%s1 + $0x54] sm:$0xf]
      %v604 = vld [vmem:[%s1 + $0x58] sm:$0xf]
      %v605 = vld [vmem:[%s1 + $0x5c] sm:$0xf]
      %v606 = vld [vmem:[%s1 + $0x60] sm:$0xf]
      %v607 = vld [vmem:[%s1 + $0x64] sm:$0xf]
      %v608 = vld [vmem:[%s1 + $0x68] sm:$0xf]
      %v609 = vld [vmem:[%s1 + $0x6c] sm:$0xf]
      %v610 = vld [vmem:[%s1 + $0x70] sm:$0xf]
      %v611 = vld [vmem:[%s1 + $0x74] sm:$0xf]
      %v612 = vld [vmem:[%s1 + $0x78] sm:$0xf]
      %v613 = vld [vmem:[%s1 + $0x7c] sm:$0xf]
      %v614 = vld [vmem:[%s1 + $0x80] sm:$0xf]
      %v615 = vld [vmem:[%s1 + $0x84] sm:$0xf]
      %v616 = vld [vmem:[%s1 + $0x88] sm:$0xf]
      %v617 = vld [vmem:[%s1 + $0x8c] sm:$0xf]
      %v618 = vld [vmem:[%s2] sm:$0x1]
      %v620 = vperm.slane %v618, 0
      %v622 = vpack.c.b16 %v561, %v558
      %v623 = vpack.c.b16 %v562, %v559
      %v624 = vpack.c.b16 %v563, %v560
      %v625 = vpack.c.b16 %v567, %v564
      %v626 = vpack.c.b16 %v568, %v565
      %v627 = vpack.c.b16 %v569, %v566
      %v628 = vpack.c.b16 %v573, %v570
      %v629 = vpack.c.b16 %v574, %v571
      %v630 = vpack.c.b16 %v575, %v572
      %v631 = vpack.c.b16 %v579, %v576
      %v632 = vpack.c.b16 %v580, %v577
      %v633 = vpack.c.b16 %v581, %v578
      %v678 = vunpack.c.l.b16 %v582
      %v679 = vunpack.c.l.b16 %v583
      %v680 = vunpack.c.l.b16 %v584
      %v681 = vunpack.c.l.b16 %v585
      %v682 = vunpack.c.l.b16 %v586
      %v683 = vunpack.c.l.b16 %v587
      %v684 = vunpack.c.l.b16 %v588
      %v685 = vunpack.c.l.b16 %v589
      %v686 = vunpack.c.l.b16 %v590
      %v687 = vunpack.c.l.b16 %v591
      %v688 = vunpack.c.l.b16 %v592
      %v689 = vunpack.c.l.b16 %v593
      %v690 = vunpack.c.l.b16 %v594
      %v691 = vunpack.c.l.b16 %v595
      %v692 = vunpack.c.l.b16 %v596
      %v693 = vunpack.c.l.b16 %v597
      %v694 = vunpack.c.l.b16 %v598
      %v695 = vunpack.c.l.b16 %v599
      %v696 = vunpack.c.l.b16 %v600
      %v697 = vunpack.c.l.b16 %v601
      %v698 = vunpack.c.l.b16 %v602
      %v699 = vunpack.c.l.b16 %v603
      %v700 = vunpack.c.l.b16 %v604
      %v701 = vunpack.c.l.b16 %v605
      %v702 = vunpack.c.l.b16 %v606
      %v703 = vunpack.c.l.b16 %v607
      %v704 = vunpack.c.l.b16 %v608
      %v705 = vunpack.c.l.b16 %v609
      %v706 = vunpack.c.l.b16 %v610
      %v707 = vunpack.c.l.b16 %v611
      %v708 = vunpack.c.l.b16 %v612
      %v709 = vunpack.c.l.b16 %v613
      %v710 = vunpack.c.l.b16 %v614
      %v711 = vunpack.c.l.b16 %v615
      %v712 = vunpack.c.l.b16 %v616
      %v713 = vunpack.c.l.b16 %v617
      %v714 = vpack.c.b16 %v679, %v678
      %v715 = vpack.c.b16 %v681, %v680
      %v716 = vpack.c.b16 %v683, %v682
      %v717 = vpack.c.b16 %v685, %v684
      %v718 = vpack.c.b16 %v687, %v686
      %v719 = vpack.c.b16 %v689, %v688
      %v720 = vpack.c.b16 %v691, %v690
      %v721 = vpack.c.b16 %v693, %v692
      %v722 = vpack.c.b16 %v695, %v694
      %v723 = vpack.c.b16 %v697, %v696
      %v724 = vpack.c.b16 %v699, %v698
      %v725 = vpack.c.b16 %v701, %v700
      %v726 = vpack.c.b16 %v703, %v702
      %v727 = vpack.c.b16 %v705, %v704
      %v728 = vpack.c.b16 %v707, %v706
      %v729 = vpack.c.b16 %v709, %v708
      %v730 = vpack.c.b16 %v711, %v710
      %v731 = vpack.c.b16 %v713, %v712
      %v751 = vsel %vm427, %v624, 0
      %v754 = vsel %vm427, %v627, 0
      %v757 = vsel %vm427, %v630, 0
      %v760 = vsel %vm427, %v633, 0
      %762 = vmatpush.bf16.msra.mxu0 %v721
      %763 = vmatpush.bf16.msra.mxu0 %v720
      %764 = vmatpush.bf16.msra.mxu0 %v719
      %765 = vmatpush.bf16.msra.mxu0 %v718
      %766 = vmatpush.bf16.msra.mxu0 %v717
      %767 = vmatpush.bf16.msra.mxu0 %v716
      %768 = vmatpush.bf16.msra.mxu0 %v715
      %769 = vmatpush.bf16.msra.mxu0 %v714
      %770 = vmatmul.bf16.gmra.mxu0 %v622
      %v771 = vpop.f32.mrf.mxu0
      %v772 = vadd.f32 %v620, %v771
      %v773 = vpop.f32.mrf.mxu0
      %v774 = vadd.f32 %v620, %v773
      %775 = vmatmul.bf16.gmra.mxu0 %v625
      %v776 = vpop.f32.mrf.mxu0
      %v777 = vadd.f32 %v620, %v776
      %v778 = vpop.f32.mrf.mxu0
      %v779 = vadd.f32 %v620, %v778
      %780 = vmatmul.bf16.gmra.mxu0 %v628
      %v781 = vpop.f32.mrf.mxu0
      %v782 = vadd.f32 %v620, %v781
      %v783 = vpop.f32.mrf.mxu0
      %v784 = vadd.f32 %v620, %v783
      %785 = vmatmul.bf16.gmra.mxu0 %v631
      %v786 = vpop.f32.mrf.mxu0
      %v787 = vadd.f32 %v620, %v786
      %v788 = vpop.f32.mrf.mxu0
      %v789 = vadd.f32 %v620, %v788
      %790 = vdwg.mxu0
      %791 = vmatpush.bf16.msra.mxu0 %v729
      %792 = vmatpush.bf16.msra.mxu0 %v728
      %793 = vmatpush.bf16.msra.mxu0 %v727
      %794 = vmatpush.bf16.msra.mxu0 %v726
      %795 = vmatpush.bf16.msra.mxu0 %v725
      %796 = vmatpush.bf16.msra.mxu0 %v724
      %797 = vmatpush.bf16.msra.mxu0 %v723
      %798 = vmatpush.bf16.msra.mxu0 %v722
      %799 = vmatmul.bf16.gmra.mxu0 %v623
      %v800 = vpop.f32.mrf.mxu0
      %v801 = vadd.f32 %v772, %v800
      %v802 = vpop.f32.mrf.mxu0
      %v803 = vadd.f32 %v774, %v802
      %804 = vmatmul.bf16.gmra.mxu0 %v626
      %v805 = vpop.f32.mrf.mxu0
      %v806 = vadd.f32 %v777, %v805
      %v807 = vpop.f32.mrf.mxu0
      %v808 = vadd.f32 %v779, %v807
      %809 = vmatmul.bf16.gmra.mxu0 %v629
      %v810 = vpop.f32.mrf.mxu0
      %v811 = vadd.f32 %v782, %v810
      %v812 = vpop.f32.mrf.mxu0
      %v813 = vadd.f32 %v784, %v812
      %814 = vmatmul.bf16.gmra.mxu0 %v632
      %v815 = vpop.f32.mrf.mxu0
      %v816 = vadd.f32 %v787, %v815
      %v817 = vpop.f32.mrf.mxu0
      %v818 = vadd.f32 %v789, %v817
      %819 = vdwg.mxu0
      %820 = vmatpush.bf16.msra.mxu0 0
      %821 = vmatpush.bf16.msra.mxu0 0
      %822 = vmatpush.bf16.msra.mxu0 0
      %823 = vmatpush.bf16.msra.mxu0 0
      %824 = vmatpush.bf16.msra.mxu0 0
      %825 = vmatpush.bf16.msra.mxu0 0
      %826 = vmatpush.bf16.msra.mxu0 %v731
      %827 = vmatpush.bf16.msra.mxu0 %v730
      %828 = vmatmul.bf16.gmra.mxu0 %v751
      %v829 = vpop.f32.mrf.mxu0
      %v830 = vadd.f32 %v801, %v829
      %v831 = vpop.f32.mrf.mxu0
      %v832 = vadd.f32 %v803, %v831
      %833 = vmatmul.bf16.gmra.mxu0 %v754
      %v834 = vpop.f32.mrf.mxu0
      %v835 = vadd.f32 %v806, %v834
      %v836 = vpop.f32.mrf.mxu0
      %v837 = vadd.f32 %v808, %v836
      %838 = vmatmul.bf16.gmra.mxu0 %v757
      %v839 = vpop.f32.mrf.mxu0
      %v840 = vadd.f32 %v811, %v839
      %v841 = vpop.f32.mrf.mxu0
      %v842 = vadd.f32 %v813, %v841
      %843 = vmatmul.bf16.gmra.mxu0 %v760
      %v844 = vpop.f32.mrf.mxu0
      %v845 = vadd.f32 %v816, %v844
      %v846 = vpop.f32.mrf.mxu0
      %v847 = vadd.f32 %v818, %v846
      %848 = vdwg.mxu0
      %v849 = vmax.f32 %v830, 0.0
      %v850 = vmax.f32 %v832, 0.0
      %v851 = vmax.f32 %v835, 0.0
      %v852 = vmax.f32 %v837, 0.0
      %v853 = vmax.f32 %v840, 0.0
      %v854 = vmax.f32 %v842, 0.0
      %v855 = vmax.f32 %v845, 0.0
      %v856 = vmax.f32 %v847, 0.0
      %v865 = vrot.slane %v849, 2
      %v866 = vrot.slane %v849, 4
      %v867 = vrot.slane %v849, 6
      %v868 = vrot.slane %v850, 2
      %v869 = vrot.slane %v850, 4
      %v870 = vrot.slane %v850, 6
      %v871 = vrot.slane %v851, 2
      %v872 = vrot.slane %v851, 4
      %v873 = vrot.slane %v851, 6
      %v874 = vrot.slane %v852, 2
      %v875 = vrot.slane %v852, 4
      %v876 = vrot.slane %v852, 6
      %v877 = vrot.slane %v853, 2
      %v878 = vrot.slane %v853, 4
      %v879 = vrot.slane %v853, 6
      %v880 = vrot.slane %v854, 2
      %v881 = vrot.slane %v854, 4
      %v882 = vrot.slane %v854, 6
      %v883 = vrot.slane %v855, 2
      %v884 = vrot.slane %v855, 4
      %v885 = vrot.slane %v855, 6
      %v886 = vrot.slane %v856, 2
      %v887 = vrot.slane %v856, 4
      %v888 = vrot.slane %v856, 6
      %vm913 = vcmask 517120
      %v914 = vsel %vm913, %v849, -inf
      %v915 = vrot.slane %v914, 4
      %v916 = vmax.f32 %v914, %v915
      %v917 = vrot.slane %v916, 2
      %v918 = vmax.f32 %v916, %v917
      %v919 = vrot.slane %v918, 1
      %v920 = vmax.f32 %v918, %v919
      %v921 = vsel %vm913, %v865, -inf
      %v922 = vrot.slane %v921, 4
      %v923 = vmax.f32 %v921, %v922
      %v924 = vrot.slane %v923, 2
      %v925 = vmax.f32 %v923, %v924
      %v926 = vrot.slane %v925, 1
      %v927 = vmax.f32 %v925, %v926
      %v928 = vsel %vm913, %v866, -inf
      %v929 = vrot.slane %v928, 4
      %v930 = vmax.f32 %v928, %v929
      %v931 = vrot.slane %v930, 2
      %v932 = vmax.f32 %v930, %v931
      %v933 = vrot.slane %v932, 1
      %v934 = vmax.f32 %v932, %v933
      %v935 = vsel %vm913, %v867, -inf
      %v936 = vrot.slane %v935, 4
      %v937 = vmax.f32 %v935, %v936
      %v938 = vrot.slane %v937, 2
      %v939 = vmax.f32 %v937, %v938
      %v940 = vrot.slane %v939, 1
      %v941 = vmax.f32 %v939, %v940
      %v942 = vsel %vm913, %v850, -inf
      %v943 = vrot.slane %v942, 4
      %v944 = vmax.f32 %v942, %v943
      %v945 = vrot.slane %v944, 2
      %v946 = vmax.f32 %v944, %v945
      %v947 = vrot.slane %v946, 1
      %v948 = vmax.f32 %v946, %v947
      %v949 = vsel %vm913, %v868, -inf
      %v950 = vrot.slane %v949, 4
      %v951 = vmax.f32 %v949, %v950
      %v952 = vrot.slane %v951, 2
      %v953 = vmax.f32 %v951, %v952
      %v954 = vrot.slane %v953, 1
      %v955 = vmax.f32 %v953, %v954
      %v956 = vsel %vm913, %v869, -inf
      %v957 = vrot.slane %v956, 4
      %v958 = vmax.f32 %v956, %v957
      %v959 = vrot.slane %v958, 2
      %v960 = vmax.f32 %v958, %v959
      %v961 = vrot.slane %v960, 1
      %v962 = vmax.f32 %v960, %v961
      %v963 = vsel %vm913, %v870, -inf
      %v964 = vrot.slane %v963, 4
      %v965 = vmax.f32 %v963, %v964
      %v966 = vrot.slane %v965, 2
      %v967 = vmax.f32 %v965, %v966
      %v968 = vrot.slane %v967, 1
      %v969 = vmax.f32 %v967, %v968
      %v970 = vsel %vm913, %v851, -inf
      %v971 = vrot.slane %v970, 4
      %v972 = vmax.f32 %v970, %v971
      %v973 = vrot.slane %v972, 2
      %v974 = vmax.f32 %v972, %v973
      %v975 = vrot.slane %v974, 1
      %v976 = vmax.f32 %v974, %v975
      %v977 = vsel %vm913, %v871, -inf
      %v978 = vrot.slane %v977, 4
      %v979 = vmax.f32 %v977, %v978
      %v980 = vrot.slane %v979, 2
      %v981 = vmax.f32 %v979, %v980
      %v982 = vrot.slane %v981, 1
      %v983 = vmax.f32 %v981, %v982
      %v984 = vsel %vm913, %v872, -inf
      %v985 = vrot.slane %v984, 4
      %v986 = vmax.f32 %v984, %v985
      %v987 = vrot.slane %v986, 2
      %v988 = vmax.f32 %v986, %v987
      %v989 = vrot.slane %v988, 1
      %v990 = vmax.f32 %v988, %v989
      %v991 = vsel %vm913, %v873, -inf
      %v992 = vrot.slane %v991, 4
      %v993 = vmax.f32 %v991, %v992
      %v994 = vrot.slane %v993, 2
      %v995 = vmax.f32 %v993, %v994
      %v996 = vrot.slane %v995, 1
      %v997 = vmax.f32 %v995, %v996
      %v998 = vsel %vm913, %v852, -inf
      %v999 = vrot.slane %v998, 4
      %v1000 = vmax.f32 %v998, %v999
      %v1001 = vrot.slane %v1000, 2
      %v1002 = vmax.f32 %v1000, %v1001
      %v1003 = vrot.slane %v1002, 1
      %v1004 = vmax.f32 %v1002, %v1003
      %v1005 = vsel %vm913, %v874, -inf
      %v1006 = vrot.slane %v1005, 4
      %v1007 = vmax.f32 %v1005, %v1006
      %v1008 = vrot.slane %v1007, 2
      %v1009 = vmax.f32 %v1007, %v1008
      %v1010 = vrot.slane %v1009, 1
      %v1011 = vmax.f32 %v1009, %v1010
      %v1012 = vsel %vm913, %v875, -inf
      %v1013 = vrot.slane %v1012, 4
      %v1014 = vmax.f32 %v1012, %v1013
      %v1015 = vrot.slane %v1014, 2
      %v1016 = vmax.f32 %v1014, %v1015
      %v1017 = vrot.slane %v1016, 1
      %v1018 = vmax.f32 %v1016, %v1017
      %v1019 = vsel %vm913, %v876, -inf
      %v1020 = vrot.slane %v1019, 4
      %v1021 = vmax.f32 %v1019, %v1020
      %v1022 = vrot.slane %v1021, 2
      %v1023 = vmax.f32 %v1021, %v1022
      %v1024 = vrot.slane %v1023, 1
      %v1025 = vmax.f32 %v1023, %v1024
      %v1026 = vsel %vm913, %v853, -inf
      %v1027 = vrot.slane %v1026, 4
      %v1028 = vmax.f32 %v1026, %v1027
      %v1029 = vrot.slane %v1028, 2
      %v1030 = vmax.f32 %v1028, %v1029
      %v1031 = vrot.slane %v1030, 1
      %v1032 = vmax.f32 %v1030, %v1031
      %v1033 = vsel %vm913, %v877, -inf
      %v1034 = vrot.slane %v1033, 4
      %v1035 = vmax.f32 %v1033, %v1034
      %v1036 = vrot.slane %v1035, 2
      %v1037 = vmax.f32 %v1035, %v1036
      %v1038 = vrot.slane %v1037, 1
      %v1039 = vmax.f32 %v1037, %v1038
      %v1040 = vsel %vm913, %v878, -inf
      %v1041 = vrot.slane %v1040, 4
      %v1042 = vmax.f32 %v1040, %v1041
      %v1043 = vrot.slane %v1042, 2
      %v1044 = vmax.f32 %v1042, %v1043
      %v1045 = vrot.slane %v1044, 1
      %v1046 = vmax.f32 %v1044, %v1045
      %v1047 = vsel %vm913, %v879, -inf
      %v1048 = vrot.slane %v1047, 4
      %v1049 = vmax.f32 %v1047, %v1048
      %v1050 = vrot.slane %v1049, 2
      %v1051 = vmax.f32 %v1049, %v1050
      %v1052 = vrot.slane %v1051, 1
      %v1053 = vmax.f32 %v1051, %v1052
      %v1054 = vsel %vm913, %v854, -inf
      %v1055 = vrot.slane %v1054, 4
      %v1056 = vmax.f32 %v1054, %v1055
      %v1057 = vrot.slane %v1056, 2
      %v1058 = vmax.f32 %v1056, %v1057
      %v1059 = vrot.slane %v1058, 1
      %v1060 = vmax.f32 %v1058, %v1059
      %v1061 = vsel %vm913, %v880, -inf
      %v1062 = vrot.slane %v1061, 4
      %v1063 = vmax.f32 %v1061, %v1062
      %v1064 = vrot.slane %v1063, 2
      %v1065 = vmax.f32 %v1063, %v1064
      %v1066 = vrot.slane %v1065, 1
      %v1067 = vmax.f32 %v1065, %v1066
      %v1068 = vsel %vm913, %v881, -inf
      %v1069 = vrot.slane %v1068, 4
      %v1070 = vmax.f32 %v1068, %v1069
      %v1071 = vrot.slane %v1070, 2
      %v1072 = vmax.f32 %v1070, %v1071
      %v1073 = vrot.slane %v1072, 1
      %v1074 = vmax.f32 %v1072, %v1073
      %v1075 = vsel %vm913, %v882, -inf
      %v1076 = vrot.slane %v1075, 4
      %v1077 = vmax.f32 %v1075, %v1076
      %v1078 = vrot.slane %v1077, 2
      %v1079 = vmax.f32 %v1077, %v1078
      %v1080 = vrot.slane %v1079, 1
      %v1081 = vmax.f32 %v1079, %v1080
      %v1082 = vsel %vm913, %v855, -inf
      %v1083 = vrot.slane %v1082, 4
      %v1084 = vmax.f32 %v1082, %v1083
      %v1085 = vrot.slane %v1084, 2
      %v1086 = vmax.f32 %v1084, %v1085
      %v1087 = vrot.slane %v1086, 1
      %v1088 = vmax.f32 %v1086, %v1087
      %v1089 = vsel %vm913, %v883, -inf
      %v1090 = vrot.slane %v1089, 4
      %v1091 = vmax.f32 %v1089, %v1090
      %v1092 = vrot.slane %v1091, 2
      %v1093 = vmax.f32 %v1091, %v1092
      %v1094 = vrot.slane %v1093, 1
      %v1095 = vmax.f32 %v1093, %v1094
      %v1096 = vsel %vm913, %v884, -inf
      %v1097 = vrot.slane %v1096, 4
      %v1098 = vmax.f32 %v1096, %v1097
      %v1099 = vrot.slane %v1098, 2
      %v1100 = vmax.f32 %v1098, %v1099
      %v1101 = vrot.slane %v1100, 1
      %v1102 = vmax.f32 %v1100, %v1101
      %v1103 = vsel %vm913, %v885, -inf
      %v1104 = vrot.slane %v1103, 4
      %v1105 = vmax.f32 %v1103, %v1104
      %v1106 = vrot.slane %v1105, 2
      %v1107 = vmax.f32 %v1105, %v1106
      %v1108 = vrot.slane %v1107, 1
      %v1109 = vmax.f32 %v1107, %v1108
      %v1110 = vsel %vm913, %v856, -inf
      %v1111 = vrot.slane %v1110, 4
      %v1112 = vmax.f32 %v1110, %v1111
      %v1113 = vrot.slane %v1112, 2
      %v1114 = vmax.f32 %v1112, %v1113
      %v1115 = vrot.slane %v1114, 1
      %v1116 = vmax.f32 %v1114, %v1115
      %v1117 = vsel %vm913, %v886, -inf
      %v1118 = vrot.slane %v1117, 4
      %v1119 = vmax.f32 %v1117, %v1118
      %v1120 = vrot.slane %v1119, 2
      %v1121 = vmax.f32 %v1119, %v1120
      %v1122 = vrot.slane %v1121, 1
      %v1123 = vmax.f32 %v1121, %v1122
      %v1124 = vsel %vm913, %v887, -inf
      %v1125 = vrot.slane %v1124, 4
      %v1126 = vmax.f32 %v1124, %v1125
      %v1127 = vrot.slane %v1126, 2
      %v1128 = vmax.f32 %v1126, %v1127
      %v1129 = vrot.slane %v1128, 1
      %v1130 = vmax.f32 %v1128, %v1129
      %v1131 = vsel %vm913, %v888, -inf
      %v1132 = vrot.slane %v1131, 4
      %v1133 = vmax.f32 %v1131, %v1132
      %v1134 = vrot.slane %v1133, 2
      %v1135 = vmax.f32 %v1133, %v1134
      %v1136 = vrot.slane %v1135, 1
      %v1137 = vmax.f32 %v1135, %v1136
      %v1138 = vsel %vm452, %v920, -inf
      %v1139 = vsel %vm452, %v948, -inf
      %v1140 = vmax.f32 %v1138, %v1139
      %v1141 = vsel %vm452, %v927, -inf
      %v1142 = vsel %vm452, %v955, -inf
      %v1143 = vmax.f32 %v1141, %v1142
      %v1144 = vsel %vm452, %v934, -inf
      %v1145 = vsel %vm452, %v962, -inf
      %v1146 = vmax.f32 %v1144, %v1145
      %v1147 = vsel %vm452, %v941, -inf
      %v1148 = vsel %vm452, %v969, -inf
      %v1149 = vmax.f32 %v1147, %v1148
      %v1150 = vsel %vm452, %v976, -inf
      %v1151 = vsel %vm452, %v1004, -inf
      %v1152 = vmax.f32 %v1150, %v1151
      %v1153 = vsel %vm452, %v983, -inf
      %v1154 = vsel %vm452, %v1011, -inf
      %v1155 = vmax.f32 %v1153, %v1154
      %v1156 = vsel %vm452, %v990, -inf
      %v1157 = vsel %vm452, %v1018, -inf
      %v1158 = vmax.f32 %v1156, %v1157
      %v1159 = vsel %vm452, %v997, -inf
      %v1160 = vsel %vm452, %v1025, -inf
      %v1161 = vmax.f32 %v1159, %v1160
      %v1162 = vsel %vm452, %v1032, -inf
      %v1163 = vsel %vm452, %v1060, -inf
      %v1164 = vmax.f32 %v1162, %v1163
      %v1165 = vsel %vm452, %v1039, -inf
      %v1166 = vsel %vm452, %v1067, -inf
      %v1167 = vmax.f32 %v1165, %v1166
      %v1168 = vsel %vm452, %v1046, -inf
      %v1169 = vsel %vm452, %v1074, -inf
      %v1170 = vmax.f32 %v1168, %v1169
      %v1171 = vsel %vm452, %v1053, -inf
      %v1172 = vsel %vm452, %v1081, -inf
      %v1173 = vmax.f32 %v1171, %v1172
      %v1174 = vsel %vm452, %v1088, -inf
      %v1175 = vsel %vm452, %v1116, -inf
      %v1176 = vmax.f32 %v1174, %v1175
      %v1177 = vsel %vm452, %v1095, -inf
      %v1178 = vsel %vm452, %v1123, -inf
      %v1179 = vmax.f32 %v1177, %v1178
      %v1180 = vsel %vm452, %v1102, -inf
      %v1181 = vsel %vm452, %v1130, -inf
      %v1182 = vmax.f32 %v1180, %v1181
      %v1183 = vsel %vm452, %v1109, -inf
      %v1184 = vsel %vm452, %v1137, -inf
      %v1185 = vmax.f32 %v1183, %v1184
      %vm1202 = vcmask 1041409
      %v1203 = vsel %vm1202, %v1143, %v1140
      %vm1204 = vcmask 1042434
      %v1205 = vsel %vm1204, %v1146, %v1203
      %vm1206 = vcmask 1043459
      %v1207 = vsel %vm1206, %v1149, %v1205
      %v1208 = vsel %vm1202, %v1155, %v1152
      %v1209 = vsel %vm1204, %v1158, %v1208
      %v1210 = vsel %vm1206, %v1161, %v1209
      %v1211 = vsel %vm1202, %v1167, %v1164
      %v1212 = vsel %vm1204, %v1170, %v1211
      %v1213 = vsel %vm1206, %v1173, %v1212
      %v1214 = vsel %vm1202, %v1179, %v1176
      %v1215 = vsel %vm1204, %v1182, %v1214
      %v1216 = vsel %vm1206, %v1185, %v1215
      %v1221 = vrot.slane %v1213, 4
      %vm1222 = vcmask 1047556
      %v1223 = vsel %vm1222, %v1221, %v1207
      %v1225 = vunpack.c.l.s4 1983009808
      %v1226 = vunpack.c.0.s8 %v1225
      %v1227 = vperm.slane %v1223, %v1226
      %v1228 = vrot.slane %v1216, 4
      %v1229 = vsel %vm1222, %v1228, %v1210
      %v1231 = vunpack.c.l.s4 1983009808
      %v1232 = vunpack.c.0.s8 %v1231
      %v1233 = vperm.slane %v1229, %v1232
      %v1234 = vrot.slane %v1233, 4
      %v1235 = vsel %vm1222, %v1234, %v1227
      %v1236 = vrot.slane %v1227, 4
      %v1237 = vsel %vm1222, %v1233, %v1236
      %v1239 = vunpack.c.l.s4 1934713408
      %v1240 = vunpack.c.0.s8 %v1239
      %v1241 = vperm.slane %v1235, %v1240
      %v1243 = vunpack.c.l.s4 1934713408
      %v1244 = vunpack.c.0.s8 %v1243
      %v1245 = vperm.slane %v1237, %v1244
      %v1246 = vrot.slane %v1241, 4
      %v1247 = vsel %vm1222, 0.0, %v1246
      %v1248 = vrot.slane %v1245, 4
      %v1249 = vsel %vm1222, 0.0, %v1248
      %1251 = vrot.lane.b32.xlu0 %v1247, 64
      %v1252 = vpop.permute.xlu0 %1251
      %1255 = vrot.lane.b32.xlu0 %v1249, 64
      %v1256 = vpop.permute.xlu0 %1255
      %v1258 = vsel %vm452, %v1241, %v1252
      %v1259 = vsel %vm452, %v1245, %v1256
      %v1260 = vpack.c.bf16 %v1259, %v1258
      %v1262 = vrot.slane %v1260, 2
      %vm1263 = vcmask 1041408
      %v1266 = vsel %vm1263, %v1260, %v1262
      %1268 = vst [vmem:[%s170] sm:$0xf] %v1266
      %p1269 = scmp.lt.s32.totalorder %s14, 1
      %s1270 = scalar_select %p1269, %s14, 1
      %s1271 = smul.addr %s1270, 2
      %s1272 = smul.addr %s1271, 2
      %s1273 = scalar_lea.vmem %s3, %s1272
      // Predicated region
      $region33: #{cnn_forward.4} parent=31 // pred_check
        %p1274 = pneg %p100
      $region34: #{cnn_forward.4} parent=31 // pred_check_branch
        %1276 = sbr.rel (%p1274) target = $region36
      $region35: #{cnn_forward.4} parent=31 // pred_region
        _
      $region36: #{cnn_forward.4} parent=31 // pred_fallthru
        _
    $region32: #{cnn_forward.4} parent=5 // pred_fallthru
      _
    %p1277 = scmp.le.s32.totalorder 2, %s9
    // Predicated region
    $region37: #{cnn_forward.4} parent=5 // pred_check
      %p1278 = pneg %p1277
    $region38: #{cnn_forward.4} parent=5 // pred_check_branch
      %1280 = sbr.rel (%p1278) target = $region40
    $region39: #{cnn_forward.4} parent=5 // pred_region
      %s1281 = ssub.s32 %s9, 2
      // Predicated region
      $region41: #{cnn_forward.4} parent=39 // pred_check
        %p1282 = pneg %p106
      $region42: #{cnn_forward.4} parent=39 // pred_check_branch
        %1284 = sbr.rel (%p1282) target = $region44
      $region43: #{cnn_forward.4} parent=39 // pred_region
        %p1285 = scmp.lt.s32.totalorder %s15, 1
        %s1286 = scalar_select %p1285, %s15, 1
        %s1287 = smul.addr %s1286, 2
        %s1288 = smul.addr %s1287, 2
        %s1289 = scalar_lea.vmem %s3, %s1288
      $region44: #{cnn_forward.4} parent=39 // pred_fallthru
        _
    $region40: #{cnn_forward.4} parent=5 // pred_fallthru
      _
  $region6: #{cnn_forward.4} parent=0 // loop_footer
    %s13 = sadd.s32 1, %s9
  $region7: #{cnn_forward.4} parent=0 // loop_footer_branch
    %8 = sbr.rel target = $region3
  $region8: #{cnn_forward.4} parent=0 // loop_exit
    _

// kernel: cnn_forward.5
$region0: #{cnn_forward.5}
  #allocation0 [shape = 'u32[]', space=smem, size = 0x4, offset = 0x4, fixed_abs, tag = 'smem constant byte address 0x4 - core index']
  #allocation1 [shape = 'u32[72,128]{1,0:T(1,128)}', space=vmem, size = 0x9000, scoped, tag = 'internal scratch']
  #allocation2 [shape = 'f32[2,128]{1,0:T(2,128)}', space=vmem, size = 0x400, scoped, tag = 'scratch operand']
  #allocation3 [shape = 'f32[1]{0:T(128)S(6)}', space=smem, size = 0x200, scoped, tag = 'scoped memory for cnn_forward.5']
  %s0 = inlined_call_operand.vmem [shape: bf16[2,1024], index: 0, kind: input, shape index: {}]
  %s1 = inlined_call_operand.vmem [shape: bf16[1024,128], index: 1, kind: input, shape index: {}]
  %s2 = inlined_call_operand.vmem [shape: f32[1,128], index: 2, kind: input, shape index: {}]
  %s3 = inlined_call_operand.vmem [shape: f32[1,128], index: 3, kind: input, shape index: {}]
  %s4 = inlined_call_operand.<no memory space> [shape: f32[1], index: 4, kind: input, shape index: {}]
  %s5 = inlined_call_operand.vmem [shape: f32[2,1], index: 5, kind: output, shape index: {}]
  %s6 = sld [smem:[#allocation0]]
  $region38: #{cnn_forward.5} parent=0
    _
  %s8 = ssub.s32 1, %s6
  %s9 = scalar_select 0, %s8, %s6
  %10 = sst [smem:[#allocation3]] %s4
  // Predicated region
  $region2: #{cnn_forward.5} parent=0 // pred_check
    _
  $region3: #{cnn_forward.5} parent=0 // pred_check_branch
    %12 = sbr.rel (0) target = $region5
  $region4: #{cnn_forward.5} parent=0 // pred_region
    _
  $region5: #{cnn_forward.5} parent=0 // pred_fallthru
    _
  // Predicated region
  $region6: #{cnn_forward.5} parent=0 // pred_check
    _
  $region7: #{cnn_forward.5} parent=0 // pred_check_branch
    %14 = sbr.rel (0) target = $region9
  $region8: #{cnn_forward.5} parent=0 // pred_region
    _
  $region9: #{cnn_forward.5} parent=0 // pred_fallthru
    _
  // Predicated region
  $region10: #{cnn_forward.5} parent=0 // pred_check
    _
  $region11: #{cnn_forward.5} parent=0 // pred_check_branch
    %16 = sbr.rel (0) target = $region13
  $region12: #{cnn_forward.5} parent=0 // pred_region
    _
  $region13: #{cnn_forward.5} parent=0 // pred_fallthru
    _
  // Predicated region
  $region14: #{cnn_forward.5} parent=0 // pred_check
    _
  $region15: #{cnn_forward.5} parent=0 // pred_check_branch
    %18 = sbr.rel (0) target = $region17
  $region16: #{cnn_forward.5} parent=0 // pred_region
    _
  $region17: #{cnn_forward.5} parent=0 // pred_fallthru
    _
  // Predicated region
  $region18: #{cnn_forward.5} parent=0 // pred_check
    _
  $region19: #{cnn_forward.5} parent=0 // pred_check_branch
    %20 = sbr.rel (0) target = $region21
  $region20: #{cnn_forward.5} parent=0 // pred_region
    _
  $region21: #{cnn_forward.5} parent=0 // pred_fallthru
    _
  %p21 = scmp.eq.s32.totalorder 0, 0
  // Predicated region
  $region22: #{cnn_forward.5} parent=0 // pred_check
    %p22 = pneg %p21
  $region23: #{cnn_forward.5} parent=0 // pred_check_branch
    %24 = sbr.rel (%p22) target = $region25
  $region24: #{cnn_forward.5} parent=0 // pred_region
    %25 = vst [vmem:[#allocation2] sm:$0x3] 0.0
  $region25: #{cnn_forward.5} parent=0 // pred_fallthru
    _
  %v26 = vld [vmem:[#allocation2] sm:$0x3]
  %v27 = vld [vmem:[%s0] sm:$0xff]
  %v28 = vld [vmem:[%s1] sm:$0xf]
  %v29 = vld [vmem:[%s1 + $0x4] sm:$0xf]
  %v30 = vld [vmem:[%s1 + $0x8] sm:$0xf]
  %v31 = vld [vmem:[%s1 + $0xc] sm:$0xf]
  %v32 = vld [vmem:[%s1 + $0x10] sm:$0xf]
  %v33 = vld [vmem:[%s1 + $0x14] sm:$0xf]
  %v34 = vld [vmem:[%s1 + $0x18] sm:$0xf]
  %v35 = vld [vmem:[%s1 + $0x1c] sm:$0xf]
  %v36 = vld [vmem:[%s1 + $0x20] sm:$0xf]
  %v37 = vld [vmem:[%s1 + $0x24] sm:$0xf]
  %v38 = vld [vmem:[%s1 + $0x28] sm:$0xf]
  %v39 = vld [vmem:[%s1 + $0x2c] sm:$0xf]
  %v40 = vld [vmem:[%s1 + $0x30] sm:$0xf]
  %v41 = vld [vmem:[%s1 + $0x34] sm:$0xf]
  %v42 = vld [vmem:[%s1 + $0x38] sm:$0xf]
  %v43 = vld [vmem:[%s1 + $0x3c] sm:$0xf]
  %v44 = vld [vmem:[%s1 + $0x40] sm:$0xf]
  %v45 = vld [vmem:[%s1 + $0x44] sm:$0xf]
  %v46 = vld [vmem:[%s1 + $0x48] sm:$0xf]
  %v47 = vld [vmem:[%s1 + $0x4c] sm:$0xf]
  %v48 = vld [vmem:[%s1 + $0x50] sm:$0xf]
  %v49 = vld [vmem:[%s1 + $0x54] sm:$0xf]
  %v50 = vld [vmem:[%s1 + $0x58] sm:$0xf]
  %v51 = vld [vmem:[%s1 + $0x5c] sm:$0xf]
  %v52 = vld [vmem:[%s1 + $0x60] sm:$0xf]
  %v53 = vld [vmem:[%s1 + $0x64] sm:$0xf]
  %v54 = vld [vmem:[%s1 + $0x68] sm:$0xf]
  %v55 = vld [vmem:[%s1 + $0x6c] sm:$0xf]
  %v56 = vld [vmem:[%s1 + $0x70] sm:$0xf]
  %v57 = vld [vmem:[%s1 + $0x74] sm:$0xf]
  %v58 = vld [vmem:[%s1 + $0x78] sm:$0xf]
  %v59 = vld [vmem:[%s1 + $0x7c] sm:$0xf]
  %v60 = vld [vmem:[%s1 + $0x80] sm:$0xf]
  %v61 = vld [vmem:[%s1 + $0x84] sm:$0xf]
  %v62 = vld [vmem:[%s1 + $0x88] sm:$0xf]
  %v63 = vld [vmem:[%s1 + $0x8c] sm:$0xf]
  %v64 = vld [vmem:[%s1 + $0x90] sm:$0xf]
  %v65 = vld [vmem:[%s1 + $0x94] sm:$0xf]
  %v66 = vld [vmem:[%s1 + $0x98] sm:$0xf]
  %v67 = vld [vmem:[%s1 + $0x9c] sm:$0xf]
  %v68 = vld [vmem:[%s1 + $0xa0] sm:$0xf]
  %v69 = vld [vmem:[%s1 + $0xa4] sm:$0xf]
  %v70 = vld [vmem:[%s1 + $0xa8] sm:$0xf]
  %v71 = vld [vmem:[%s1 + $0xac] sm:$0xf]
  %v72 = vld [vmem:[%s1 + $0xb0] sm:$0xf]
  %v73 = vld [vmem:[%s1 + $0xb4] sm:$0xf]
  %v74 = vld [vmem:[%s1 + $0xb8] sm:$0xf]
  %v75 = vld [vmem:[%s1 + $0xbc] sm:$0xf]
  %v76 = vld [vmem:[%s1 + $0xc0] sm:$0xf]
  %v77 = vld [vmem:[%s1 + $0xc4] sm:$0xf]
  %v78 = vld [vmem:[%s1 + $0xc8] sm:$0xf]
  %v79 = vld [vmem:[%s1 + $0xcc] sm:$0xf]
  %v80 = vld [vmem:[%s1 + $0xd0] sm:$0xf]
  %v81 = vld [vmem:[%s1 + $0xd4] sm:$0xf]
  %v82 = vld [vmem:[%s1 + $0xd8] sm:$0xf]
  %v83 = vld [vmem:[%s1 + $0xdc] sm:$0xf]
  %v84 = vld [vmem:[%s1 + $0xe0] sm:$0xf]
  %v85 = vld [vmem:[%s1 + $0xe4] sm:$0xf]
  %v86 = vld [vmem:[%s1 + $0xe8] sm:$0xf]
  %v87 = vld [vmem:[%s1 + $0xec] sm:$0xf]
  %v88 = vld [vmem:[%s1 + $0xf0] sm:$0xf]
  %v89 = vld [vmem:[%s1 + $0xf4] sm:$0xf]
  %v90 = vld [vmem:[%s1 + $0xf8] sm:$0xf]
  %v91 = vld [vmem:[%s1 + $0xfc] sm:$0xf]
  %v92 = vld [vmem:[%s1 + $0x100] sm:$0xf]
  %v93 = vld [vmem:[%s1 + $0x104] sm:$0xf]
  %v94 = vld [vmem:[%s1 + $0x108] sm:$0xf]
  %v95 = vld [vmem:[%s1 + $0x10c] sm:$0xf]
  %v96 = vld [vmem:[%s1 + $0x110] sm:$0xf]
  %v97 = vld [vmem:[%s1 + $0x114] sm:$0xf]
  %v98 = vld [vmem:[%s1 + $0x118] sm:$0xf]
  %v99 = vld [vmem:[%s1 + $0x11c] sm:$0xf]
  %v100 = vld [vmem:[%s1 + $0x120] sm:$0xf]
  %v101 = vld [vmem:[%s1 + $0x124] sm:$0xf]
  %v102 = vld [vmem:[%s1 + $0x128] sm:$0xf]
  %v103 = vld [vmem:[%s1 + $0x12c] sm:$0xf]
  %v104 = vld [vmem:[%s1 + $0x130] sm:$0xf]
  %v105 = vld [vmem:[%s1 + $0x134] sm:$0xf]
  %v106 = vld [vmem:[%s1 + $0x138] sm:$0xf]
  %v107 = vld [vmem:[%s1 + $0x13c] sm:$0xf]
  %v108 = vld [vmem:[%s1 + $0x140] sm:$0xf]
  %v109 = vld [vmem:[%s1 + $0x144] sm:$0xf]
  %v110 = vld [vmem:[%s1 + $0x148] sm:$0xf]
  %v111 = vld [vmem:[%s1 + $0x14c] sm:$0xf]
  %v112 = vld [vmem:[%s1 + $0x150] sm:$0xf]
  %v113 = vld [vmem:[%s1 + $0x154] sm:$0xf]
  %v114 = vld [vmem:[%s1 + $0x158] sm:$0xf]
  %v115 = vld [vmem:[%s1 + $0x15c] sm:$0xf]
  %v116 = vld [vmem:[%s1 + $0x160] sm:$0xf]
  %v117 = vld [vmem:[%s1 + $0x164] sm:$0xf]
  %v118 = vld [vmem:[%s1 + $0x168] sm:$0xf]
  %v119 = vld [vmem:[%s1 + $0x16c] sm:$0xf]
  %v120 = vld [vmem:[%s1 + $0x170] sm:$0xf]
  %v121 = vld [vmem:[%s1 + $0x174] sm:$0xf]
  %v122 = vld [vmem:[%s1 + $0x178] sm:$0xf]
  %v123 = vld [vmem:[%s1 + $0x17c] sm:$0xf]
  %v124 = vld [vmem:[%s1 + $0x180] sm:$0xf]
  %v125 = vld [vmem:[%s1 + $0x184] sm:$0xf]
  %v126 = vld [vmem:[%s1 + $0x188] sm:$0xf]
  %v127 = vld [vmem:[%s1 + $0x18c] sm:$0xf]
  %v128 = vld [vmem:[%s1 + $0x190] sm:$0xf]
  %v129 = vld [vmem:[%s1 + $0x194] sm:$0xf]
  %v130 = vld [vmem:[%s1 + $0x198] sm:$0xf]
  %v131 = vld [vmem:[%s1 + $0x19c] sm:$0xf]
  %v132 = vld [vmem:[%s1 + $0x1a0] sm:$0xf]
  %v133 = vld [vmem:[%s1 + $0x1a4] sm:$0xf]
  %v134 = vld [vmem:[%s1 + $0x1a8] sm:$0xf]
  %v135 = vld [vmem:[%s1 + $0x1ac] sm:$0xf]
  %v136 = vld [vmem:[%s1 + $0x1b0] sm:$0xf]
  %v137 = vld [vmem:[%s1 + $0x1b4] sm:$0xf]
  %v138 = vld [vmem:[%s1 + $0x1b8] sm:$0xf]
  %v139 = vld [vmem:[%s1 + $0x1bc] sm:$0xf]
  %v140 = vld [vmem:[%s1 + $0x1c0] sm:$0xf]
  %v141 = vld [vmem:[%s1 + $0x1c4] sm:$0xf]
  %v142 = vld [vmem:[%s1 + $0x1c8] sm:$0xf]
  %v143 = vld [vmem:[%s1 + $0x1cc] sm:$0xf]
  %v144 = vld [vmem:[%s1 + $0x1d0] sm:$0xf]
  %v145 = vld [vmem:[%s1 + $0x1d4] sm:$0xf]
  %v146 = vld [vmem:[%s1 + $0x1d8] sm:$0xf]
  %v147 = vld [vmem:[%s1 + $0x1dc] sm:$0xf]
  %v148 = vld [vmem:[%s1 + $0x1e0] sm:$0xf]
  %v149 = vld [vmem:[%s1 + $0x1e4] sm:$0xf]
  %v150 = vld [vmem:[%s1 + $0x1e8] sm:$0xf]
  %v151 = vld [vmem:[%s1 + $0x1ec] sm:$0xf]
  %v152 = vld [vmem:[%s1 + $0x1f0] sm:$0xf]
  %v153 = vld [vmem:[%s1 + $0x1f4] sm:$0xf]
  %v154 = vld [vmem:[%s1 + $0x1f8] sm:$0xf]
  %v155 = vld [vmem:[%s1 + $0x1fc] sm:$0xf]
  %157 = vst [vmem:[#allocation1] ss:$9 sm:$0xff] %v27
  %v158 = vld [vmem:[#allocation1] sm:$0xff]
  %v159 = vld [vmem:[#allocation1 + $0x9] sm:$0xff]
  %v160 = vld [vmem:[#allocation1 + $0x12] sm:$0xff]
  %v161 = vld [vmem:[#allocation1 + $0x1b] sm:$0xff]
  %v162 = vld [vmem:[#allocation1 + $0x24] sm:$0xff]
  %v163 = vld [vmem:[#allocation1 + $0x2d] sm:$0xff]
  %v164 = vld [vmem:[#allocation1 + $0x36] sm:$0xff]
  %v165 = vld [vmem:[#allocation1 + $0x3f] sm:$0xff]
  %v302 = vunpack.c.l.b16 %v28
  %v303 = vunpack.c.l.b16 %v29
  %v304 = vunpack.c.l.b16 %v30
  %v305 = vunpack.c.l.b16 %v31
  %v306 = vunpack.c.l.b16 %v32
  %v307 = vunpack.c.l.b16 %v33
  %v308 = vunpack.c.l.b16 %v34
  %v309 = vunpack.c.l.b16 %v35
  %v310 = vunpack.c.l.b16 %v36
  %v311 = vunpack.c.l.b16 %v37
  %v312 = vunpack.c.l.b16 %v38
  %v313 = vunpack.c.l.b16 %v39
  %v314 = vunpack.c.l.b16 %v40
  %v315 = vunpack.c.l.b16 %v41
  %v316 = vunpack.c.l.b16 %v42
  %v317 = vunpack.c.l.b16 %v43
  %v318 = vunpack.c.l.b16 %v44
  %v319 = vunpack.c.l.b16 %v45
  %v320 = vunpack.c.l.b16 %v46
  %v321 = vunpack.c.l.b16 %v47
  %v322 = vunpack.c.l.b16 %v48
  %v323 = vunpack.c.l.b16 %v49
  %v324 = vunpack.c.l.b16 %v50
  %v325 = vunpack.c.l.b16 %v51
  %v326 = vunpack.c.l.b16 %v52
  %v327 = vunpack.c.l.b16 %v53
  %v328 = vunpack.c.l.b16 %v54
  %v329 = vunpack.c.l.b16 %v55
  %v330 = vunpack.c.l.b16 %v56
  %v331 = vunpack.c.l.b16 %v57
  %v332 = vunpack.c.l.b16 %v58
  %v333 = vunpack.c.l.b16 %v59
  %v334 = vunpack.c.l.b16 %v60
  %v335 = vunpack.c.l.b16 %v61
  %v336 = vunpack.c.l.b16 %v62
  %v337 = vunpack.c.l.b16 %v63
  %v338 = vunpack.c.l.b16 %v64
  %v339 = vunpack.c.l.b16 %v65
  %v340 = vunpack.c.l.b16 %v66
  %v341 = vunpack.c.l.b16 %v67
  %v342 = vunpack.c.l.b16 %v68
  %v343 = vunpack.c.l.b16 %v69
  %v344 = vunpack.c.l.b16 %v70
  %v345 = vunpack.c.l.b16 %v71
  %v346 = vunpack.c.l.b16 %v72
  %v347 = vunpack.c.l.b16 %v73
  %v348 = vunpack.c.l.b16 %v74
  %v349 = vunpack.c.l.b16 %v75
  %v350 = vunpack.c.l.b16 %v76
  %v351 = vunpack.c.l.b16 %v77
  %v352 = vunpack.c.l.b16 %v78
  %v353 = vunpack.c.l.b16 %v79
  %v354 = vunpack.c.l.b16 %v80
  %v355 = vunpack.c.l.b16 %v81
  %v356 = vunpack.c.l.b16 %v82
  %v357 = vunpack.c.l.b16 %v83
  %v358 = vunpack.c.l.b16 %v84
  %v359 = vunpack.c.l.b16 %v85
  %v360 = vunpack.c.l.b16 %v86
  %v361 = vunpack.c.l.b16 %v87
  %v362 = vunpack.c.l.b16 %v88
  %v363 = vunpack.c.l.b16 %v89
  %v364 = vunpack.c.l.b16 %v90
  %v365 = vunpack.c.l.b16 %v91
  %v366 = vunpack.c.l.b16 %v92
  %v367 = vunpack.c.l.b16 %v93
  %v368 = vunpack.c.l.b16 %v94
  %v369 = vunpack.c.l.b16 %v95
  %v370 = vunpack.c.l.b16 %v96
  %v371 = vunpack.c.l.b16 %v97
  %v372 = vunpack.c.l.b16 %v98
  %v373 = vunpack.c.l.b16 %v99
  %v374 = vunpack.c.l.b16 %v100
  %v375 = vunpack.c.l.b16 %v101
  %v376 = vunpack.c.l.b16 %v102
  %v377 = vunpack.c.l.b16 %v103
  %v378 = vunpack.c.l.b16 %v104
  %v379 = vunpack.c.l.b16 %v105
  %v380 = vunpack.c.l.b16 %v106
  %v381 = vunpack.c.l.b16 %v107
  %v382 = vunpack.c.l.b16 %v108
  %v383 = vunpack.c.l.b16 %v109
  %v384 = vunpack.c.l.b16 %v110
  %v385 = vunpack.c.l.b16 %v111
  %v386 = vunpack.c.l.b16 %v112
  %v387 = vunpack.c.l.b16 %v113
  %v388 = vunpack.c.l.b16 %v114
  %v389 = vunpack.c.l.b16 %v115
  %v390 = vunpack.c.l.b16 %v116
  %v391 = vunpack.c.l.b16 %v117
  %v392 = vunpack.c.l.b16 %v118
  %v393 = vunpack.c.l.b16 %v119
  %v394 = vunpack.c.l.b16 %v120
  %v395 = vunpack.c.l.b16 %v121
  %v396 = vunpack.c.l.b16 %v122
  %v397 = vunpack.c.l.b16 %v123
  %v398 = vunpack.c.l.b16 %v124
  %v399 = vunpack.c.l.b16 %v125
  %v400 = vunpack.c.l.b16 %v126
  %v401 = vunpack.c.l.b16 %v127
  %v402 = vunpack.c.l.b16 %v128
  %v403 = vunpack.c.l.b16 %v129
  %v404 = vunpack.c.l.b16 %v130
  %v405 = vunpack.c.l.b16 %v131
  %v406 = vunpack.c.l.b16 %v132
  %v407 = vunpack.c.l.b16 %v133
  %v408 = vunpack.c.l.b16 %v134
  %v409 = vunpack.c.l.b16 %v135
  %v410 = vunpack.c.l.b16 %v136
  %v411 = vunpack.c.l.b16 %v137
  %v412 = vunpack.c.l.b16 %v138
  %v413 = vunpack.c.l.b16 %v139
  %v414 = vunpack.c.l.b16 %v140
  %v415 = vunpack.c.l.b16 %v141
  %v416 = vunpack.c.l.b16 %v142
  %v417 = vunpack.c.l.b16 %v143
  %v418 = vunpack.c.l.b16 %v144
  %v419 = vunpack.c.l.b16 %v145
  %v420 = vunpack.c.l.b16 %v146
  %v421 = vunpack.c.l.b16 %v147
  %v422 = vunpack.c.l.b16 %v148
  %v423 = vunpack.c.l.b16 %v149
  %v424 = vunpack.c.l.b16 %v150
  %v425 = vunpack.c.l.b16 %v151
  %v426 = vunpack.c.l.b16 %v152
  %v427 = vunpack.c.l.b16 %v153
  %v428 = vunpack.c.l.b16 %v154
  %v429 = vunpack.c.l.b16 %v155
  %v430 = vpack.c.b16 %v303, %v302
  %v431 = vpack.c.b16 %v305, %v304
  %v432 = vpack.c.b16 %v307, %v306
  %v433 = vpack.c.b16 %v309, %v308
  %v434 = vpack.c.b16 %v311, %v310
  %v435 = vpack.c.b16 %v313, %v312
  %v436 = vpack.c.b16 %v315, %v314
  %v437 = vpack.c.b16 %v317, %v316
  %v438 = vpack.c.b16 %v319, %v318
  %v439 = vpack.c.b16 %v321, %v320
  %v440 = vpack.c.b16 %v323, %v322
  %v441 = vpack.c.b16 %v325, %v324
  %v442 = vpack.c.b16 %v327, %v326
  %v443 = vpack.c.b16 %v329, %v328
  %v444 = vpack.c.b16 %v331, %v330
  %v445 = vpack.c.b16 %v333, %v332
  %v446 = vpack.c.b16 %v335, %v334
  %v447 = vpack.c.b16 %v337, %v336
  %v448 = vpack.c.b16 %v339, %v338
  %v449 = vpack.c.b16 %v341, %v340
  %v450 = vpack.c.b16 %v343, %v342
  %v451 = vpack.c.b16 %v345, %v344
  %v452 = vpack.c.b16 %v347, %v346
  %v453 = vpack.c.b16 %v349, %v348
  %v454 = vpack.c.b16 %v351, %v350
  %v455 = vpack.c.b16 %v353, %v352
  %v456 = vpack.c.b16 %v355, %v354
  %v457 = vpack.c.b16 %v357, %v356
  %v458 = vpack.c.b16 %v359, %v358
  %v459 = vpack.c.b16 %v361, %v360
  %v460 = vpack.c.b16 %v363, %v362
  %v461 = vpack.c.b16 %v365, %v364
  %v462 = vpack.c.b16 %v367, %v366
  %v463 = vpack.c.b16 %v369, %v368
  %v464 = vpack.c.b16 %v371, %v370
  %v465 = vpack.c.b16 %v373, %v372
  %v466 = vpack.c.b16 %v375, %v374
  %v467 = vpack.c.b16 %v377, %v376
  %v468 = vpack.c.b16 %v379, %v378
  %v469 = vpack.c.b16 %v381, %v380
  %v470 = vpack.c.b16 %v383, %v382
  %v471 = vpack.c.b16 %v385, %v384
  %v472 = vpack.c.b16 %v387, %v386
  %v473 = vpack.c.b16 %v389, %v388
  %v474 = vpack.c.b16 %v391, %v390
  %v475 = vpack.c.b16 %v393, %v392
  %v476 = vpack.c.b16 %v395, %v394
  %v477 = vpack.c.b16 %v397, %v396
  %v478 = vpack.c.b16 %v399, %v398
  %v479 = vpack.c.b16 %v401, %v400
  %v480 = vpack.c.b16 %v403, %v402
  %v481 = vpack.c.b16 %v405, %v404
  %v482 = vpack.c.b16 %v407, %v406
  %v483 = vpack.c.b16 %v409, %v408
  %v484 = vpack.c.b16 %v411, %v410
  %v485 = vpack.c.b16 %v413, %v412
  %v486 = vpack.c.b16 %v415, %v414
  %v487 = vpack.c.b16 %v417, %v416
  %v488 = vpack.c.b16 %v419, %v418
  %v489 = vpack.c.b16 %v421, %v420
  %v490 = vpack.c.b16 %v423, %v422
  %v491 = vpack.c.b16 %v425, %v424
  %v492 = vpack.c.b16 %v427, %v426
  %v493 = vpack.c.b16 %v429, %v428
  %558 = vmatpush.bf16.msra.mxu0 %v437
  %559 = vmatpush.bf16.msra.mxu0 %v436
  %560 = vmatpush.bf16.msra.mxu0 %v435
  %561 = vmatpush.bf16.msra.mxu0 %v434
  %562 = vmatpush.bf16.msra.mxu0 %v433
  %563 = vmatpush.bf16.msra.mxu0 %v432
  %564 = vmatpush.bf16.msra.mxu0 %v431
  %565 = vmatpush.bf16.msra.mxu0 %v430
  %566 = vmatmul.bf16.gmra.mxu0 %v158
  %v567 = vpop.f32.mrf.mxu0
  %v568 = vadd.f32 0.0, %v567
  %v569 = vpop.f32.mrf.mxu0
  %570 = vdwg.mxu0
  %571 = vmatpush.bf16.msra.mxu0 %v445
  %572 = vmatpush.bf16.msra.mxu0 %v444
  %573 = vmatpush.bf16.msra.mxu0 %v443
  %574 = vmatpush.bf16.msra.mxu0 %v442
  %575 = vmatpush.bf16.msra.mxu0 %v441
  %576 = vmatpush.bf16.msra.mxu0 %v440
  %577 = vmatpush.bf16.msra.mxu0 %v439
  %578 = vmatpush.bf16.msra.mxu0 %v438
  %579 = vmatmul.bf16.gmra.mxu0 %v159
  %v580 = vpop.f32.mrf.mxu0
  %v581 = vadd.f32 %v568, %v580
  %v582 = vpop.f32.mrf.mxu0
  %583 = vdwg.mxu0
  %584 = vmatpush.bf16.msra.mxu0 %v453
  %585 = vmatpush.bf16.msra.mxu0 %v452
  %586 = vmatpush.bf16.msra.mxu0 %v451
  %587 = vmatpush.bf16.msra.mxu0 %v450
  %588 = vmatpush.bf16.msra.mxu0 %v449
  %589 = vmatpush.bf16.msra.mxu0 %v448
  %590 = vmatpush.bf16.msra.mxu0 %v447
  %591 = vmatpush.bf16.msra.mxu0 %v446
  %592 = vmatmul.bf16.gmra.mxu0 %v160
  %v593 = vpop.f32.mrf.mxu0
  %v594 = vadd.f32 %v581, %v593
  %v595 = vpop.f32.mrf.mxu0
  %596 = vdwg.mxu0
  %597 = vmatpush.bf16.msra.mxu0 %v461
  %598 = vmatpush.bf16.msra.mxu0 %v460
  %599 = vmatpush.bf16.msra.mxu0 %v459
  %600 = vmatpush.bf16.msra.mxu0 %v458
  %601 = vmatpush.bf16.msra.mxu0 %v457
  %602 = vmatpush.bf16.msra.mxu0 %v456
  %603 = vmatpush.bf16.msra.mxu0 %v455
  %604 = vmatpush.bf16.msra.mxu0 %v454
  %605 = vmatmul.bf16.gmra.mxu0 %v161
  %v606 = vpop.f32.mrf.mxu0
  %v607 = vadd.f32 %v594, %v606
  %v608 = vpop.f32.mrf.mxu0
  %609 = vdwg.mxu0
  %610 = vmatpush.bf16.msra.mxu0 %v469
  %611 = vmatpush.bf16.msra.mxu0 %v468
  %612 = vmatpush.bf16.msra.mxu0 %v467
  %613 = vmatpush.bf16.msra.mxu0 %v466
  %614 = vmatpush.bf16.msra.mxu0 %v465
  %615 = vmatpush.bf16.msra.mxu0 %v464
  %616 = vmatpush.bf16.msra.mxu0 %v463
  %617 = vmatpush.bf16.msra.mxu0 %v462
  %618 = vmatmul.bf16.gmra.mxu0 %v162
  %v619 = vpop.f32.mrf.mxu0
  %v620 = vadd.f32 %v607, %v619
  %v621 = vpop.f32.mrf.mxu0
  %622 = vdwg.mxu0
  %623 = vmatpush.bf16.msra.mxu0 %v477
  %624 = vmatpush.bf16.msra.mxu0 %v476
  %625 = vmatpush.bf16.msra.mxu0 %v475
  %626 = vmatpush.bf16.msra.mxu0 %v474
  %627 = vmatpush.bf16.msra.mxu0 %v473
  %628 = vmatpush.bf16.msra.mxu0 %v472
  %629 = vmatpush.bf16.msra.mxu0 %v471
  %630 = vmatpush.bf16.msra.mxu0 %v470
  %631 = vmatmul.bf16.gmra.mxu0 %v163
  %v632 = vpop.f32.mrf.mxu0
  %v633 = vadd.f32 %v620, %v632
  %v634 = vpop.f32.mrf.mxu0
  %635 = vdwg.mxu0
  %636 = vmatpush.bf16.msra.mxu0 %v485
  %637 = vmatpush.bf16.msra.mxu0 %v484
  %638 = vmatpush.bf16.msra.mxu0 %v483
  %639 = vmatpush.bf16.msra.mxu0 %v482
  %640 = vmatpush.bf16.msra.mxu0 %v481
  %641 = vmatpush.bf16.msra.mxu0 %v480
  %642 = vmatpush.bf16.msra.mxu0 %v479
  %643 = vmatpush.bf16.msra.mxu0 %v478
  %644 = vmatmul.bf16.gmra.mxu0 %v164
  %v645 = vpop.f32.mrf.mxu0
  %v646 = vadd.f32 %v633, %v645
  %v647 = vpop.f32.mrf.mxu0
  %648 = vdwg.mxu0
  %649 = vmatpush.bf16.msra.mxu0 %v493
  %650 = vmatpush.bf16.msra.mxu0 %v492
  %651 = vmatpush.bf16.msra.mxu0 %v491
  %652 = vmatpush.bf16.msra.mxu0 %v490
  %653 = vmatpush.bf16.msra.mxu0 %v489
  %654 = vmatpush.bf16.msra.mxu0 %v488
  %655 = vmatpush.bf16.msra.mxu0 %v487
  %656 = vmatpush.bf16.msra.mxu0 %v486
  %657 = vmatmul.bf16.gmra.mxu0 %v165
  %v658 = vpop.f32.mrf.mxu0
  %v659 = vadd.f32 %v646, %v658
  %v660 = vpop.f32.mrf.mxu0
  %661 = vdwg.mxu0
  %v662 = vadd.f32 %v26, %v659
  %663 = vst [vmem:[#allocation2] sm:$0x3] %v662
  // Predicated region
  $region26: #{cnn_forward.5} parent=0 // pred_check
    %p664 = pneg %p21
  $region27: #{cnn_forward.5} parent=0 // pred_check_branch
    %666 = sbr.rel (%p664) target = $region29
  $region28: #{cnn_forward.5} parent=0 // pred_region
    %v667 = vld [vmem:[#allocation2] sm:$0x3]
    %v668 = vld [vmem:[%s2] sm:$0x1]
    %v670 = vperm.slane %v668, 0
    %v672 = vadd.f32 %v667, %v670
    %v673 = vmax.f32 %v672, 0.0
    %v674 = vld [vmem:[%s3] sm:$0x1]
    %v676 = vperm.slane %v674, 0
    %v678 = vmul.f32 %v673, %v676
    %vm679 = vcmask 1041408
    %v680 = vsel %vm679, %v678, 0.0
    %681 = vadd.xlane.f32.xlu0 %v680
    %v682 = vpop.xlane.xlu0 %681
    %s683 = sld [smem:[#allocation3]]
    %v684 = vstv %s683
    %v685 = vadd.f32 %v682, %v684
    %v686 = vsub.f32 0.0, %v685
    %v687 = vmul.f32 %v686, 1.442695
    %v688 = vpow.pop %v687
    %v689 = vadd.f32 %v688, 1.0
    %v690 = vrcp.pop %v689
    %v691 = vmul.f32 %v689, %v690
    %v692 = vsub.f32 1.0, %v691
    %v693 = vmul.f32 %v690, %v692
    %v694 = vadd.f32 %v690, %v693
    %vm695 = vweird.f32 %v689
    %vm696 = vweird.f32 %v690
    %vm697 = vmor %vm695, %vm696
    %v698 = vsel %vm697, %v690, %v694
    %v699 = vand.u32 2147483647, %v689
    %vm700 = vcmp.eq.f32.partialorder %v699, 8.507059e+37
    %v701 = vand.u32 %v689, 2147483648
    %v702 = vor.u32 1.1754944e-38, %v701
    %v703 = vsel %vm700, %v702, %v698
    %v704 = vmul.f32 1.0, %v703
    %vm705 = vcmask 1024
    %706 = vst.msk [vmem:[%s5] sm:$0x3] %vm705, %v704
  $region29: #{cnn_forward.5} parent=0 // pred_fallthru
    _
  // Predicated region
  $region30: #{cnn_forward.5} parent=0 // pred_check
    _
  $region31: #{cnn_forward.5} parent=0 // pred_check_branch
    %708 = sbr.rel (0) target = $region33
  $region32: #{cnn_forward.5} parent=0 // pred_region
    _
  $region33: #{cnn_forward.5} parent=0 // pred_fallthru
    _
  // Predicated region
  $region34: #{cnn_forward.5} parent=0 // pred_check
    _
  $region35: #{cnn_forward.5} parent=0 // pred_check_branch
    %710 = sbr.rel (0) target = $region37
  $region36: #{cnn_forward.5} parent=0 // pred_region
    _
  $region37: #{cnn_forward.5} parent=0 // pred_fallthru
    _

</llo_original>
